<compile_context>
chip_gen: v7x
topology: tpu7x:2x2x1
jax: 0.10.0
libtpu: 0.0.40
codegen_flags: <defaults>
</compile_context>

<pallas_src>
import jax
import jax.numpy as jnp
from jax.experimental import pallas as pl
from jax.experimental.pallas import tpu as pltpu


# ------------------------------ fused kernel ------------------------------- #

def _fused_net_kernel(x_ref, w1_ref, b1_ref, w2_ref, b2_ref, fw_ref, fb_ref, o_ref):
    # x_ref : (1, H, W, B, 1)   input batch tile, (H, W, batch, channel) layout
    # w1_ref: (9, 64)           conv1 weights, row = dh*3+dw
    # b1_ref: (1, 64)
    # w2_ref: (576, 32)         conv2 weights, row = (dh*3+dw)*64 + cin
    # b2_ref: (1, 32)
    # fw_ref: (128, 2)          fc weights, rows permuted to kernel flatten order
    # fb_ref: (1, 2)
    # o_ref : (1, B, 2)         log-probabilities
    _, H, W, B, _ = x_ref.shape
    hc1, wc1 = H - 2, W - 2          # conv1 output spatial
    hp1, wp1 = hc1 // 2, wc1 // 2    # after first 2x2 max pool

    w1v = w1_ref[...]                # (9, 64)
    b1v = b1_ref[...]                # (1, 64)
    b2v = b2_ref[...]                # (1, 32)

    # Hoisted lane-broadcast of the single input channel to 64 lanes (done
    # once here instead of implicitly inside each of the 9 tap multiplies).
    xb = jnp.broadcast_to(x_ref[0], (H, W, B, 64))       # (H, W, B, 64)

    # ---- conv1 (Cin=1): 9 shift-MACs on the VPU ----
    acc = None
    for dh in range(3):
        for dw in range(3):
            k = dh * 3 + dw
            term = xb[dh:dh + hc1, dw:dw + wc1] * w1v[k:k + 1]   # (hc1,wc1,B,64)
            acc = term if acc is None else acc + term
    y1 = jnp.maximum(acc + b1v, 0.0)                             # (hc1, wc1, B, 64)

    # ---- 2x2 max pool (leading-dim reshapes + elementwise max only) ----
    yh = y1.reshape(hp1, 2, wc1, B, 64)
    yh = jnp.maximum(yh[:, 0], yh[:, 1])                         # (hp1, wc1, B, 64)
    yw = yh.reshape(hp1, wp1, 2, B, 64)
    act1 = jnp.maximum(yw[:, :, 0], yw[:, :, 1])                 # (hp1, wp1, B, 64)

    # ---- conv2 (64->32): one im2col matmul over the 16 needed positions ----
    # Positions grouped by pooled output p=(i,j), then by pool shift (dy,dx),
    # so the later 2x2 pool is a max over 4 consecutive B-row blocks.
    pos = [(2 * i + dy, 2 * j + dx)
           for i in range(2) for j in range(2)
           for dy in range(2) for dx in range(2)]                # 16 positions
    cols = []
    for dh in range(3):
        for dw in range(3):
            cols.append(jnp.concatenate(
                [act1[h + dh, w + dw] for (h, w) in pos], axis=0))   # (16*B, 64)
    patches = jnp.concatenate(cols, axis=1)                          # (16*B, 576)
    z = jnp.dot(patches, w2_ref[...], preferred_element_type=jnp.float32)  # (16*B, 32)

    # ---- 2x2 max pool over the 4 shifts, bias + ReLU, flatten (hwc order) ----
    pieces = []
    for p in range(4):
        cand = z[(4 * p) * B:(4 * p + 1) * B]
        for s in range(1, 4):
            cand = jnp.maximum(cand, z[(4 * p + s) * B:(4 * p + s + 1) * B])
        pieces.append(jnp.maximum(cand + b2v, 0.0))              # (B, 32)
    flat = jnp.concatenate(pieces, axis=1)                       # (B, 128)

    # ---- fc + log_softmax ----
    logits = jnp.dot(flat, fw_ref[...], preferred_element_type=jnp.float32) + fb_ref[...]
    m = jnp.max(logits, axis=-1, keepdims=True)
    s0 = logits - m
    lse = jnp.log(jnp.sum(jnp.exp(s0), axis=-1, keepdims=True))
    o_ref[0] = s0 - lse


# ------------------------------- JAX wrapper -------------------------------- #

def _prepare_kernel_params(params):
    """Convert PyTorch-layout params into the layouts the fused kernel consumes."""
    w1 = params["conv1_w"]           # (64, 1, 3, 3)  OIHW
    w2 = params["conv2_w"]           # (32, 64, 3, 3) OIHW
    fw = params["fc_w"]              # (2, 128)
    w1k = jnp.transpose(w1, (2, 3, 1, 0)).reshape(9, 64)          # row = dh*3+dw
    w2k = jnp.transpose(w2, (2, 3, 1, 0)).reshape(9 * 64, 32)     # row = (dh*3+dw)*64+cin
    # PyTorch flattens (N,32,2,2) as c*4 + h*2 + w; the kernel flattens as
    # (h*2+w)*32 + c. Permute the fc rows once here so the kernel needs no
    # NHWC->NCHW transpose of activations.
    fwk = jnp.transpose(fw.reshape(2, 32, 4), (2, 1, 0)).reshape(128, 2)
    return (w1k, params["conv1_b"].reshape(1, 64),
            w2k, params["conv2_b"].reshape(1, 32),
            fwk, params["fc_b"].reshape(1, 2))


@jax.jit
def net_forward(x_nchw, params):
    n, cin, h, w = x_nchw.shape
    assert cin == 1 and (h - 2) % 2 == 0 and (w - 2) % 2 == 0
    # fc expects 32*2*2 = 128 features after the second pool.
    assert ((h - 2) // 2 - 2) // 2 == 2 and ((w - 2) // 2 - 2) // 2 == 2

    w1k, b1k, w2k, b2k, fwk, fbk = _prepare_kernel_params(params)

    # Batch tile: a multiple of 8 so every sublane-axis slice/concat inside the
    # kernel is (8,128)-tile aligned; capped at 32 (tiny VMEM footprint, and
    # large batches get >=2 grid steps for megacore sharding).
    bt = min(32, 8 * pl.cdiv(n, 8))
    g = pl.cdiv(n, bt)
    n_pad = g * bt
    xp = jnp.pad(x_nchw.astype(jnp.float32),
                 ((0, n_pad - n), (0, 0), (0, 0), (0, 0)))
    # (N,1,H,W) -> (G, H, W, B, 1): spatial leading, batch on sublanes, channel on lanes.
    xt = jnp.transpose(xp.reshape(g, bt, 1, h, w), (0, 3, 4, 1, 2))

    out = pl.pallas_call(
        _fused_net_kernel,
        out_shape=jax.ShapeDtypeStruct((g, bt, 2), jnp.float32),
        grid=(g,),
        in_specs=[
            pl.BlockSpec((1, h, w, bt, 1), lambda i: (i, 0, 0, 0, 0)),
            pl.BlockSpec((9, 64), lambda i: (0, 0)),
            pl.BlockSpec((1, 64), lambda i: (0, 0)),
            pl.BlockSpec((9 * 64, 32), lambda i: (0, 0)),
            pl.BlockSpec((1, 32), lambda i: (0, 0)),
            pl.BlockSpec((128, 2), lambda i: (0, 0)),
            pl.BlockSpec((1, 2), lambda i: (0, 0)),
        ],
        out_specs=pl.BlockSpec((1, bt, 2), lambda i: (i, 0, 0)),
        compiler_params=pltpu.CompilerParams(dimension_semantics=("parallel",)),
    )(xt, w1k, b1k, w2k, b2k, fwk, fbk)
    return out.reshape(n_pad, 2)[:n]


# ----------------------------- pure-JAX reference --------------------------- #

def reference_forward(x, params):
    y = jax.lax.conv_general_dilated(
        x, params["conv1_w"], (1, 1), "VALID",
        dimension_numbers=("NCHW", "OIHW", "NCHW")) + params["conv1_b"][None, :, None, None]
    y = jnp.maximum(y, 0.0)
    y = jax.lax.reduce_window(y, -jnp.inf, jax.lax.max, (1, 1, 2, 2), (1, 1, 2, 2), "VALID")
    y = jax.lax.conv_general_dilated(
        y, params["conv2_w"], (1, 1), "VALID",
        dimension_numbers=("NCHW", "OIHW", "NCHW")) + params["conv2_b"][None, :, None, None]
    y = jnp.maximum(y, 0.0)
    y = jax.lax.reduce_window(y, -jnp.inf, jax.lax.max, (1, 1, 2, 2), (1, 1, 2, 2), "VALID")
    flat = y.reshape(y.shape[0], -1)
    logits = flat @ params["fc_w"].T + params["fc_b"]
    return jax.nn.log_softmax(logits, axis=1)


# ----------------------------------- main ----------------------------------- #

if __name__ == "__main__":
    key = jax.random.PRNGKey(0)
    ks = jax.random.split(key, 7)

    # Parameters in PyTorch layout (OIHW convs, (out,in) fc).
    params = {
        "conv1_w": 0.2 * jax.random.normal(ks[0], (64, 1, 3, 3), jnp.float32),
        "conv1_b": 0.1 * jax.random.normal(ks[1], (64,), jnp.float32),
        "conv2_w": 0.1 * jax.random.normal(ks[2], (32, 64, 3, 3), jnp.float32),
        "conv2_b": 0.1 * jax.random.normal(ks[3], (32,), jnp.float32),
        "fc_w": 0.1 * jax.random.normal(ks[4], (2, 128), jnp.float32),
        "fc_b": 0.1 * jax.random.normal(ks[5], (2,), jnp.float32),
    }

    # 14x14 single-channel input => flatten size 32*2*2 = 128 = fc in_features.
    x = jax.random.normal(ks[6], (2, 1, 14, 14), jnp.float32)

    out = jax.block_until_ready(net_forward(x, params))
    ref = reference_forward(x, params)

    assert out.shape == (2, 2), out.shape
    assert jnp.allclose(out, ref, rtol=1e-3, atol=1e-3), (
        f"max abs diff {float(jnp.max(jnp.abs(out - ref)))}")
    # log-softmax rows must exponentiate to 1
    assert jnp.allclose(jnp.sum(jnp.exp(out), axis=1), 1.0, atol=1e-4)

    print("KERNEL_OK")
</pallas_src>

<mosaic_0001>
module attributes {stable_mosaic.version = 11 : i64} {
  func.func @_fused_net_kernel(%arg0: i32, %arg1: memref<1x14x14x8x1xf32, #tpu.memory_space<vmem>>, %arg2: memref<9x64xf32, #tpu.memory_space<vmem>>, %arg3: memref<1x64xf32, #tpu.memory_space<vmem>>, %arg4: memref<576x32xf32, #tpu.memory_space<vmem>>, %arg5: memref<1x32xf32, #tpu.memory_space<vmem>>, %arg6: memref<128x2xf32, #tpu.memory_space<vmem>>, %arg7: memref<1x2xf32, #tpu.memory_space<vmem>>, %arg8: memref<1x8x2xf32, #tpu.memory_space<vmem>>) attributes {dimension_semantics = [#tpu.dimension_semantics<parallel>], iteration_bounds = array<i64: 1>, scalar_prefetch = 0 : i64, scratch_operands = 0 : i64, tpu.core_type = #tpu.core_type<tc>, window_params = [{transform_indices = @transform_0, window_bounds = array<i64: 1, 14, 14, 8, 1>}, {pipeline_mode = #tpu.pipeline_mode<synchronous>, transform_indices = @transform_1, window_bounds = array<i64: 9, 64>}, {pipeline_mode = #tpu.pipeline_mode<synchronous>, transform_indices = @transform_2, window_bounds = array<i64: 1, 64>}, {pipeline_mode = #tpu.pipeline_mode<synchronous>, transform_indices = @transform_3, window_bounds = array<i64: 576, 32>}, {pipeline_mode = #tpu.pipeline_mode<synchronous>, transform_indices = @transform_4, window_bounds = array<i64: 1, 32>}, {pipeline_mode = #tpu.pipeline_mode<synchronous>, transform_indices = @transform_5, window_bounds = array<i64: 128, 2>}, {pipeline_mode = #tpu.pipeline_mode<synchronous>, transform_indices = @transform_6, window_bounds = array<i64: 1, 2>}, {transform_indices = @transform_7, window_bounds = array<i64: 1, 8, 2>}]} {
    %c0 = arith.constant 0 : index
    %c0_0 = arith.constant 0 : index
    %0 = vector.load %arg2[%c0, %c0_0] : memref<9x64xf32, #tpu.memory_space<vmem>>, vector<9x64xf32>
    %c0_1 = arith.constant 0 : index
    %c0_2 = arith.constant 0 : index
    %1 = vector.load %arg3[%c0_1, %c0_2] : memref<1x64xf32, #tpu.memory_space<vmem>>, vector<1x64xf32>
    %c0_3 = arith.constant 0 : index
    %c0_4 = arith.constant 0 : index
    %2 = vector.load %arg5[%c0_3, %c0_4] : memref<1x32xf32, #tpu.memory_space<vmem>>, vector<1x32xf32>
    %c0_5 = arith.constant 0 : index
    %c0_6 = arith.constant 0 : index
    %c0_7 = arith.constant 0 : index
    %c0_8 = arith.constant 0 : index
    %c0_9 = arith.constant 0 : index
    %3 = vector.load %arg1[%c0_5, %c0_6, %c0_7, %c0_8, %c0_9] : memref<1x14x14x8x1xf32, #tpu.memory_space<vmem>>, vector<1x14x14x8x1xf32>
    %4 = vector.shape_cast %3 : vector<1x14x14x8x1xf32> to vector<14x14x8x1xf32>
    %5 = vector.shape_cast %4 : vector<14x14x8x1xf32> to vector<14x14x8x1xf32>
    %6 = vector.broadcast %5 : vector<14x14x8x1xf32> to vector<14x14x8x64xf32>
    %7 = vector.extract_strided_slice %6 {offsets = [0, 0, 0, 0], sizes = [12, 12, 8, 64], strides = [1, 1, 1, 1]} : vector<14x14x8x64xf32> to vector<12x12x8x64xf32>
    %8 = vector.extract_strided_slice %0 {offsets = [0, 0], sizes = [1, 64], strides = [1, 1]} : vector<9x64xf32> to vector<1x64xf32>
    %9 = vector.shape_cast %8 : vector<1x64xf32> to vector<1x1x1x64xf32>
    %10 = vector.broadcast %9 : vector<1x1x1x64xf32> to vector<12x12x8x64xf32>
    %11 = arith.mulf %7, %10 : vector<12x12x8x64xf32>
    %12 = vector.extract_strided_slice %6 {offsets = [0, 1, 0, 0], sizes = [12, 12, 8, 64], strides = [1, 1, 1, 1]} : vector<14x14x8x64xf32> to vector<12x12x8x64xf32>
    %13 = vector.extract_strided_slice %0 {offsets = [1, 0], sizes = [1, 64], strides = [1, 1]} : vector<9x64xf32> to vector<1x64xf32>
    %14 = vector.shape_cast %13 : vector<1x64xf32> to vector<1x1x1x64xf32>
    %15 = vector.broadcast %14 : vector<1x1x1x64xf32> to vector<12x12x8x64xf32>
    %16 = arith.mulf %12, %15 : vector<12x12x8x64xf32>
    %17 = arith.addf %11, %16 : vector<12x12x8x64xf32>
    %18 = vector.extract_strided_slice %6 {offsets = [0, 2, 0, 0], sizes = [12, 12, 8, 64], strides = [1, 1, 1, 1]} : vector<14x14x8x64xf32> to vector<12x12x8x64xf32>
    %19 = vector.extract_strided_slice %0 {offsets = [2, 0], sizes = [1, 64], strides = [1, 1]} : vector<9x64xf32> to vector<1x64xf32>
    %20 = vector.shape_cast %19 : vector<1x64xf32> to vector<1x1x1x64xf32>
    %21 = vector.broadcast %20 : vector<1x1x1x64xf32> to vector<12x12x8x64xf32>
    %22 = arith.mulf %18, %21 : vector<12x12x8x64xf32>
    %23 = arith.addf %17, %22 : vector<12x12x8x64xf32>
    %24 = vector.extract_strided_slice %6 {offsets = [1, 0, 0, 0], sizes = [12, 12, 8, 64], strides = [1, 1, 1, 1]} : vector<14x14x8x64xf32> to vector<12x12x8x64xf32>
    %25 = vector.extract_strided_slice %0 {offsets = [3, 0], sizes = [1, 64], strides = [1, 1]} : vector<9x64xf32> to vector<1x64xf32>
    %26 = vector.shape_cast %25 : vector<1x64xf32> to vector<1x1x1x64xf32>
    %27 = vector.broadcast %26 : vector<1x1x1x64xf32> to vector<12x12x8x64xf32>
    %28 = arith.mulf %24, %27 : vector<12x12x8x64xf32>
    %29 = arith.addf %23, %28 : vector<12x12x8x64xf32>
    %30 = vector.extract_strided_slice %6 {offsets = [1, 1, 0, 0], sizes = [12, 12, 8, 64], strides = [1, 1, 1, 1]} : vector<14x14x8x64xf32> to vector<12x12x8x64xf32>
    %31 = vector.extract_strided_slice %0 {offsets = [4, 0], sizes = [1, 64], strides = [1, 1]} : vector<9x64xf32> to vector<1x64xf32>
    %32 = vector.shape_cast %31 : vector<1x64xf32> to vector<1x1x1x64xf32>
    %33 = vector.broadcast %32 : vector<1x1x1x64xf32> to vector<12x12x8x64xf32>
    %34 = arith.mulf %30, %33 : vector<12x12x8x64xf32>
    %35 = arith.addf %29, %34 : vector<12x12x8x64xf32>
    %36 = vector.extract_strided_slice %6 {offsets = [1, 2, 0, 0], sizes = [12, 12, 8, 64], strides = [1, 1, 1, 1]} : vector<14x14x8x64xf32> to vector<12x12x8x64xf32>
    %37 = vector.extract_strided_slice %0 {offsets = [5, 0], sizes = [1, 64], strides = [1, 1]} : vector<9x64xf32> to vector<1x64xf32>
    %38 = vector.shape_cast %37 : vector<1x64xf32> to vector<1x1x1x64xf32>
    %39 = vector.broadcast %38 : vector<1x1x1x64xf32> to vector<12x12x8x64xf32>
    %40 = arith.mulf %36, %39 : vector<12x12x8x64xf32>
    %41 = arith.addf %35, %40 : vector<12x12x8x64xf32>
    %42 = vector.extract_strided_slice %6 {offsets = [2, 0, 0, 0], sizes = [12, 12, 8, 64], strides = [1, 1, 1, 1]} : vector<14x14x8x64xf32> to vector<12x12x8x64xf32>
    %43 = vector.extract_strided_slice %0 {offsets = [6, 0], sizes = [1, 64], strides = [1, 1]} : vector<9x64xf32> to vector<1x64xf32>
    %44 = vector.shape_cast %43 : vector<1x64xf32> to vector<1x1x1x64xf32>
    %45 = vector.broadcast %44 : vector<1x1x1x64xf32> to vector<12x12x8x64xf32>
    %46 = arith.mulf %42, %45 : vector<12x12x8x64xf32>
    %47 = arith.addf %41, %46 : vector<12x12x8x64xf32>
    %48 = vector.extract_strided_slice %6 {offsets = [2, 1, 0, 0], sizes = [12, 12, 8, 64], strides = [1, 1, 1, 1]} : vector<14x14x8x64xf32> to vector<12x12x8x64xf32>
    %49 = vector.extract_strided_slice %0 {offsets = [7, 0], sizes = [1, 64], strides = [1, 1]} : vector<9x64xf32> to vector<1x64xf32>
    %50 = vector.shape_cast %49 : vector<1x64xf32> to vector<1x1x1x64xf32>
    %51 = vector.broadcast %50 : vector<1x1x1x64xf32> to vector<12x12x8x64xf32>
    %52 = arith.mulf %48, %51 : vector<12x12x8x64xf32>
    %53 = arith.addf %47, %52 : vector<12x12x8x64xf32>
    %54 = vector.extract_strided_slice %6 {offsets = [2, 2, 0, 0], sizes = [12, 12, 8, 64], strides = [1, 1, 1, 1]} : vector<14x14x8x64xf32> to vector<12x12x8x64xf32>
    %55 = vector.extract_strided_slice %0 {offsets = [8, 0], sizes = [1, 64], strides = [1, 1]} : vector<9x64xf32> to vector<1x64xf32>
    %56 = vector.shape_cast %55 : vector<1x64xf32> to vector<1x1x1x64xf32>
    %57 = vector.broadcast %56 : vector<1x1x1x64xf32> to vector<12x12x8x64xf32>
    %58 = arith.mulf %54, %57 : vector<12x12x8x64xf32>
    %59 = arith.addf %53, %58 : vector<12x12x8x64xf32>
    %60 = vector.shape_cast %1 : vector<1x64xf32> to vector<1x1x1x64xf32>
    %61 = vector.broadcast %60 : vector<1x1x1x64xf32> to vector<12x12x8x64xf32>
    %62 = arith.addf %59, %61 : vector<12x12x8x64xf32>
    %cst = arith.constant 0.000000e+00 : f32
    %63 = vector.broadcast %cst : f32 to vector<12x12x8x64xf32>
    %64 = arith.maximumf %62, %63 : vector<12x12x8x64xf32>
    %65 = vector.shape_cast %64 : vector<12x12x8x64xf32> to vector<6x2x12x8x64xf32>
    %66 = vector.extract_strided_slice %65 {offsets = [0, 0, 0, 0, 0], sizes = [6, 1, 12, 8, 64], strides = [1, 1, 1, 1, 1]} : vector<6x2x12x8x64xf32> to vector<6x1x12x8x64xf32>
    %67 = vector.shape_cast %66 : vector<6x1x12x8x64xf32> to vector<6x12x8x64xf32>
    %68 = vector.extract_strided_slice %65 {offsets = [0, 1, 0, 0, 0], sizes = [6, 1, 12, 8, 64], strides = [1, 1, 1, 1, 1]} : vector<6x2x12x8x64xf32> to vector<6x1x12x8x64xf32>
    %69 = vector.shape_cast %68 : vector<6x1x12x8x64xf32> to vector<6x12x8x64xf32>
    %70 = arith.maximumf %67, %69 : vector<6x12x8x64xf32>
    %71 = vector.shape_cast %70 : vector<6x12x8x64xf32> to vector<6x6x2x8x64xf32>
    %72 = vector.extract_strided_slice %71 {offsets = [0, 0, 0, 0, 0], sizes = [6, 6, 1, 8, 64], strides = [1, 1, 1, 1, 1]} : vector<6x6x2x8x64xf32> to vector<6x6x1x8x64xf32>
    %73 = vector.shape_cast %72 : vector<6x6x1x8x64xf32> to vector<6x6x8x64xf32>
    %74 = vector.extract_strided_slice %71 {offsets = [0, 0, 1, 0, 0], sizes = [6, 6, 1, 8, 64], strides = [1, 1, 1, 1, 1]} : vector<6x6x2x8x64xf32> to vector<6x6x1x8x64xf32>
    %75 = vector.shape_cast %74 : vector<6x6x1x8x64xf32> to vector<6x6x8x64xf32>
    %76 = arith.maximumf %73, %75 : vector<6x6x8x64xf32>
    %77 = vector.extract_strided_slice %76 {offsets = [0, 0, 0, 0], sizes = [1, 1, 8, 64], strides = [1, 1, 1, 1]} : vector<6x6x8x64xf32> to vector<1x1x8x64xf32>
    %78 = vector.shape_cast %77 : vector<1x1x8x64xf32> to vector<8x64xf32>
    %79 = vector.extract_strided_slice %76 {offsets = [0, 1, 0, 0], sizes = [1, 1, 8, 64], strides = [1, 1, 1, 1]} : vector<6x6x8x64xf32> to vector<1x1x8x64xf32>
    %80 = vector.shape_cast %79 : vector<1x1x8x64xf32> to vector<8x64xf32>
    %81 = vector.extract_strided_slice %76 {offsets = [1, 0, 0, 0], sizes = [1, 1, 8, 64], strides = [1, 1, 1, 1]} : vector<6x6x8x64xf32> to vector<1x1x8x64xf32>
    %82 = vector.shape_cast %81 : vector<1x1x8x64xf32> to vector<8x64xf32>
    %83 = vector.extract_strided_slice %76 {offsets = [1, 1, 0, 0], sizes = [1, 1, 8, 64], strides = [1, 1, 1, 1]} : vector<6x6x8x64xf32> to vector<1x1x8x64xf32>
    %84 = vector.shape_cast %83 : vector<1x1x8x64xf32> to vector<8x64xf32>
    %85 = vector.extract_strided_slice %76 {offsets = [0, 2, 0, 0], sizes = [1, 1, 8, 64], strides = [1, 1, 1, 1]} : vector<6x6x8x64xf32> to vector<1x1x8x64xf32>
    %86 = vector.shape_cast %85 : vector<1x1x8x64xf32> to vector<8x64xf32>
    %87 = vector.extract_strided_slice %76 {offsets = [0, 3, 0, 0], sizes = [1, 1, 8, 64], strides = [1, 1, 1, 1]} : vector<6x6x8x64xf32> to vector<1x1x8x64xf32>
    %88 = vector.shape_cast %87 : vector<1x1x8x64xf32> to vector<8x64xf32>
    %89 = vector.extract_strided_slice %76 {offsets = [1, 2, 0, 0], sizes = [1, 1, 8, 64], strides = [1, 1, 1, 1]} : vector<6x6x8x64xf32> to vector<1x1x8x64xf32>
    %90 = vector.shape_cast %89 : vector<1x1x8x64xf32> to vector<8x64xf32>
    %91 = vector.extract_strided_slice %76 {offsets = [1, 3, 0, 0], sizes = [1, 1, 8, 64], strides = [1, 1, 1, 1]} : vector<6x6x8x64xf32> to vector<1x1x8x64xf32>
    %92 = vector.shape_cast %91 : vector<1x1x8x64xf32> to vector<8x64xf32>
    %93 = vector.extract_strided_slice %76 {offsets = [2, 0, 0, 0], sizes = [1, 1, 8, 64], strides = [1, 1, 1, 1]} : vector<6x6x8x64xf32> to vector<1x1x8x64xf32>
    %94 = vector.shape_cast %93 : vector<1x1x8x64xf32> to vector<8x64xf32>
    %95 = vector.extract_strided_slice %76 {offsets = [2, 1, 0, 0], sizes = [1, 1, 8, 64], strides = [1, 1, 1, 1]} : vector<6x6x8x64xf32> to vector<1x1x8x64xf32>
    %96 = vector.shape_cast %95 : vector<1x1x8x64xf32> to vector<8x64xf32>
    %97 = vector.extract_strided_slice %76 {offsets = [3, 0, 0, 0], sizes = [1, 1, 8, 64], strides = [1, 1, 1, 1]} : vector<6x6x8x64xf32> to vector<1x1x8x64xf32>
    %98 = vector.shape_cast %97 : vector<1x1x8x64xf32> to vector<8x64xf32>
    %99 = vector.extract_strided_slice %76 {offsets = [3, 1, 0, 0], sizes = [1, 1, 8, 64], strides = [1, 1, 1, 1]} : vector<6x6x8x64xf32> to vector<1x1x8x64xf32>
    %100 = vector.shape_cast %99 : vector<1x1x8x64xf32> to vector<8x64xf32>
    %101 = vector.extract_strided_slice %76 {offsets = [2, 2, 0, 0], sizes = [1, 1, 8, 64], strides = [1, 1, 1, 1]} : vector<6x6x8x64xf32> to vector<1x1x8x64xf32>
    %102 = vector.shape_cast %101 : vector<1x1x8x64xf32> to vector<8x64xf32>
    %103 = vector.extract_strided_slice %76 {offsets = [2, 3, 0, 0], sizes = [1, 1, 8, 64], strides = [1, 1, 1, 1]} : vector<6x6x8x64xf32> to vector<1x1x8x64xf32>
    %104 = vector.shape_cast %103 : vector<1x1x8x64xf32> to vector<8x64xf32>
    %105 = vector.extract_strided_slice %76 {offsets = [3, 2, 0, 0], sizes = [1, 1, 8, 64], strides = [1, 1, 1, 1]} : vector<6x6x8x64xf32> to vector<1x1x8x64xf32>
    %106 = vector.shape_cast %105 : vector<1x1x8x64xf32> to vector<8x64xf32>
    %107 = vector.extract_strided_slice %76 {offsets = [3, 3, 0, 0], sizes = [1, 1, 8, 64], strides = [1, 1, 1, 1]} : vector<6x6x8x64xf32> to vector<1x1x8x64xf32>
    %108 = vector.shape_cast %107 : vector<1x1x8x64xf32> to vector<8x64xf32>
    %109 = tpu.concatenate %78, %80, %82, %84, %86, %88, %90, %92, %94, %96, %98, %100, %102, %104, %106, %108 in 0 : vector<8x64xf32>, vector<8x64xf32>, vector<8x64xf32>, vector<8x64xf32>, vector<8x64xf32>, vector<8x64xf32>, vector<8x64xf32>, vector<8x64xf32>, vector<8x64xf32>, vector<8x64xf32>, vector<8x64xf32>, vector<8x64xf32>, vector<8x64xf32>, vector<8x64xf32>, vector<8x64xf32>, vector<8x64xf32> -> vector<128x64xf32>
    %110 = vector.extract_strided_slice %76 {offsets = [0, 1, 0, 0], sizes = [1, 1, 8, 64], strides = [1, 1, 1, 1]} : vector<6x6x8x64xf32> to vector<1x1x8x64xf32>
    %111 = vector.shape_cast %110 : vector<1x1x8x64xf32> to vector<8x64xf32>
    %112 = vector.extract_strided_slice %76 {offsets = [0, 2, 0, 0], sizes = [1, 1, 8, 64], strides = [1, 1, 1, 1]} : vector<6x6x8x64xf32> to vector<1x1x8x64xf32>
    %113 = vector.shape_cast %112 : vector<1x1x8x64xf32> to vector<8x64xf32>
    %114 = vector.extract_strided_slice %76 {offsets = [1, 1, 0, 0], sizes = [1, 1, 8, 64], strides = [1, 1, 1, 1]} : vector<6x6x8x64xf32> to vector<1x1x8x64xf32>
    %115 = vector.shape_cast %114 : vector<1x1x8x64xf32> to vector<8x64xf32>
    %116 = vector.extract_strided_slice %76 {offsets = [1, 2, 0, 0], sizes = [1, 1, 8, 64], strides = [1, 1, 1, 1]} : vector<6x6x8x64xf32> to vector<1x1x8x64xf32>
    %117 = vector.shape_cast %116 : vector<1x1x8x64xf32> to vector<8x64xf32>
    %118 = vector.extract_strided_slice %76 {offsets = [0, 3, 0, 0], sizes = [1, 1, 8, 64], strides = [1, 1, 1, 1]} : vector<6x6x8x64xf32> to vector<1x1x8x64xf32>
    %119 = vector.shape_cast %118 : vector<1x1x8x64xf32> to vector<8x64xf32>
    %120 = vector.extract_strided_slice %76 {offsets = [0, 4, 0, 0], sizes = [1, 1, 8, 64], strides = [1, 1, 1, 1]} : vector<6x6x8x64xf32> to vector<1x1x8x64xf32>
    %121 = vector.shape_cast %120 : vector<1x1x8x64xf32> to vector<8x64xf32>
    %122 = vector.extract_strided_slice %76 {offsets = [1, 3, 0, 0], sizes = [1, 1, 8, 64], strides = [1, 1, 1, 1]} : vector<6x6x8x64xf32> to vector<1x1x8x64xf32>
    %123 = vector.shape_cast %122 : vector<1x1x8x64xf32> to vector<8x64xf32>
    %124 = vector.extract_strided_slice %76 {offsets = [1, 4, 0, 0], sizes = [1, 1, 8, 64], strides = [1, 1, 1, 1]} : vector<6x6x8x64xf32> to vector<1x1x8x64xf32>
    %125 = vector.shape_cast %124 : vector<1x1x8x64xf32> to vector<8x64xf32>
    %126 = vector.extract_strided_slice %76 {offsets = [2, 1, 0, 0], sizes = [1, 1, 8, 64], strides = [1, 1, 1, 1]} : vector<6x6x8x64xf32> to vector<1x1x8x64xf32>
    %127 = vector.shape_cast %126 : vector<1x1x8x64xf32> to vector<8x64xf32>
    %128 = vector.extract_strided_slice %76 {offsets = [2, 2, 0, 0], sizes = [1, 1, 8, 64], strides = [1, 1, 1, 1]} : vector<6x6x8x64xf32> to vector<1x1x8x64xf32>
    %129 = vector.shape_cast %128 : vector<1x1x8x64xf32> to vector<8x64xf32>
    %130 = vector.extract_strided_slice %76 {offsets = [3, 1, 0, 0], sizes = [1, 1, 8, 64], strides = [1, 1, 1, 1]} : vector<6x6x8x64xf32> to vector<1x1x8x64xf32>
    %131 = vector.shape_cast %130 : vector<1x1x8x64xf32> to vector<8x64xf32>
    %132 = vector.extract_strided_slice %76 {offsets = [3, 2, 0, 0], sizes = [1, 1, 8, 64], strides = [1, 1, 1, 1]} : vector<6x6x8x64xf32> to vector<1x1x8x64xf32>
    %133 = vector.shape_cast %132 : vector<1x1x8x64xf32> to vector<8x64xf32>
    %134 = vector.extract_strided_slice %76 {offsets = [2, 3, 0, 0], sizes = [1, 1, 8, 64], strides = [1, 1, 1, 1]} : vector<6x6x8x64xf32> to vector<1x1x8x64xf32>
    %135 = vector.shape_cast %134 : vector<1x1x8x64xf32> to vector<8x64xf32>
    %136 = vector.extract_strided_slice %76 {offsets = [2, 4, 0, 0], sizes = [1, 1, 8, 64], strides = [1, 1, 1, 1]} : vector<6x6x8x64xf32> to vector<1x1x8x64xf32>
    %137 = vector.shape_cast %136 : vector<1x1x8x64xf32> to vector<8x64xf32>
    %138 = vector.extract_strided_slice %76 {offsets = [3, 3, 0, 0], sizes = [1, 1, 8, 64], strides = [1, 1, 1, 1]} : vector<6x6x8x64xf32> to vector<1x1x8x64xf32>
    %139 = vector.shape_cast %138 : vector<1x1x8x64xf32> to vector<8x64xf32>
    %140 = vector.extract_strided_slice %76 {offsets = [3, 4, 0, 0], sizes = [1, 1, 8, 64], strides = [1, 1, 1, 1]} : vector<6x6x8x64xf32> to vector<1x1x8x64xf32>
    %141 = vector.shape_cast %140 : vector<1x1x8x64xf32> to vector<8x64xf32>
    %142 = tpu.concatenate %111, %113, %115, %117, %119, %121, %123, %125, %127, %129, %131, %133, %135, %137, %139, %141 in 0 : vector<8x64xf32>, vector<8x64xf32>, vector<8x64xf32>, vector<8x64xf32>, vector<8x64xf32>, vector<8x64xf32>, vector<8x64xf32>, vector<8x64xf32>, vector<8x64xf32>, vector<8x64xf32>, vector<8x64xf32>, vector<8x64xf32>, vector<8x64xf32>, vector<8x64xf32>, vector<8x64xf32>, vector<8x64xf32> -> vector<128x64xf32>
    %143 = vector.extract_strided_slice %76 {offsets = [0, 2, 0, 0], sizes = [1, 1, 8, 64], strides = [1, 1, 1, 1]} : vector<6x6x8x64xf32> to vector<1x1x8x64xf32>
    %144 = vector.shape_cast %143 : vector<1x1x8x64xf32> to vector<8x64xf32>
    %145 = vector.extract_strided_slice %76 {offsets = [0, 3, 0, 0], sizes = [1, 1, 8, 64], strides = [1, 1, 1, 1]} : vector<6x6x8x64xf32> to vector<1x1x8x64xf32>
    %146 = vector.shape_cast %145 : vector<1x1x8x64xf32> to vector<8x64xf32>
    %147 = vector.extract_strided_slice %76 {offsets = [1, 2, 0, 0], sizes = [1, 1, 8, 64], strides = [1, 1, 1, 1]} : vector<6x6x8x64xf32> to vector<1x1x8x64xf32>
    %148 = vector.shape_cast %147 : vector<1x1x8x64xf32> to vector<8x64xf32>
    %149 = vector.extract_strided_slice %76 {offsets = [1, 3, 0, 0], sizes = [1, 1, 8, 64], strides = [1, 1, 1, 1]} : vector<6x6x8x64xf32> to vector<1x1x8x64xf32>
    %150 = vector.shape_cast %149 : vector<1x1x8x64xf32> to vector<8x64xf32>
    %151 = vector.extract_strided_slice %76 {offsets = [0, 4, 0, 0], sizes = [1, 1, 8, 64], strides = [1, 1, 1, 1]} : vector<6x6x8x64xf32> to vector<1x1x8x64xf32>
    %152 = vector.shape_cast %151 : vector<1x1x8x64xf32> to vector<8x64xf32>
    %153 = vector.extract_strided_slice %76 {offsets = [0, 5, 0, 0], sizes = [1, 1, 8, 64], strides = [1, 1, 1, 1]} : vector<6x6x8x64xf32> to vector<1x1x8x64xf32>
    %154 = vector.shape_cast %153 : vector<1x1x8x64xf32> to vector<8x64xf32>
    %155 = vector.extract_strided_slice %76 {offsets = [1, 4, 0, 0], sizes = [1, 1, 8, 64], strides = [1, 1, 1, 1]} : vector<6x6x8x64xf32> to vector<1x1x8x64xf32>
    %156 = vector.shape_cast %155 : vector<1x1x8x64xf32> to vector<8x64xf32>
    %157 = vector.extract_strided_slice %76 {offsets = [1, 5, 0, 0], sizes = [1, 1, 8, 64], strides = [1, 1, 1, 1]} : vector<6x6x8x64xf32> to vector<1x1x8x64xf32>
    %158 = vector.shape_cast %157 : vector<1x1x8x64xf32> to vector<8x64xf32>
    %159 = vector.extract_strided_slice %76 {offsets = [2, 2, 0, 0], sizes = [1, 1, 8, 64], strides = [1, 1, 1, 1]} : vector<6x6x8x64xf32> to vector<1x1x8x64xf32>
    %160 = vector.shape_cast %159 : vector<1x1x8x64xf32> to vector<8x64xf32>
    %161 = vector.extract_strided_slice %76 {offsets = [2, 3, 0, 0], sizes = [1, 1, 8, 64], strides = [1, 1, 1, 1]} : vector<6x6x8x64xf32> to vector<1x1x8x64xf32>
    %162 = vector.shape_cast %161 : vector<1x1x8x64xf32> to vector<8x64xf32>
    %163 = vector.extract_strided_slice %76 {offsets = [3, 2, 0, 0], sizes = [1, 1, 8, 64], strides = [1, 1, 1, 1]} : vector<6x6x8x64xf32> to vector<1x1x8x64xf32>
    %164 = vector.shape_cast %163 : vector<1x1x8x64xf32> to vector<8x64xf32>
    %165 = vector.extract_strided_slice %76 {offsets = [3, 3, 0, 0], sizes = [1, 1, 8, 64], strides = [1, 1, 1, 1]} : vector<6x6x8x64xf32> to vector<1x1x8x64xf32>
    %166 = vector.shape_cast %165 : vector<1x1x8x64xf32> to vector<8x64xf32>
    %167 = vector.extract_strided_slice %76 {offsets = [2, 4, 0, 0], sizes = [1, 1, 8, 64], strides = [1, 1, 1, 1]} : vector<6x6x8x64xf32> to vector<1x1x8x64xf32>
    %168 = vector.shape_cast %167 : vector<1x1x8x64xf32> to vector<8x64xf32>
    %169 = vector.extract_strided_slice %76 {offsets = [2, 5, 0, 0], sizes = [1, 1, 8, 64], strides = [1, 1, 1, 1]} : vector<6x6x8x64xf32> to vector<1x1x8x64xf32>
    %170 = vector.shape_cast %169 : vector<1x1x8x64xf32> to vector<8x64xf32>
    %171 = vector.extract_strided_slice %76 {offsets = [3, 4, 0, 0], sizes = [1, 1, 8, 64], strides = [1, 1, 1, 1]} : vector<6x6x8x64xf32> to vector<1x1x8x64xf32>
    %172 = vector.shape_cast %171 : vector<1x1x8x64xf32> to vector<8x64xf32>
    %173 = vector.extract_strided_slice %76 {offsets = [3, 5, 0, 0], sizes = [1, 1, 8, 64], strides = [1, 1, 1, 1]} : vector<6x6x8x64xf32> to vector<1x1x8x64xf32>
    %174 = vector.shape_cast %173 : vector<1x1x8x64xf32> to vector<8x64xf32>
    %175 = tpu.concatenate %144, %146, %148, %150, %152, %154, %156, %158, %160, %162, %164, %166, %168, %170, %172, %174 in 0 : vector<8x64xf32>, vector<8x64xf32>, vector<8x64xf32>, vector<8x64xf32>, vector<8x64xf32>, vector<8x64xf32>, vector<8x64xf32>, vector<8x64xf32>, vector<8x64xf32>, vector<8x64xf32>, vector<8x64xf32>, vector<8x64xf32>, vector<8x64xf32>, vector<8x64xf32>, vector<8x64xf32>, vector<8x64xf32> -> vector<128x64xf32>
    %176 = vector.extract_strided_slice %76 {offsets = [1, 0, 0, 0], sizes = [1, 1, 8, 64], strides = [1, 1, 1, 1]} : vector<6x6x8x64xf32> to vector<1x1x8x64xf32>
    %177 = vector.shape_cast %176 : vector<1x1x8x64xf32> to vector<8x64xf32>
    %178 = vector.extract_strided_slice %76 {offsets = [1, 1, 0, 0], sizes = [1, 1, 8, 64], strides = [1, 1, 1, 1]} : vector<6x6x8x64xf32> to vector<1x1x8x64xf32>
    %179 = vector.shape_cast %178 : vector<1x1x8x64xf32> to vector<8x64xf32>
    %180 = vector.extract_strided_slice %76 {offsets = [2, 0, 0, 0], sizes = [1, 1, 8, 64], strides = [1, 1, 1, 1]} : vector<6x6x8x64xf32> to vector<1x1x8x64xf32>
    %181 = vector.shape_cast %180 : vector<1x1x8x64xf32> to vector<8x64xf32>
    %182 = vector.extract_strided_slice %76 {offsets = [2, 1, 0, 0], sizes = [1, 1, 8, 64], strides = [1, 1, 1, 1]} : vector<6x6x8x64xf32> to vector<1x1x8x64xf32>
    %183 = vector.shape_cast %182 : vector<1x1x8x64xf32> to vector<8x64xf32>
    %184 = vector.extract_strided_slice %76 {offsets = [1, 2, 0, 0], sizes = [1, 1, 8, 64], strides = [1, 1, 1, 1]} : vector<6x6x8x64xf32> to vector<1x1x8x64xf32>
    %185 = vector.shape_cast %184 : vector<1x1x8x64xf32> to vector<8x64xf32>
    %186 = vector.extract_strided_slice %76 {offsets = [1, 3, 0, 0], sizes = [1, 1, 8, 64], strides = [1, 1, 1, 1]} : vector<6x6x8x64xf32> to vector<1x1x8x64xf32>
    %187 = vector.shape_cast %186 : vector<1x1x8x64xf32> to vector<8x64xf32>
    %188 = vector.extract_strided_slice %76 {offsets = [2, 2, 0, 0], sizes = [1, 1, 8, 64], strides = [1, 1, 1, 1]} : vector<6x6x8x64xf32> to vector<1x1x8x64xf32>
    %189 = vector.shape_cast %188 : vector<1x1x8x64xf32> to vector<8x64xf32>
    %190 = vector.extract_strided_slice %76 {offsets = [2, 3, 0, 0], sizes = [1, 1, 8, 64], strides = [1, 1, 1, 1]} : vector<6x6x8x64xf32> to vector<1x1x8x64xf32>
    %191 = vector.shape_cast %190 : vector<1x1x8x64xf32> to vector<8x64xf32>
    %192 = vector.extract_strided_slice %76 {offsets = [3, 0, 0, 0], sizes = [1, 1, 8, 64], strides = [1, 1, 1, 1]} : vector<6x6x8x64xf32> to vector<1x1x8x64xf32>
    %193 = vector.shape_cast %192 : vector<1x1x8x64xf32> to vector<8x64xf32>
    %194 = vector.extract_strided_slice %76 {offsets = [3, 1, 0, 0], sizes = [1, 1, 8, 64], strides = [1, 1, 1, 1]} : vector<6x6x8x64xf32> to vector<1x1x8x64xf32>
    %195 = vector.shape_cast %194 : vector<1x1x8x64xf32> to vector<8x64xf32>
    %196 = vector.extract_strided_slice %76 {offsets = [4, 0, 0, 0], sizes = [1, 1, 8, 64], strides = [1, 1, 1, 1]} : vector<6x6x8x64xf32> to vector<1x1x8x64xf32>
    %197 = vector.shape_cast %196 : vector<1x1x8x64xf32> to vector<8x64xf32>
    %198 = vector.extract_strided_slice %76 {offsets = [4, 1, 0, 0], sizes = [1, 1, 8, 64], strides = [1, 1, 1, 1]} : vector<6x6x8x64xf32> to vector<1x1x8x64xf32>
    %199 = vector.shape_cast %198 : vector<1x1x8x64xf32> to vector<8x64xf32>
    %200 = vector.extract_strided_slice %76 {offsets = [3, 2, 0, 0], sizes = [1, 1, 8, 64], strides = [1, 1, 1, 1]} : vector<6x6x8x64xf32> to vector<1x1x8x64xf32>
    %201 = vector.shape_cast %200 : vector<1x1x8x64xf32> to vector<8x64xf32>
    %202 = vector.extract_strided_slice %76 {offsets = [3, 3, 0, 0], sizes = [1, 1, 8, 64], strides = [1, 1, 1, 1]} : vector<6x6x8x64xf32> to vector<1x1x8x64xf32>
    %203 = vector.shape_cast %202 : vector<1x1x8x64xf32> to vector<8x64xf32>
    %204 = vector.extract_strided_slice %76 {offsets = [4, 2, 0, 0], sizes = [1, 1, 8, 64], strides = [1, 1, 1, 1]} : vector<6x6x8x64xf32> to vector<1x1x8x64xf32>
    %205 = vector.shape_cast %204 : vector<1x1x8x64xf32> to vector<8x64xf32>
    %206 = vector.extract_strided_slice %76 {offsets = [4, 3, 0, 0], sizes = [1, 1, 8, 64], strides = [1, 1, 1, 1]} : vector<6x6x8x64xf32> to vector<1x1x8x64xf32>
    %207 = vector.shape_cast %206 : vector<1x1x8x64xf32> to vector<8x64xf32>
    %208 = tpu.concatenate %177, %179, %181, %183, %185, %187, %189, %191, %193, %195, %197, %199, %201, %203, %205, %207 in 0 : vector<8x64xf32>, vector<8x64xf32>, vector<8x64xf32>, vector<8x64xf32>, vector<8x64xf32>, vector<8x64xf32>, vector<8x64xf32>, vector<8x64xf32>, vector<8x64xf32>, vector<8x64xf32>, vector<8x64xf32>, vector<8x64xf32>, vector<8x64xf32>, vector<8x64xf32>, vector<8x64xf32>, vector<8x64xf32> -> vector<128x64xf32>
    %209 = vector.extract_strided_slice %76 {offsets = [1, 1, 0, 0], sizes = [1, 1, 8, 64], strides = [1, 1, 1, 1]} : vector<6x6x8x64xf32> to vector<1x1x8x64xf32>
    %210 = vector.shape_cast %209 : vector<1x1x8x64xf32> to vector<8x64xf32>
    %211 = vector.extract_strided_slice %76 {offsets = [1, 2, 0, 0], sizes = [1, 1, 8, 64], strides = [1, 1, 1, 1]} : vector<6x6x8x64xf32> to vector<1x1x8x64xf32>
    %212 = vector.shape_cast %211 : vector<1x1x8x64xf32> to vector<8x64xf32>
    %213 = vector.extract_strided_slice %76 {offsets = [2, 1, 0, 0], sizes = [1, 1, 8, 64], strides = [1, 1, 1, 1]} : vector<6x6x8x64xf32> to vector<1x1x8x64xf32>
    %214 = vector.shape_cast %213 : vector<1x1x8x64xf32> to vector<8x64xf32>
    %215 = vector.extract_strided_slice %76 {offsets = [2, 2, 0, 0], sizes = [1, 1, 8, 64], strides = [1, 1, 1, 1]} : vector<6x6x8x64xf32> to vector<1x1x8x64xf32>
    %216 = vector.shape_cast %215 : vector<1x1x8x64xf32> to vector<8x64xf32>
    %217 = vector.extract_strided_slice %76 {offsets = [1, 3, 0, 0], sizes = [1, 1, 8, 64], strides = [1, 1, 1, 1]} : vector<6x6x8x64xf32> to vector<1x1x8x64xf32>
    %218 = vector.shape_cast %217 : vector<1x1x8x64xf32> to vector<8x64xf32>
    %219 = vector.extract_strided_slice %76 {offsets = [1, 4, 0, 0], sizes = [1, 1, 8, 64], strides = [1, 1, 1, 1]} : vector<6x6x8x64xf32> to vector<1x1x8x64xf32>
    %220 = vector.shape_cast %219 : vector<1x1x8x64xf32> to vector<8x64xf32>
    %221 = vector.extract_strided_slice %76 {offsets = [2, 3, 0, 0], sizes = [1, 1, 8, 64], strides = [1, 1, 1, 1]} : vector<6x6x8x64xf32> to vector<1x1x8x64xf32>
    %222 = vector.shape_cast %221 : vector<1x1x8x64xf32> to vector<8x64xf32>
    %223 = vector.extract_strided_slice %76 {offsets = [2, 4, 0, 0], sizes = [1, 1, 8, 64], strides = [1, 1, 1, 1]} : vector<6x6x8x64xf32> to vector<1x1x8x64xf32>
    %224 = vector.shape_cast %223 : vector<1x1x8x64xf32> to vector<8x64xf32>
    %225 = vector.extract_strided_slice %76 {offsets = [3, 1, 0, 0], sizes = [1, 1, 8, 64], strides = [1, 1, 1, 1]} : vector<6x6x8x64xf32> to vector<1x1x8x64xf32>
    %226 = vector.shape_cast %225 : vector<1x1x8x64xf32> to vector<8x64xf32>
    %227 = vector.extract_strided_slice %76 {offsets = [3, 2, 0, 0], sizes = [1, 1, 8, 64], strides = [1, 1, 1, 1]} : vector<6x6x8x64xf32> to vector<1x1x8x64xf32>
    %228 = vector.shape_cast %227 : vector<1x1x8x64xf32> to vector<8x64xf32>
    %229 = vector.extract_strided_slice %76 {offsets = [4, 1, 0, 0], sizes = [1, 1, 8, 64], strides = [1, 1, 1, 1]} : vector<6x6x8x64xf32> to vector<1x1x8x64xf32>
    %230 = vector.shape_cast %229 : vector<1x1x8x64xf32> to vector<8x64xf32>
    %231 = vector.extract_strided_slice %76 {offsets = [4, 2, 0, 0], sizes = [1, 1, 8, 64], strides = [1, 1, 1, 1]} : vector<6x6x8x64xf32> to vector<1x1x8x64xf32>
    %232 = vector.shape_cast %231 : vector<1x1x8x64xf32> to vector<8x64xf32>
    %233 = vector.extract_strided_slice %76 {offsets = [3, 3, 0, 0], sizes = [1, 1, 8, 64], strides = [1, 1, 1, 1]} : vector<6x6x8x64xf32> to vector<1x1x8x64xf32>
    %234 = vector.shape_cast %233 : vector<1x1x8x64xf32> to vector<8x64xf32>
    %235 = vector.extract_strided_slice %76 {offsets = [3, 4, 0, 0], sizes = [1, 1, 8, 64], strides = [1, 1, 1, 1]} : vector<6x6x8x64xf32> to vector<1x1x8x64xf32>
    %236 = vector.shape_cast %235 : vector<1x1x8x64xf32> to vector<8x64xf32>
    %237 = vector.extract_strided_slice %76 {offsets = [4, 3, 0, 0], sizes = [1, 1, 8, 64], strides = [1, 1, 1, 1]} : vector<6x6x8x64xf32> to vector<1x1x8x64xf32>
    %238 = vector.shape_cast %237 : vector<1x1x8x64xf32> to vector<8x64xf32>
    %239 = vector.extract_strided_slice %76 {offsets = [4, 4, 0, 0], sizes = [1, 1, 8, 64], strides = [1, 1, 1, 1]} : vector<6x6x8x64xf32> to vector<1x1x8x64xf32>
    %240 = vector.shape_cast %239 : vector<1x1x8x64xf32> to vector<8x64xf32>
    %241 = tpu.concatenate %210, %212, %214, %216, %218, %220, %222, %224, %226, %228, %230, %232, %234, %236, %238, %240 in 0 : vector<8x64xf32>, vector<8x64xf32>, vector<8x64xf32>, vector<8x64xf32>, vector<8x64xf32>, vector<8x64xf32>, vector<8x64xf32>, vector<8x64xf32>, vector<8x64xf32>, vector<8x64xf32>, vector<8x64xf32>, vector<8x64xf32>, vector<8x64xf32>, vector<8x64xf32>, vector<8x64xf32>, vector<8x64xf32> -> vector<128x64xf32>
    %242 = vector.extract_strided_slice %76 {offsets = [1, 2, 0, 0], sizes = [1, 1, 8, 64], strides = [1, 1, 1, 1]} : vector<6x6x8x64xf32> to vector<1x1x8x64xf32>
    %243 = vector.shape_cast %242 : vector<1x1x8x64xf32> to vector<8x64xf32>
    %244 = vector.extract_strided_slice %76 {offsets = [1, 3, 0, 0], sizes = [1, 1, 8, 64], strides = [1, 1, 1, 1]} : vector<6x6x8x64xf32> to vector<1x1x8x64xf32>
    %245 = vector.shape_cast %244 : vector<1x1x8x64xf32> to vector<8x64xf32>
    %246 = vector.extract_strided_slice %76 {offsets = [2, 2, 0, 0], sizes = [1, 1, 8, 64], strides = [1, 1, 1, 1]} : vector<6x6x8x64xf32> to vector<1x1x8x64xf32>
    %247 = vector.shape_cast %246 : vector<1x1x8x64xf32> to vector<8x64xf32>
    %248 = vector.extract_strided_slice %76 {offsets = [2, 3, 0, 0], sizes = [1, 1, 8, 64], strides = [1, 1, 1, 1]} : vector<6x6x8x64xf32> to vector<1x1x8x64xf32>
    %249 = vector.shape_cast %248 : vector<1x1x8x64xf32> to vector<8x64xf32>
    %250 = vector.extract_strided_slice %76 {offsets = [1, 4, 0, 0], sizes = [1, 1, 8, 64], strides = [1, 1, 1, 1]} : vector<6x6x8x64xf32> to vector<1x1x8x64xf32>
    %251 = vector.shape_cast %250 : vector<1x1x8x64xf32> to vector<8x64xf32>
    %252 = vector.extract_strided_slice %76 {offsets = [1, 5, 0, 0], sizes = [1, 1, 8, 64], strides = [1, 1, 1, 1]} : vector<6x6x8x64xf32> to vector<1x1x8x64xf32>
    %253 = vector.shape_cast %252 : vector<1x1x8x64xf32> to vector<8x64xf32>
    %254 = vector.extract_strided_slice %76 {offsets = [2, 4, 0, 0], sizes = [1, 1, 8, 64], strides = [1, 1, 1, 1]} : vector<6x6x8x64xf32> to vector<1x1x8x64xf32>
    %255 = vector.shape_cast %254 : vector<1x1x8x64xf32> to vector<8x64xf32>
    %256 = vector.extract_strided_slice %76 {offsets = [2, 5, 0, 0], sizes = [1, 1, 8, 64], strides = [1, 1, 1, 1]} : vector<6x6x8x64xf32> to vector<1x1x8x64xf32>
    %257 = vector.shape_cast %256 : vector<1x1x8x64xf32> to vector<8x64xf32>
    %258 = vector.extract_strided_slice %76 {offsets = [3, 2, 0, 0], sizes = [1, 1, 8, 64], strides = [1, 1, 1, 1]} : vector<6x6x8x64xf32> to vector<1x1x8x64xf32>
    %259 = vector.shape_cast %258 : vector<1x1x8x64xf32> to vector<8x64xf32>
    %260 = vector.extract_strided_slice %76 {offsets = [3, 3, 0, 0], sizes = [1, 1, 8, 64], strides = [1, 1, 1, 1]} : vector<6x6x8x64xf32> to vector<1x1x8x64xf32>
    %261 = vector.shape_cast %260 : vector<1x1x8x64xf32> to vector<8x64xf32>
    %262 = vector.extract_strided_slice %76 {offsets = [4, 2, 0, 0], sizes = [1, 1, 8, 64], strides = [1, 1, 1, 1]} : vector<6x6x8x64xf32> to vector<1x1x8x64xf32>
    %263 = vector.shape_cast %262 : vector<1x1x8x64xf32> to vector<8x64xf32>
    %264 = vector.extract_strided_slice %76 {offsets = [4, 3, 0, 0], sizes = [1, 1, 8, 64], strides = [1, 1, 1, 1]} : vector<6x6x8x64xf32> to vector<1x1x8x64xf32>
    %265 = vector.shape_cast %264 : vector<1x1x8x64xf32> to vector<8x64xf32>
    %266 = vector.extract_strided_slice %76 {offsets = [3, 4, 0, 0], sizes = [1, 1, 8, 64], strides = [1, 1, 1, 1]} : vector<6x6x8x64xf32> to vector<1x1x8x64xf32>
    %267 = vector.shape_cast %266 : vector<1x1x8x64xf32> to vector<8x64xf32>
    %268 = vector.extract_strided_slice %76 {offsets = [3, 5, 0, 0], sizes = [1, 1, 8, 64], strides = [1, 1, 1, 1]} : vector<6x6x8x64xf32> to vector<1x1x8x64xf32>
    %269 = vector.shape_cast %268 : vector<1x1x8x64xf32> to vector<8x64xf32>
    %270 = vector.extract_strided_slice %76 {offsets = [4, 4, 0, 0], sizes = [1, 1, 8, 64], strides = [1, 1, 1, 1]} : vector<6x6x8x64xf32> to vector<1x1x8x64xf32>
    %271 = vector.shape_cast %270 : vector<1x1x8x64xf32> to vector<8x64xf32>
    %272 = vector.extract_strided_slice %76 {offsets = [4, 5, 0, 0], sizes = [1, 1, 8, 64], strides = [1, 1, 1, 1]} : vector<6x6x8x64xf32> to vector<1x1x8x64xf32>
    %273 = vector.shape_cast %272 : vector<1x1x8x64xf32> to vector<8x64xf32>
    %274 = tpu.concatenate %243, %245, %247, %249, %251, %253, %255, %257, %259, %261, %263, %265, %267, %269, %271, %273 in 0 : vector<8x64xf32>, vector<8x64xf32>, vector<8x64xf32>, vector<8x64xf32>, vector<8x64xf32>, vector<8x64xf32>, vector<8x64xf32>, vector<8x64xf32>, vector<8x64xf32>, vector<8x64xf32>, vector<8x64xf32>, vector<8x64xf32>, vector<8x64xf32>, vector<8x64xf32>, vector<8x64xf32>, vector<8x64xf32> -> vector<128x64xf32>
    %275 = vector.extract_strided_slice %76 {offsets = [2, 0, 0, 0], sizes = [1, 1, 8, 64], strides = [1, 1, 1, 1]} : vector<6x6x8x64xf32> to vector<1x1x8x64xf32>
    %276 = vector.shape_cast %275 : vector<1x1x8x64xf32> to vector<8x64xf32>
    %277 = vector.extract_strided_slice %76 {offsets = [2, 1, 0, 0], sizes = [1, 1, 8, 64], strides = [1, 1, 1, 1]} : vector<6x6x8x64xf32> to vector<1x1x8x64xf32>
    %278 = vector.shape_cast %277 : vector<1x1x8x64xf32> to vector<8x64xf32>
    %279 = vector.extract_strided_slice %76 {offsets = [3, 0, 0, 0], sizes = [1, 1, 8, 64], strides = [1, 1, 1, 1]} : vector<6x6x8x64xf32> to vector<1x1x8x64xf32>
    %280 = vector.shape_cast %279 : vector<1x1x8x64xf32> to vector<8x64xf32>
    %281 = vector.extract_strided_slice %76 {offsets = [3, 1, 0, 0], sizes = [1, 1, 8, 64], strides = [1, 1, 1, 1]} : vector<6x6x8x64xf32> to vector<1x1x8x64xf32>
    %282 = vector.shape_cast %281 : vector<1x1x8x64xf32> to vector<8x64xf32>
    %283 = vector.extract_strided_slice %76 {offsets = [2, 2, 0, 0], sizes = [1, 1, 8, 64], strides = [1, 1, 1, 1]} : vector<6x6x8x64xf32> to vector<1x1x8x64xf32>
    %284 = vector.shape_cast %283 : vector<1x1x8x64xf32> to vector<8x64xf32>
    %285 = vector.extract_strided_slice %76 {offsets = [2, 3, 0, 0], sizes = [1, 1, 8, 64], strides = [1, 1, 1, 1]} : vector<6x6x8x64xf32> to vector<1x1x8x64xf32>
    %286 = vector.shape_cast %285 : vector<1x1x8x64xf32> to vector<8x64xf32>
    %287 = vector.extract_strided_slice %76 {offsets = [3, 2, 0, 0], sizes = [1, 1, 8, 64], strides = [1, 1, 1, 1]} : vector<6x6x8x64xf32> to vector<1x1x8x64xf32>
    %288 = vector.shape_cast %287 : vector<1x1x8x64xf32> to vector<8x64xf32>
    %289 = vector.extract_strided_slice %76 {offsets = [3, 3, 0, 0], sizes = [1, 1, 8, 64], strides = [1, 1, 1, 1]} : vector<6x6x8x64xf32> to vector<1x1x8x64xf32>
    %290 = vector.shape_cast %289 : vector<1x1x8x64xf32> to vector<8x64xf32>
    %291 = vector.extract_strided_slice %76 {offsets = [4, 0, 0, 0], sizes = [1, 1, 8, 64], strides = [1, 1, 1, 1]} : vector<6x6x8x64xf32> to vector<1x1x8x64xf32>
    %292 = vector.shape_cast %291 : vector<1x1x8x64xf32> to vector<8x64xf32>
    %293 = vector.extract_strided_slice %76 {offsets = [4, 1, 0, 0], sizes = [1, 1, 8, 64], strides = [1, 1, 1, 1]} : vector<6x6x8x64xf32> to vector<1x1x8x64xf32>
    %294 = vector.shape_cast %293 : vector<1x1x8x64xf32> to vector<8x64xf32>
    %295 = vector.extract_strided_slice %76 {offsets = [5, 0, 0, 0], sizes = [1, 1, 8, 64], strides = [1, 1, 1, 1]} : vector<6x6x8x64xf32> to vector<1x1x8x64xf32>
    %296 = vector.shape_cast %295 : vector<1x1x8x64xf32> to vector<8x64xf32>
    %297 = vector.extract_strided_slice %76 {offsets = [5, 1, 0, 0], sizes = [1, 1, 8, 64], strides = [1, 1, 1, 1]} : vector<6x6x8x64xf32> to vector<1x1x8x64xf32>
    %298 = vector.shape_cast %297 : vector<1x1x8x64xf32> to vector<8x64xf32>
    %299 = vector.extract_strided_slice %76 {offsets = [4, 2, 0, 0], sizes = [1, 1, 8, 64], strides = [1, 1, 1, 1]} : vector<6x6x8x64xf32> to vector<1x1x8x64xf32>
    %300 = vector.shape_cast %299 : vector<1x1x8x64xf32> to vector<8x64xf32>
    %301 = vector.extract_strided_slice %76 {offsets = [4, 3, 0, 0], sizes = [1, 1, 8, 64], strides = [1, 1, 1, 1]} : vector<6x6x8x64xf32> to vector<1x1x8x64xf32>
    %302 = vector.shape_cast %301 : vector<1x1x8x64xf32> to vector<8x64xf32>
    %303 = vector.extract_strided_slice %76 {offsets = [5, 2, 0, 0], sizes = [1, 1, 8, 64], strides = [1, 1, 1, 1]} : vector<6x6x8x64xf32> to vector<1x1x8x64xf32>
    %304 = vector.shape_cast %303 : vector<1x1x8x64xf32> to vector<8x64xf32>
    %305 = vector.extract_strided_slice %76 {offsets = [5, 3, 0, 0], sizes = [1, 1, 8, 64], strides = [1, 1, 1, 1]} : vector<6x6x8x64xf32> to vector<1x1x8x64xf32>
    %306 = vector.shape_cast %305 : vector<1x1x8x64xf32> to vector<8x64xf32>
    %307 = tpu.concatenate %276, %278, %280, %282, %284, %286, %288, %290, %292, %294, %296, %298, %300, %302, %304, %306 in 0 : vector<8x64xf32>, vector<8x64xf32>, vector<8x64xf32>, vector<8x64xf32>, vector<8x64xf32>, vector<8x64xf32>, vector<8x64xf32>, vector<8x64xf32>, vector<8x64xf32>, vector<8x64xf32>, vector<8x64xf32>, vector<8x64xf32>, vector<8x64xf32>, vector<8x64xf32>, vector<8x64xf32>, vector<8x64xf32> -> vector<128x64xf32>
    %308 = vector.extract_strided_slice %76 {offsets = [2, 1, 0, 0], sizes = [1, 1, 8, 64], strides = [1, 1, 1, 1]} : vector<6x6x8x64xf32> to vector<1x1x8x64xf32>
    %309 = vector.shape_cast %308 : vector<1x1x8x64xf32> to vector<8x64xf32>
    %310 = vector.extract_strided_slice %76 {offsets = [2, 2, 0, 0], sizes = [1, 1, 8, 64], strides = [1, 1, 1, 1]} : vector<6x6x8x64xf32> to vector<1x1x8x64xf32>
    %311 = vector.shape_cast %310 : vector<1x1x8x64xf32> to vector<8x64xf32>
    %312 = vector.extract_strided_slice %76 {offsets = [3, 1, 0, 0], sizes = [1, 1, 8, 64], strides = [1, 1, 1, 1]} : vector<6x6x8x64xf32> to vector<1x1x8x64xf32>
    %313 = vector.shape_cast %312 : vector<1x1x8x64xf32> to vector<8x64xf32>
    %314 = vector.extract_strided_slice %76 {offsets = [3, 2, 0, 0], sizes = [1, 1, 8, 64], strides = [1, 1, 1, 1]} : vector<6x6x8x64xf32> to vector<1x1x8x64xf32>
    %315 = vector.shape_cast %314 : vector<1x1x8x64xf32> to vector<8x64xf32>
    %316 = vector.extract_strided_slice %76 {offsets = [2, 3, 0, 0], sizes = [1, 1, 8, 64], strides = [1, 1, 1, 1]} : vector<6x6x8x64xf32> to vector<1x1x8x64xf32>
    %317 = vector.shape_cast %316 : vector<1x1x8x64xf32> to vector<8x64xf32>
    %318 = vector.extract_strided_slice %76 {offsets = [2, 4, 0, 0], sizes = [1, 1, 8, 64], strides = [1, 1, 1, 1]} : vector<6x6x8x64xf32> to vector<1x1x8x64xf32>
    %319 = vector.shape_cast %318 : vector<1x1x8x64xf32> to vector<8x64xf32>
    %320 = vector.extract_strided_slice %76 {offsets = [3, 3, 0, 0], sizes = [1, 1, 8, 64], strides = [1, 1, 1, 1]} : vector<6x6x8x64xf32> to vector<1x1x8x64xf32>
    %321 = vector.shape_cast %320 : vector<1x1x8x64xf32> to vector<8x64xf32>
    %322 = vector.extract_strided_slice %76 {offsets = [3, 4, 0, 0], sizes = [1, 1, 8, 64], strides = [1, 1, 1, 1]} : vector<6x6x8x64xf32> to vector<1x1x8x64xf32>
    %323 = vector.shape_cast %322 : vector<1x1x8x64xf32> to vector<8x64xf32>
    %324 = vector.extract_strided_slice %76 {offsets = [4, 1, 0, 0], sizes = [1, 1, 8, 64], strides = [1, 1, 1, 1]} : vector<6x6x8x64xf32> to vector<1x1x8x64xf32>
    %325 = vector.shape_cast %324 : vector<1x1x8x64xf32> to vector<8x64xf32>
    %326 = vector.extract_strided_slice %76 {offsets = [4, 2, 0, 0], sizes = [1, 1, 8, 64], strides = [1, 1, 1, 1]} : vector<6x6x8x64xf32> to vector<1x1x8x64xf32>
    %327 = vector.shape_cast %326 : vector<1x1x8x64xf32> to vector<8x64xf32>
    %328 = vector.extract_strided_slice %76 {offsets = [5, 1, 0, 0], sizes = [1, 1, 8, 64], strides = [1, 1, 1, 1]} : vector<6x6x8x64xf32> to vector<1x1x8x64xf32>
    %329 = vector.shape_cast %328 : vector<1x1x8x64xf32> to vector<8x64xf32>
    %330 = vector.extract_strided_slice %76 {offsets = [5, 2, 0, 0], sizes = [1, 1, 8, 64], strides = [1, 1, 1, 1]} : vector<6x6x8x64xf32> to vector<1x1x8x64xf32>
    %331 = vector.shape_cast %330 : vector<1x1x8x64xf32> to vector<8x64xf32>
    %332 = vector.extract_strided_slice %76 {offsets = [4, 3, 0, 0], sizes = [1, 1, 8, 64], strides = [1, 1, 1, 1]} : vector<6x6x8x64xf32> to vector<1x1x8x64xf32>
    %333 = vector.shape_cast %332 : vector<1x1x8x64xf32> to vector<8x64xf32>
    %334 = vector.extract_strided_slice %76 {offsets = [4, 4, 0, 0], sizes = [1, 1, 8, 64], strides = [1, 1, 1, 1]} : vector<6x6x8x64xf32> to vector<1x1x8x64xf32>
    %335 = vector.shape_cast %334 : vector<1x1x8x64xf32> to vector<8x64xf32>
    %336 = vector.extract_strided_slice %76 {offsets = [5, 3, 0, 0], sizes = [1, 1, 8, 64], strides = [1, 1, 1, 1]} : vector<6x6x8x64xf32> to vector<1x1x8x64xf32>
    %337 = vector.shape_cast %336 : vector<1x1x8x64xf32> to vector<8x64xf32>
    %338 = vector.extract_strided_slice %76 {offsets = [5, 4, 0, 0], sizes = [1, 1, 8, 64], strides = [1, 1, 1, 1]} : vector<6x6x8x64xf32> to vector<1x1x8x64xf32>
    %339 = vector.shape_cast %338 : vector<1x1x8x64xf32> to vector<8x64xf32>
    %340 = tpu.concatenate %309, %311, %313, %315, %317, %319, %321, %323, %325, %327, %329, %331, %333, %335, %337, %339 in 0 : vector<8x64xf32>, vector<8x64xf32>, vector<8x64xf32>, vector<8x64xf32>, vector<8x64xf32>, vector<8x64xf32>, vector<8x64xf32>, vector<8x64xf32>, vector<8x64xf32>, vector<8x64xf32>, vector<8x64xf32>, vector<8x64xf32>, vector<8x64xf32>, vector<8x64xf32>, vector<8x64xf32>, vector<8x64xf32> -> vector<128x64xf32>
    %341 = vector.extract_strided_slice %76 {offsets = [2, 2, 0, 0], sizes = [1, 1, 8, 64], strides = [1, 1, 1, 1]} : vector<6x6x8x64xf32> to vector<1x1x8x64xf32>
    %342 = vector.shape_cast %341 : vector<1x1x8x64xf32> to vector<8x64xf32>
    %343 = vector.extract_strided_slice %76 {offsets = [2, 3, 0, 0], sizes = [1, 1, 8, 64], strides = [1, 1, 1, 1]} : vector<6x6x8x64xf32> to vector<1x1x8x64xf32>
    %344 = vector.shape_cast %343 : vector<1x1x8x64xf32> to vector<8x64xf32>
    %345 = vector.extract_strided_slice %76 {offsets = [3, 2, 0, 0], sizes = [1, 1, 8, 64], strides = [1, 1, 1, 1]} : vector<6x6x8x64xf32> to vector<1x1x8x64xf32>
    %346 = vector.shape_cast %345 : vector<1x1x8x64xf32> to vector<8x64xf32>
    %347 = vector.extract_strided_slice %76 {offsets = [3, 3, 0, 0], sizes = [1, 1, 8, 64], strides = [1, 1, 1, 1]} : vector<6x6x8x64xf32> to vector<1x1x8x64xf32>
    %348 = vector.shape_cast %347 : vector<1x1x8x64xf32> to vector<8x64xf32>
    %349 = vector.extract_strided_slice %76 {offsets = [2, 4, 0, 0], sizes = [1, 1, 8, 64], strides = [1, 1, 1, 1]} : vector<6x6x8x64xf32> to vector<1x1x8x64xf32>
    %350 = vector.shape_cast %349 : vector<1x1x8x64xf32> to vector<8x64xf32>
    %351 = vector.extract_strided_slice %76 {offsets = [2, 5, 0, 0], sizes = [1, 1, 8, 64], strides = [1, 1, 1, 1]} : vector<6x6x8x64xf32> to vector<1x1x8x64xf32>
    %352 = vector.shape_cast %351 : vector<1x1x8x64xf32> to vector<8x64xf32>
    %353 = vector.extract_strided_slice %76 {offsets = [3, 4, 0, 0], sizes = [1, 1, 8, 64], strides = [1, 1, 1, 1]} : vector<6x6x8x64xf32> to vector<1x1x8x64xf32>
    %354 = vector.shape_cast %353 : vector<1x1x8x64xf32> to vector<8x64xf32>
    %355 = vector.extract_strided_slice %76 {offsets = [3, 5, 0, 0], sizes = [1, 1, 8, 64], strides = [1, 1, 1, 1]} : vector<6x6x8x64xf32> to vector<1x1x8x64xf32>
    %356 = vector.shape_cast %355 : vector<1x1x8x64xf32> to vector<8x64xf32>
    %357 = vector.extract_strided_slice %76 {offsets = [4, 2, 0, 0], sizes = [1, 1, 8, 64], strides = [1, 1, 1, 1]} : vector<6x6x8x64xf32> to vector<1x1x8x64xf32>
    %358 = vector.shape_cast %357 : vector<1x1x8x64xf32> to vector<8x64xf32>
    %359 = vector.extract_strided_slice %76 {offsets = [4, 3, 0, 0], sizes = [1, 1, 8, 64], strides = [1, 1, 1, 1]} : vector<6x6x8x64xf32> to vector<1x1x8x64xf32>
    %360 = vector.shape_cast %359 : vector<1x1x8x64xf32> to vector<8x64xf32>
    %361 = vector.extract_strided_slice %76 {offsets = [5, 2, 0, 0], sizes = [1, 1, 8, 64], strides = [1, 1, 1, 1]} : vector<6x6x8x64xf32> to vector<1x1x8x64xf32>
    %362 = vector.shape_cast %361 : vector<1x1x8x64xf32> to vector<8x64xf32>
    %363 = vector.extract_strided_slice %76 {offsets = [5, 3, 0, 0], sizes = [1, 1, 8, 64], strides = [1, 1, 1, 1]} : vector<6x6x8x64xf32> to vector<1x1x8x64xf32>
    %364 = vector.shape_cast %363 : vector<1x1x8x64xf32> to vector<8x64xf32>
    %365 = vector.extract_strided_slice %76 {offsets = [4, 4, 0, 0], sizes = [1, 1, 8, 64], strides = [1, 1, 1, 1]} : vector<6x6x8x64xf32> to vector<1x1x8x64xf32>
    %366 = vector.shape_cast %365 : vector<1x1x8x64xf32> to vector<8x64xf32>
    %367 = vector.extract_strided_slice %76 {offsets = [4, 5, 0, 0], sizes = [1, 1, 8, 64], strides = [1, 1, 1, 1]} : vector<6x6x8x64xf32> to vector<1x1x8x64xf32>
    %368 = vector.shape_cast %367 : vector<1x1x8x64xf32> to vector<8x64xf32>
    %369 = vector.extract_strided_slice %76 {offsets = [5, 4, 0, 0], sizes = [1, 1, 8, 64], strides = [1, 1, 1, 1]} : vector<6x6x8x64xf32> to vector<1x1x8x64xf32>
    %370 = vector.shape_cast %369 : vector<1x1x8x64xf32> to vector<8x64xf32>
    %371 = vector.extract_strided_slice %76 {offsets = [5, 5, 0, 0], sizes = [1, 1, 8, 64], strides = [1, 1, 1, 1]} : vector<6x6x8x64xf32> to vector<1x1x8x64xf32>
    %372 = vector.shape_cast %371 : vector<1x1x8x64xf32> to vector<8x64xf32>
    %373 = tpu.concatenate %342, %344, %346, %348, %350, %352, %354, %356, %358, %360, %362, %364, %366, %368, %370, %372 in 0 : vector<8x64xf32>, vector<8x64xf32>, vector<8x64xf32>, vector<8x64xf32>, vector<8x64xf32>, vector<8x64xf32>, vector<8x64xf32>, vector<8x64xf32>, vector<8x64xf32>, vector<8x64xf32>, vector<8x64xf32>, vector<8x64xf32>, vector<8x64xf32>, vector<8x64xf32>, vector<8x64xf32>, vector<8x64xf32> -> vector<128x64xf32>
    %374 = tpu.concatenate %109, %142, %175, %208, %241, %274, %307, %340, %373 in 1 : vector<128x64xf32>, vector<128x64xf32>, vector<128x64xf32>, vector<128x64xf32>, vector<128x64xf32>, vector<128x64xf32>, vector<128x64xf32>, vector<128x64xf32>, vector<128x64xf32> -> vector<128x576xf32>
    %c0_10 = arith.constant 0 : index
    %c0_11 = arith.constant 0 : index
    %375 = vector.load %arg4[%c0_10, %c0_11] : memref<576x32xf32, #tpu.memory_space<vmem>>, vector<576x32xf32>
    %cst_12 = arith.constant dense<0.000000e+00> : vector<128x32xf32>
    %376 = tpu.matmul %374, %375, %cst_12 {dimension_numbers = #tpu.dot_dimension_numbers<[1], [0], [0], [1], [0, 0, 1, 1], [], []>} : vector<128x576xf32>, vector<576x32xf32>, vector<128x32xf32> -> vector<128x32xf32>
    %377 = vector.extract_strided_slice %376 {offsets = [0, 0], sizes = [8, 32], strides = [1, 1]} : vector<128x32xf32> to vector<8x32xf32>
    %378 = vector.extract_strided_slice %376 {offsets = [8, 0], sizes = [8, 32], strides = [1, 1]} : vector<128x32xf32> to vector<8x32xf32>
    %379 = arith.maximumf %377, %378 : vector<8x32xf32>
    %380 = vector.extract_strided_slice %376 {offsets = [16, 0], sizes = [8, 32], strides = [1, 1]} : vector<128x32xf32> to vector<8x32xf32>
    %381 = arith.maximumf %379, %380 : vector<8x32xf32>
    %382 = vector.extract_strided_slice %376 {offsets = [24, 0], sizes = [8, 32], strides = [1, 1]} : vector<128x32xf32> to vector<8x32xf32>
    %383 = arith.maximumf %381, %382 : vector<8x32xf32>
    %384 = vector.broadcast %2 : vector<1x32xf32> to vector<8x32xf32>
    %385 = arith.addf %383, %384 : vector<8x32xf32>
    %cst_13 = arith.constant 0.000000e+00 : f32
    %386 = vector.broadcast %cst_13 : f32 to vector<8x32xf32>
    %387 = arith.maximumf %385, %386 : vector<8x32xf32>
    %388 = vector.extract_strided_slice %376 {offsets = [32, 0], sizes = [8, 32], strides = [1, 1]} : vector<128x32xf32> to vector<8x32xf32>
    %389 = vector.extract_strided_slice %376 {offsets = [40, 0], sizes = [8, 32], strides = [1, 1]} : vector<128x32xf32> to vector<8x32xf32>
    %390 = arith.maximumf %388, %389 : vector<8x32xf32>
    %391 = vector.extract_strided_slice %376 {offsets = [48, 0], sizes = [8, 32], strides = [1, 1]} : vector<128x32xf32> to vector<8x32xf32>
    %392 = arith.maximumf %390, %391 : vector<8x32xf32>
    %393 = vector.extract_strided_slice %376 {offsets = [56, 0], sizes = [8, 32], strides = [1, 1]} : vector<128x32xf32> to vector<8x32xf32>
    %394 = arith.maximumf %392, %393 : vector<8x32xf32>
    %395 = vector.broadcast %2 : vector<1x32xf32> to vector<8x32xf32>
    %396 = arith.addf %394, %395 : vector<8x32xf32>
    %cst_14 = arith.constant 0.000000e+00 : f32
    %397 = vector.broadcast %cst_14 : f32 to vector<8x32xf32>
    %398 = arith.maximumf %396, %397 : vector<8x32xf32>
    %399 = vector.extract_strided_slice %376 {offsets = [64, 0], sizes = [8, 32], strides = [1, 1]} : vector<128x32xf32> to vector<8x32xf32>
    %400 = vector.extract_strided_slice %376 {offsets = [72, 0], sizes = [8, 32], strides = [1, 1]} : vector<128x32xf32> to vector<8x32xf32>
    %401 = arith.maximumf %399, %400 : vector<8x32xf32>
    %402 = vector.extract_strided_slice %376 {offsets = [80, 0], sizes = [8, 32], strides = [1, 1]} : vector<128x32xf32> to vector<8x32xf32>
    %403 = arith.maximumf %401, %402 : vector<8x32xf32>
    %404 = vector.extract_strided_slice %376 {offsets = [88, 0], sizes = [8, 32], strides = [1, 1]} : vector<128x32xf32> to vector<8x32xf32>
    %405 = arith.maximumf %403, %404 : vector<8x32xf32>
    %406 = vector.broadcast %2 : vector<1x32xf32> to vector<8x32xf32>
    %407 = arith.addf %405, %406 : vector<8x32xf32>
    %cst_15 = arith.constant 0.000000e+00 : f32
    %408 = vector.broadcast %cst_15 : f32 to vector<8x32xf32>
    %409 = arith.maximumf %407, %408 : vector<8x32xf32>
    %410 = vector.extract_strided_slice %376 {offsets = [96, 0], sizes = [8, 32], strides = [1, 1]} : vector<128x32xf32> to vector<8x32xf32>
    %411 = vector.extract_strided_slice %376 {offsets = [104, 0], sizes = [8, 32], strides = [1, 1]} : vector<128x32xf32> to vector<8x32xf32>
    %412 = arith.maximumf %410, %411 : vector<8x32xf32>
    %413 = vector.extract_strided_slice %376 {offsets = [112, 0], sizes = [8, 32], strides = [1, 1]} : vector<128x32xf32> to vector<8x32xf32>
    %414 = arith.maximumf %412, %413 : vector<8x32xf32>
    %415 = vector.extract_strided_slice %376 {offsets = [120, 0], sizes = [8, 32], strides = [1, 1]} : vector<128x32xf32> to vector<8x32xf32>
    %416 = arith.maximumf %414, %415 : vector<8x32xf32>
    %417 = vector.broadcast %2 : vector<1x32xf32> to vector<8x32xf32>
    %418 = arith.addf %416, %417 : vector<8x32xf32>
    %cst_16 = arith.constant 0.000000e+00 : f32
    %419 = vector.broadcast %cst_16 : f32 to vector<8x32xf32>
    %420 = arith.maximumf %418, %419 : vector<8x32xf32>
    %421 = tpu.concatenate %387, %398, %409, %420 in 1 : vector<8x32xf32>, vector<8x32xf32>, vector<8x32xf32>, vector<8x32xf32> -> vector<8x128xf32>
    %c0_17 = arith.constant 0 : index
    %c0_18 = arith.constant 0 : index
    %422 = vector.load %arg6[%c0_17, %c0_18] : memref<128x2xf32, #tpu.memory_space<vmem>>, vector<128x2xf32>
    %cst_19 = arith.constant dense<0.000000e+00> : vector<8x2xf32>
    %423 = tpu.matmul %421, %422, %cst_19 {dimension_numbers = #tpu.dot_dimension_numbers<[1], [0], [0], [1], [0, 0, 1, 1], [], []>} : vector<8x128xf32>, vector<128x2xf32>, vector<8x2xf32> -> vector<8x2xf32>
    %c0_20 = arith.constant 0 : index
    %c0_21 = arith.constant 0 : index
    %424 = vector.load %arg7[%c0_20, %c0_21] : memref<1x2xf32, #tpu.memory_space<vmem>>, vector<1x2xf32>
    %425 = vector.broadcast %424 : vector<1x2xf32> to vector<8x2xf32>
    %426 = arith.addf %423, %425 : vector<8x2xf32>
    %cst_22 = arith.constant dense<0xFF800000> : vector<8xf32>
    %427 = vector.multi_reduction <maximumf>, %426, %cst_22 [1] : vector<8x2xf32> to vector<8xf32>
    %428 = vector.shape_cast %427 : vector<8xf32> to vector<8x1xf32>
    %429 = vector.broadcast %428 : vector<8x1xf32> to vector<8x2xf32>
    %430 = arith.subf %426, %429 : vector<8x2xf32>
    %431 = math.exp %430 : vector<8x2xf32>
    %cst_23 = arith.constant dense<0.000000e+00> : vector<8xf32>
    %432 = vector.multi_reduction <add>, %431, %cst_23 [1] : vector<8x2xf32> to vector<8xf32>
    %433 = vector.shape_cast %432 : vector<8xf32> to vector<8x1xf32>
    %434 = math.log %433 : vector<8x1xf32>
    %435 = vector.broadcast %434 : vector<8x1xf32> to vector<8x2xf32>
    %436 = arith.subf %430, %435 : vector<8x2xf32>
    %c0_24 = arith.constant 0 : index
    %c0_25 = arith.constant 0 : index
    %c0_26 = arith.constant 0 : index
    %437 = vector.load %arg8[%c0_24, %c0_25, %c0_26] : memref<1x8x2xf32, #tpu.memory_space<vmem>>, vector<1x8x2xf32>
    %438 = vector.shape_cast %437 : vector<1x8x2xf32> to vector<8x2xf32>
    %439 = vector.shape_cast %436 : vector<8x2xf32> to vector<1x8x2xf32>
    tpu.vector_store %arg8[%c0_24, %c0_25, %c0_26], %439 {strides = array<i32>} : memref<1x8x2xf32, #tpu.memory_space<vmem>>, vector<1x8x2xf32>,
    return
  }
  func.func @transform_0(%arg0: i32) -> (i32, i32, i32, i32, i32) {
    %c0_i32 = arith.constant 0 : i32
    %c0_i32_0 = arith.constant 0 : i32
    %c0_i32_1 = arith.constant 0 : i32
    %c0_i32_2 = arith.constant 0 : i32
    %c0_i32_3 = arith.constant 0 : i32
    return %arg0, %c0_i32, %c0_i32_0, %c0_i32_1, %c0_i32_2 : i32, i32, i32, i32, i32
  }
  func.func @transform_1(%arg0: i32) -> (i32, i32) {
    %c0_i32 = arith.constant 0 : i32
    %c0_i32_0 = arith.constant 0 : i32
    %c0_i32_1 = arith.constant 0 : i32
    return %c0_i32, %c0_i32_0 : i32, i32
  }
  func.func @transform_2(%arg0: i32) -> (i32, i32) {
    %c0_i32 = arith.constant 0 : i32
    %c0_i32_0 = arith.constant 0 : i32
    %c0_i32_1 = arith.constant 0 : i32
    return %c0_i32, %c0_i32_0 : i32, i32
  }
  func.func @transform_3(%arg0: i32) -> (i32, i32) {
    %c0_i32 = arith.constant 0 : i32
    %c0_i32_0 = arith.constant 0 : i32
    %c0_i32_1 = arith.constant 0 : i32
    return %c0_i32, %c0_i32_0 : i32, i32
  }
  func.func @transform_4(%arg0: i32) -> (i32, i32) {
    %c0_i32 = arith.constant 0 : i32
    %c0_i32_0 = arith.constant 0 : i32
    %c0_i32_1 = arith.constant 0 : i32
    return %c0_i32, %c0_i32_0 : i32, i32
  }
  func.func @transform_5(%arg0: i32) -> (i32, i32) {
    %c0_i32 = arith.constant 0 : i32
    %c0_i32_0 = arith.constant 0 : i32
    %c0_i32_1 = arith.constant 0 : i32
    return %c0_i32, %c0_i32_0 : i32, i32
  }
  func.func @transform_6(%arg0: i32) -> (i32, i32) {
    %c0_i32 = arith.constant 0 : i32
    %c0_i32_0 = arith.constant 0 : i32
    %c0_i32_1 = arith.constant 0 : i32
    return %c0_i32, %c0_i32_0 : i32, i32
  }
  func.func @transform_7(%arg0: i32) -> (i32, i32, i32) {
    %c0_i32 = arith.constant 0 : i32
    %c0_i32_0 = arith.constant 0 : i32
    %c0_i32_1 = arith.constant 0 : i32
    return %arg0, %c0_i32, %c0_i32_0 : i32, i32, i32
  }
}

</mosaic_0001>

<llo_original>
// kernel: net_forward.1
$region0: #{net_forward.1}
  #allocation0 [shape = 'u32[]', space=smem, size = 0x4, offset = 0x4, fixed_abs, tag = 'smem constant byte address 0x4 - core index']
  #allocation1 [shape = 'u32[144,128]{1,0:T(1,128)}', space=vmem, size = 0x12000, scoped, tag = 'internal scratch']
  %s0 = inlined_call_operand.vmem [shape: f32[1,14,14,8,1], index: 0, kind: input, shape index: {}]
  %s1 = inlined_call_operand.vmem [shape: f32[9,64], index: 1, kind: input, shape index: {}]
  %s2 = inlined_call_operand.vmem [shape: f32[1,64], index: 2, kind: input, shape index: {}]
  %s3 = inlined_call_operand.vmem [shape: f32[576,32], index: 3, kind: input, shape index: {}]
  %s4 = inlined_call_operand.vmem [shape: f32[1,32], index: 4, kind: input, shape index: {}]
  %s5 = inlined_call_operand.vmem [shape: f32[128,2], index: 5, kind: input, shape index: {}]
  %s6 = inlined_call_operand.vmem [shape: f32[1,2], index: 6, kind: input, shape index: {}]
  %s7 = inlined_call_operand.vmem [shape: f32[1,8,2], index: 7, kind: output, shape index: {}]
  %s8 = sld [smem:[#allocation0]]
  $region38: #{net_forward.1} parent=0
    _
  %s10 = ssub.s32 1, %s8
  %s11 = scalar_select 0, %s10, %s8
  // Predicated region
  $region2: #{net_forward.1} parent=0 // pred_check
    _
  $region3: #{net_forward.1} parent=0 // pred_check_branch
    %13 = sbr.rel (0) target = $region5
  $region4: #{net_forward.1} parent=0 // pred_region
    _
  $region5: #{net_forward.1} parent=0 // pred_fallthru
    _
  // Predicated region
  $region6: #{net_forward.1} parent=0 // pred_check
    _
  $region7: #{net_forward.1} parent=0 // pred_check_branch
    %15 = sbr.rel (0) target = $region9
  $region8: #{net_forward.1} parent=0 // pred_region
    _
  $region9: #{net_forward.1} parent=0 // pred_fallthru
    _
  // Predicated region
  $region10: #{net_forward.1} parent=0 // pred_check
    _
  $region11: #{net_forward.1} parent=0 // pred_check_branch
    %17 = sbr.rel (0) target = $region13
  $region12: #{net_forward.1} parent=0 // pred_region
    _
  $region13: #{net_forward.1} parent=0 // pred_fallthru
    _
  // Predicated region
  $region14: #{net_forward.1} parent=0 // pred_check
    _
  $region15: #{net_forward.1} parent=0 // pred_check_branch
    %19 = sbr.rel (0) target = $region17
  $region16: #{net_forward.1} parent=0 // pred_region
    _
  $region17: #{net_forward.1} parent=0 // pred_fallthru
    _
  // Predicated region
  $region18: #{net_forward.1} parent=0 // pred_check
    _
  $region19: #{net_forward.1} parent=0 // pred_check_branch
    %21 = sbr.rel (0) target = $region21
  $region20: #{net_forward.1} parent=0 // pred_region
    _
  $region21: #{net_forward.1} parent=0 // pred_fallthru
    _
  // Predicated region
  $region22: #{net_forward.1} parent=0 // pred_check
    _
  $region23: #{net_forward.1} parent=0 // pred_check_branch
    %23 = sbr.rel (0) target = $region25
  $region24: #{net_forward.1} parent=0 // pred_region
    _
  $region25: #{net_forward.1} parent=0 // pred_fallthru
    _
  // Predicated region
  $region26: #{net_forward.1} parent=0 // pred_check
    _
  $region27: #{net_forward.1} parent=0 // pred_check_branch
    %25 = sbr.rel (0) target = $region29
  $region28: #{net_forward.1} parent=0 // pred_region
    _
  $region29: #{net_forward.1} parent=0 // pred_fallthru
    _
  %v26 = vld [vmem:[%s1] sm:$0xff]
  %v27 = vld [vmem:[%s1 + $0x8] sm:$0x1]
  %v28 = vld [vmem:[%s2] sm:$0x1]
  %v29 = vld [vmem:[%s4] sm:$0x1]
  %v30 = vld [vmem:[%s0] sm:$0xff]
  %v31 = vld [vmem:[%s0 + $0x8] sm:$0xff]
  %v32 = vld [vmem:[%s0 + $0x10] sm:$0xff]
  %v33 = vld [vmem:[%s0 + $0x18] sm:$0xff]
  %v34 = vld [vmem:[%s0 + $0x20] sm:$0xff]
  %v35 = vld [vmem:[%s0 + $0x28] sm:$0xff]
  %v36 = vld [vmem:[%s0 + $0x30] sm:$0xff]
  %v37 = vld [vmem:[%s0 + $0x38] sm:$0xff]
  %v38 = vld [vmem:[%s0 + $0x40] sm:$0xff]
  %v39 = vld [vmem:[%s0 + $0x48] sm:$0xff]
  %v40 = vld [vmem:[%s0 + $0x50] sm:$0xff]
  %v41 = vld [vmem:[%s0 + $0x58] sm:$0xff]
  %v42 = vld [vmem:[%s0 + $0x60] sm:$0xff]
  %v43 = vld [vmem:[%s0 + $0x68] sm:$0xff]
  %v44 = vld [vmem:[%s0 + $0x70] sm:$0xff]
  %v45 = vld [vmem:[%s0 + $0x78] sm:$0xff]
  %v46 = vld [vmem:[%s0 + $0x80] sm:$0xff]
  %v47 = vld [vmem:[%s0 + $0x88] sm:$0xff]
  %v48 = vld [vmem:[%s0 + $0x90] sm:$0xff]
  %v49 = vld [vmem:[%s0 + $0x98] sm:$0xff]
  %v50 = vld [vmem:[%s0 + $0xa0] sm:$0xff]
  %v51 = vld [vmem:[%s0 + $0xa8] sm:$0xff]
  %v52 = vld [vmem:[%s0 + $0xb0] sm:$0xff]
  %v53 = vld [vmem:[%s0 + $0xb8] sm:$0xff]
  %v54 = vld [vmem:[%s0 + $0xc0] sm:$0xff]
  %v55 = vld [vmem:[%s0 + $0xc8] sm:$0xff]
  %v56 = vld [vmem:[%s0 + $0xd0] sm:$0xff]
  %v57 = vld [vmem:[%s0 + $0xd8] sm:$0xff]
  %v58 = vld [vmem:[%s0 + $0xe0] sm:$0xff]
  %v59 = vld [vmem:[%s0 + $0xe8] sm:$0xff]
  %v60 = vld [vmem:[%s0 + $0xf0] sm:$0xff]
  %v61 = vld [vmem:[%s0 + $0xf8] sm:$0xff]
  %v62 = vld [vmem:[%s0 + $0x100] sm:$0xff]
  %v63 = vld [vmem:[%s0 + $0x108] sm:$0xff]
  %v64 = vld [vmem:[%s0 + $0x110] sm:$0xff]
  %v65 = vld [vmem:[%s0 + $0x118] sm:$0xff]
  %v66 = vld [vmem:[%s0 + $0x120] sm:$0xff]
  %v67 = vld [vmem:[%s0 + $0x128] sm:$0xff]
  %v68 = vld [vmem:[%s0 + $0x130] sm:$0xff]
  %v69 = vld [vmem:[%s0 + $0x138] sm:$0xff]
  %v70 = vld [vmem:[%s0 + $0x140] sm:$0xff]
  %v71 = vld [vmem:[%s0 + $0x148] sm:$0xff]
  %v72 = vld [vmem:[%s0 + $0x150] sm:$0xff]
  %v73 = vld [vmem:[%s0 + $0x158] sm:$0xff]
  %v74 = vld [vmem:[%s0 + $0x160] sm:$0xff]
  %v75 = vld [vmem:[%s0 + $0x168] sm:$0xff]
  %v76 = vld [vmem:[%s0 + $0x170] sm:$0xff]
  %v77 = vld [vmem:[%s0 + $0x178] sm:$0xff]
  %v78 = vld [vmem:[%s0 + $0x180] sm:$0xff]
  %v79 = vld [vmem:[%s0 + $0x188] sm:$0xff]
  %v80 = vld [vmem:[%s0 + $0x190] sm:$0xff]
  %v81 = vld [vmem:[%s0 + $0x198] sm:$0xff]
  %v82 = vld [vmem:[%s0 + $0x1a0] sm:$0xff]
  %v83 = vld [vmem:[%s0 + $0x1a8] sm:$0xff]
  %v84 = vld [vmem:[%s0 + $0x1b0] sm:$0xff]
  %v85 = vld [vmem:[%s0 + $0x1b8] sm:$0xff]
  %v86 = vld [vmem:[%s0 + $0x1c0] sm:$0xff]
  %v87 = vld [vmem:[%s0 + $0x1c8] sm:$0xff]
  %v88 = vld [vmem:[%s0 + $0x1d0] sm:$0xff]
  %v89 = vld [vmem:[%s0 + $0x1d8] sm:$0xff]
  %v90 = vld [vmem:[%s0 + $0x1e0] sm:$0xff]
  %v91 = vld [vmem:[%s0 + $0x1e8] sm:$0xff]
  %v92 = vld [vmem:[%s0 + $0x1f0] sm:$0xff]
  %v93 = vld [vmem:[%s0 + $0x1f8] sm:$0xff]
  %v94 = vld [vmem:[%s0 + $0x200] sm:$0xff]
  %v95 = vld [vmem:[%s0 + $0x208] sm:$0xff]
  %v96 = vld [vmem:[%s0 + $0x210] sm:$0xff]
  %v97 = vld [vmem:[%s0 + $0x218] sm:$0xff]
  %v98 = vld [vmem:[%s0 + $0x220] sm:$0xff]
  %v99 = vld [vmem:[%s0 + $0x228] sm:$0xff]
  %v100 = vld [vmem:[%s0 + $0x230] sm:$0xff]
  %v101 = vld [vmem:[%s0 + $0x238] sm:$0xff]
  %v102 = vld [vmem:[%s0 + $0x240] sm:$0xff]
  %v103 = vld [vmem:[%s0 + $0x248] sm:$0xff]
  %v104 = vld [vmem:[%s0 + $0x250] sm:$0xff]
  %v105 = vld [vmem:[%s0 + $0x258] sm:$0xff]
  %v106 = vld [vmem:[%s0 + $0x260] sm:$0xff]
  %v107 = vld [vmem:[%s0 + $0x268] sm:$0xff]
  %v108 = vld [vmem:[%s0 + $0x270] sm:$0xff]
  %v109 = vld [vmem:[%s0 + $0x278] sm:$0xff]
  %v110 = vld [vmem:[%s0 + $0x280] sm:$0xff]
  %v111 = vld [vmem:[%s0 + $0x288] sm:$0xff]
  %v112 = vld [vmem:[%s0 + $0x290] sm:$0xff]
  %v113 = vld [vmem:[%s0 + $0x298] sm:$0xff]
  %v114 = vld [vmem:[%s0 + $0x2a0] sm:$0xff]
  %v115 = vld [vmem:[%s0 + $0x2a8] sm:$0xff]
  %v116 = vld [vmem:[%s0 + $0x2b0] sm:$0xff]
  %v117 = vld [vmem:[%s0 + $0x2b8] sm:$0xff]
  %v118 = vld [vmem:[%s0 + $0x2c0] sm:$0xff]
  %v119 = vld [vmem:[%s0 + $0x2c8] sm:$0xff]
  %v120 = vld [vmem:[%s0 + $0x2d0] sm:$0xff]
  %v121 = vld [vmem:[%s0 + $0x2d8] sm:$0xff]
  %v122 = vld [vmem:[%s0 + $0x2e0] sm:$0xff]
  %v123 = vld [vmem:[%s0 + $0x2e8] sm:$0xff]
  %v124 = vld [vmem:[%s0 + $0x2f0] sm:$0xff]
  %v125 = vld [vmem:[%s0 + $0x2f8] sm:$0xff]
  %v126 = vld [vmem:[%s0 + $0x300] sm:$0xff]
  %v127 = vld [vmem:[%s0 + $0x308] sm:$0xff]
  %v128 = vld [vmem:[%s0 + $0x310] sm:$0xff]
  %v129 = vld [vmem:[%s0 + $0x318] sm:$0xff]
  %v130 = vld [vmem:[%s0 + $0x320] sm:$0xff]
  %v131 = vld [vmem:[%s0 + $0x328] sm:$0xff]
  %v132 = vld [vmem:[%s0 + $0x330] sm:$0xff]
  %v133 = vld [vmem:[%s0 + $0x338] sm:$0xff]
  %v134 = vld [vmem:[%s0 + $0x340] sm:$0xff]
  %v135 = vld [vmem:[%s0 + $0x348] sm:$0xff]
  %v136 = vld [vmem:[%s0 + $0x350] sm:$0xff]
  %v137 = vld [vmem:[%s0 + $0x358] sm:$0xff]
  %v138 = vld [vmem:[%s0 + $0x360] sm:$0xff]
  %v139 = vld [vmem:[%s0 + $0x368] sm:$0xff]
  %v140 = vld [vmem:[%s0 + $0x370] sm:$0xff]
  %v141 = vld [vmem:[%s0 + $0x378] sm:$0xff]
  %v142 = vld [vmem:[%s0 + $0x380] sm:$0xff]
  %v143 = vld [vmem:[%s0 + $0x388] sm:$0xff]
  %v144 = vld [vmem:[%s0 + $0x390] sm:$0xff]
  %v145 = vld [vmem:[%s0 + $0x398] sm:$0xff]
  %v146 = vld [vmem:[%s0 + $0x3a0] sm:$0xff]
  %v147 = vld [vmem:[%s0 + $0x3a8] sm:$0xff]
  %v148 = vld [vmem:[%s0 + $0x3b0] sm:$0xff]
  %v149 = vld [vmem:[%s0 + $0x3b8] sm:$0xff]
  %v150 = vld [vmem:[%s0 + $0x3c0] sm:$0xff]
  %v151 = vld [vmem:[%s0 + $0x3c8] sm:$0xff]
  %v152 = vld [vmem:[%s0 + $0x3d0] sm:$0xff]
  %v153 = vld [vmem:[%s0 + $0x3d8] sm:$0xff]
  %v154 = vld [vmem:[%s0 + $0x3e0] sm:$0xff]
  %v155 = vld [vmem:[%s0 + $0x3e8] sm:$0xff]
  %v156 = vld [vmem:[%s0 + $0x3f0] sm:$0xff]
  %v157 = vld [vmem:[%s0 + $0x3f8] sm:$0xff]
  %v158 = vld [vmem:[%s0 + $0x400] sm:$0xff]
  %v159 = vld [vmem:[%s0 + $0x408] sm:$0xff]
  %v160 = vld [vmem:[%s0 + $0x410] sm:$0xff]
  %v161 = vld [vmem:[%s0 + $0x418] sm:$0xff]
  %v162 = vld [vmem:[%s0 + $0x420] sm:$0xff]
  %v163 = vld [vmem:[%s0 + $0x428] sm:$0xff]
  %v164 = vld [vmem:[%s0 + $0x430] sm:$0xff]
  %v165 = vld [vmem:[%s0 + $0x438] sm:$0xff]
  %v166 = vld [vmem:[%s0 + $0x440] sm:$0xff]
  %v167 = vld [vmem:[%s0 + $0x448] sm:$0xff]
  %v168 = vld [vmem:[%s0 + $0x450] sm:$0xff]
  %v169 = vld [vmem:[%s0 + $0x458] sm:$0xff]
  %v170 = vld [vmem:[%s0 + $0x460] sm:$0xff]
  %v171 = vld [vmem:[%s0 + $0x468] sm:$0xff]
  %v172 = vld [vmem:[%s0 + $0x470] sm:$0xff]
  %v173 = vld [vmem:[%s0 + $0x478] sm:$0xff]
  %v174 = vld [vmem:[%s0 + $0x480] sm:$0xff]
  %v175 = vld [vmem:[%s0 + $0x488] sm:$0xff]
  %v176 = vld [vmem:[%s0 + $0x490] sm:$0xff]
  %v177 = vld [vmem:[%s0 + $0x498] sm:$0xff]
  %v178 = vld [vmem:[%s0 + $0x4a0] sm:$0xff]
  %v179 = vld [vmem:[%s0 + $0x4a8] sm:$0xff]
  %v180 = vld [vmem:[%s0 + $0x4b0] sm:$0xff]
  %v181 = vld [vmem:[%s0 + $0x4b8] sm:$0xff]
  %v182 = vld [vmem:[%s0 + $0x4c0] sm:$0xff]
  %v183 = vld [vmem:[%s0 + $0x4c8] sm:$0xff]
  %v184 = vld [vmem:[%s0 + $0x4d0] sm:$0xff]
  %v185 = vld [vmem:[%s0 + $0x4d8] sm:$0xff]
  %v186 = vld [vmem:[%s0 + $0x4e0] sm:$0xff]
  %v187 = vld [vmem:[%s0 + $0x4e8] sm:$0xff]
  %v188 = vld [vmem:[%s0 + $0x4f0] sm:$0xff]
  %v189 = vld [vmem:[%s0 + $0x4f8] sm:$0xff]
  %v190 = vld [vmem:[%s0 + $0x500] sm:$0xff]
  %v191 = vld [vmem:[%s0 + $0x508] sm:$0xff]
  %v192 = vld [vmem:[%s0 + $0x510] sm:$0xff]
  %v193 = vld [vmem:[%s0 + $0x518] sm:$0xff]
  %v194 = vld [vmem:[%s0 + $0x520] sm:$0xff]
  %v195 = vld [vmem:[%s0 + $0x528] sm:$0xff]
  %v196 = vld [vmem:[%s0 + $0x530] sm:$0xff]
  %v197 = vld [vmem:[%s0 + $0x538] sm:$0xff]
  %v198 = vld [vmem:[%s0 + $0x540] sm:$0xff]
  %v199 = vld [vmem:[%s0 + $0x548] sm:$0xff]
  %v200 = vld [vmem:[%s0 + $0x550] sm:$0xff]
  %v201 = vld [vmem:[%s0 + $0x558] sm:$0xff]
  %v202 = vld [vmem:[%s0 + $0x560] sm:$0xff]
  %v203 = vld [vmem:[%s0 + $0x568] sm:$0xff]
  %v204 = vld [vmem:[%s0 + $0x570] sm:$0xff]
  %v205 = vld [vmem:[%s0 + $0x578] sm:$0xff]
  %v206 = vld [vmem:[%s0 + $0x580] sm:$0xff]
  %v207 = vld [vmem:[%s0 + $0x588] sm:$0xff]
  %v208 = vld [vmem:[%s0 + $0x590] sm:$0xff]
  %v209 = vld [vmem:[%s0 + $0x598] sm:$0xff]
  %v210 = vld [vmem:[%s0 + $0x5a0] sm:$0xff]
  %v211 = vld [vmem:[%s0 + $0x5a8] sm:$0xff]
  %v212 = vld [vmem:[%s0 + $0x5b0] sm:$0xff]
  %v213 = vld [vmem:[%s0 + $0x5b8] sm:$0xff]
  %v214 = vld [vmem:[%s0 + $0x5c0] sm:$0xff]
  %v215 = vld [vmem:[%s0 + $0x5c8] sm:$0xff]
  %v216 = vld [vmem:[%s0 + $0x5d0] sm:$0xff]
  %v217 = vld [vmem:[%s0 + $0x5d8] sm:$0xff]
  %v218 = vld [vmem:[%s0 + $0x5e0] sm:$0xff]
  %v219 = vld [vmem:[%s0 + $0x5e8] sm:$0xff]
  %v220 = vld [vmem:[%s0 + $0x5f0] sm:$0xff]
  %v221 = vld [vmem:[%s0 + $0x5f8] sm:$0xff]
  %v222 = vld [vmem:[%s0 + $0x600] sm:$0xff]
  %v223 = vld [vmem:[%s0 + $0x608] sm:$0xff]
  %v224 = vld [vmem:[%s0 + $0x610] sm:$0xff]
  %v225 = vld [vmem:[%s0 + $0x618] sm:$0xff]
  %227 = vset.pattern.permute.xlu0 0
  %228 = vperm.xlu0 %227, %v30
  %v229 = vpop.permute.xlu0 %228
  %232 = vset.pattern.permute.xlu0 0
  %233 = vperm.xlu0 %232, %v31
  %v234 = vpop.permute.xlu0 %233
  %237 = vset.pattern.permute.xlu0 0
  %238 = vperm.xlu0 %237, %v32
  %v239 = vpop.permute.xlu0 %238
  %242 = vset.pattern.permute.xlu0 0
  %243 = vperm.xlu0 %242, %v33
  %v244 = vpop.permute.xlu0 %243
  %247 = vset.pattern.permute.xlu0 0
  %248 = vperm.xlu0 %247, %v34
  %v249 = vpop.permute.xlu0 %248
  %252 = vset.pattern.permute.xlu0 0
  %253 = vperm.xlu0 %252, %v35
  %v254 = vpop.permute.xlu0 %253
  %257 = vset.pattern.permute.xlu0 0
  %258 = vperm.xlu0 %257, %v36
  %v259 = vpop.permute.xlu0 %258
  %262 = vset.pattern.permute.xlu0 0
  %263 = vperm.xlu0 %262, %v37
  %v264 = vpop.permute.xlu0 %263
  %267 = vset.pattern.permute.xlu0 0
  %268 = vperm.xlu0 %267, %v38
  %v269 = vpop.permute.xlu0 %268
  %272 = vset.pattern.permute.xlu0 0
  %273 = vperm.xlu0 %272, %v39
  %v274 = vpop.permute.xlu0 %273
  %277 = vset.pattern.permute.xlu0 0
  %278 = vperm.xlu0 %277, %v40
  %v279 = vpop.permute.xlu0 %278
  %282 = vset.pattern.permute.xlu0 0
  %283 = vperm.xlu0 %282, %v41
  %v284 = vpop.permute.xlu0 %283
  %287 = vset.pattern.permute.xlu0 0
  %288 = vperm.xlu0 %287, %v44
  %v289 = vpop.permute.xlu0 %288
  %292 = vset.pattern.permute.xlu0 0
  %293 = vperm.xlu0 %292, %v45
  %v294 = vpop.permute.xlu0 %293
  %297 = vset.pattern.permute.xlu0 0
  %298 = vperm.xlu0 %297, %v46
  %v299 = vpop.permute.xlu0 %298
  %302 = vset.pattern.permute.xlu0 0
  %303 = vperm.xlu0 %302, %v47
  %v304 = vpop.permute.xlu0 %303
  %307 = vset.pattern.permute.xlu0 0
  %308 = vperm.xlu0 %307, %v48
  %v309 = vpop.permute.xlu0 %308
  %312 = vset.pattern.permute.xlu0 0
  %313 = vperm.xlu0 %312, %v49
  %v314 = vpop.permute.xlu0 %313
  %317 = vset.pattern.permute.xlu0 0
  %318 = vperm.xlu0 %317, %v50
  %v319 = vpop.permute.xlu0 %318
  %322 = vset.pattern.permute.xlu0 0
  %323 = vperm.xlu0 %322, %v51
  %v324 = vpop.permute.xlu0 %323
  %327 = vset.pattern.permute.xlu0 0
  %328 = vperm.xlu0 %327, %v52
  %v329 = vpop.permute.xlu0 %328
  %332 = vset.pattern.permute.xlu0 0
  %333 = vperm.xlu0 %332, %v53
  %v334 = vpop.permute.xlu0 %333
  %337 = vset.pattern.permute.xlu0 0
  %338 = vperm.xlu0 %337, %v54
  %v339 = vpop.permute.xlu0 %338
  %342 = vset.pattern.permute.xlu0 0
  %343 = vperm.xlu0 %342, %v55
  %v344 = vpop.permute.xlu0 %343
  %347 = vset.pattern.permute.xlu0 0
  %348 = vperm.xlu0 %347, %v58
  %v349 = vpop.permute.xlu0 %348
  %352 = vset.pattern.permute.xlu0 0
  %353 = vperm.xlu0 %352, %v59
  %v354 = vpop.permute.xlu0 %353
  %357 = vset.pattern.permute.xlu0 0
  %358 = vperm.xlu0 %357, %v60
  %v359 = vpop.permute.xlu0 %358
  %362 = vset.pattern.permute.xlu0 0
  %363 = vperm.xlu0 %362, %v61
  %v364 = vpop.permute.xlu0 %363
  %367 = vset.pattern.permute.xlu0 0
  %368 = vperm.xlu0 %367, %v62
  %v369 = vpop.permute.xlu0 %368
  %372 = vset.pattern.permute.xlu0 0
  %373 = vperm.xlu0 %372, %v63
  %v374 = vpop.permute.xlu0 %373
  %377 = vset.pattern.permute.xlu0 0
  %378 = vperm.xlu0 %377, %v64
  %v379 = vpop.permute.xlu0 %378
  %382 = vset.pattern.permute.xlu0 0
  %383 = vperm.xlu0 %382, %v65
  %v384 = vpop.permute.xlu0 %383
  %387 = vset.pattern.permute.xlu0 0
  %388 = vperm.xlu0 %387, %v66
  %v389 = vpop.permute.xlu0 %388
  %392 = vset.pattern.permute.xlu0 0
  %393 = vperm.xlu0 %392, %v67
  %v394 = vpop.permute.xlu0 %393
  %397 = vset.pattern.permute.xlu0 0
  %398 = vperm.xlu0 %397, %v68
  %v399 = vpop.permute.xlu0 %398
  %402 = vset.pattern.permute.xlu0 0
  %403 = vperm.xlu0 %402, %v69
  %v404 = vpop.permute.xlu0 %403
  %407 = vset.pattern.permute.xlu0 0
  %408 = vperm.xlu0 %407, %v72
  %v409 = vpop.permute.xlu0 %408
  %412 = vset.pattern.permute.xlu0 0
  %413 = vperm.xlu0 %412, %v73
  %v414 = vpop.permute.xlu0 %413
  %417 = vset.pattern.permute.xlu0 0
  %418 = vperm.xlu0 %417, %v74
  %v419 = vpop.permute.xlu0 %418
  %422 = vset.pattern.permute.xlu0 0
  %423 = vperm.xlu0 %422, %v75
  %v424 = vpop.permute.xlu0 %423
  %427 = vset.pattern.permute.xlu0 0
  %428 = vperm.xlu0 %427, %v76
  %v429 = vpop.permute.xlu0 %428
  %432 = vset.pattern.permute.xlu0 0
  %433 = vperm.xlu0 %432, %v77
  %v434 = vpop.permute.xlu0 %433
  %437 = vset.pattern.permute.xlu0 0
  %438 = vperm.xlu0 %437, %v78
  %v439 = vpop.permute.xlu0 %438
  %442 = vset.pattern.permute.xlu0 0
  %443 = vperm.xlu0 %442, %v79
  %v444 = vpop.permute.xlu0 %443
  %447 = vset.pattern.permute.xlu0 0
  %448 = vperm.xlu0 %447, %v80
  %v449 = vpop.permute.xlu0 %448
  %452 = vset.pattern.permute.xlu0 0
  %453 = vperm.xlu0 %452, %v81
  %v454 = vpop.permute.xlu0 %453
  %457 = vset.pattern.permute.xlu0 0
  %458 = vperm.xlu0 %457, %v82
  %v459 = vpop.permute.xlu0 %458
  %462 = vset.pattern.permute.xlu0 0
  %463 = vperm.xlu0 %462, %v83
  %v464 = vpop.permute.xlu0 %463
  %467 = vset.pattern.permute.xlu0 0
  %468 = vperm.xlu0 %467, %v86
  %v469 = vpop.permute.xlu0 %468
  %472 = vset.pattern.permute.xlu0 0
  %473 = vperm.xlu0 %472, %v87
  %v474 = vpop.permute.xlu0 %473
  %477 = vset.pattern.permute.xlu0 0
  %478 = vperm.xlu0 %477, %v88
  %v479 = vpop.permute.xlu0 %478
  %482 = vset.pattern.permute.xlu0 0
  %483 = vperm.xlu0 %482, %v89
  %v484 = vpop.permute.xlu0 %483
  %487 = vset.pattern.permute.xlu0 0
  %488 = vperm.xlu0 %487, %v90
  %v489 = vpop.permute.xlu0 %488
  %492 = vset.pattern.permute.xlu0 0
  %493 = vperm.xlu0 %492, %v91
  %v494 = vpop.permute.xlu0 %493
  %497 = vset.pattern.permute.xlu0 0
  %498 = vperm.xlu0 %497, %v92
  %v499 = vpop.permute.xlu0 %498
  %502 = vset.pattern.permute.xlu0 0
  %503 = vperm.xlu0 %502, %v93
  %v504 = vpop.permute.xlu0 %503
  %507 = vset.pattern.permute.xlu0 0
  %508 = vperm.xlu0 %507, %v94
  %v509 = vpop.permute.xlu0 %508
  %512 = vset.pattern.permute.xlu0 0
  %513 = vperm.xlu0 %512, %v95
  %v514 = vpop.permute.xlu0 %513
  %517 = vset.pattern.permute.xlu0 0
  %518 = vperm.xlu0 %517, %v96
  %v519 = vpop.permute.xlu0 %518
  %522 = vset.pattern.permute.xlu0 0
  %523 = vperm.xlu0 %522, %v97
  %v524 = vpop.permute.xlu0 %523
  %527 = vset.pattern.permute.xlu0 0
  %528 = vperm.xlu0 %527, %v100
  %v529 = vpop.permute.xlu0 %528
  %532 = vset.pattern.permute.xlu0 0
  %533 = vperm.xlu0 %532, %v101
  %v534 = vpop.permute.xlu0 %533
  %537 = vset.pattern.permute.xlu0 0
  %538 = vperm.xlu0 %537, %v102
  %v539 = vpop.permute.xlu0 %538
  %542 = vset.pattern.permute.xlu0 0
  %543 = vperm.xlu0 %542, %v103
  %v544 = vpop.permute.xlu0 %543
  %547 = vset.pattern.permute.xlu0 0
  %548 = vperm.xlu0 %547, %v104
  %v549 = vpop.permute.xlu0 %548
  %552 = vset.pattern.permute.xlu0 0
  %553 = vperm.xlu0 %552, %v105
  %v554 = vpop.permute.xlu0 %553
  %557 = vset.pattern.permute.xlu0 0
  %558 = vperm.xlu0 %557, %v106
  %v559 = vpop.permute.xlu0 %558
  %562 = vset.pattern.permute.xlu0 0
  %563 = vperm.xlu0 %562, %v107
  %v564 = vpop.permute.xlu0 %563
  %567 = vset.pattern.permute.xlu0 0
  %568 = vperm.xlu0 %567, %v108
  %v569 = vpop.permute.xlu0 %568
  %572 = vset.pattern.permute.xlu0 0
  %573 = vperm.xlu0 %572, %v109
  %v574 = vpop.permute.xlu0 %573
  %577 = vset.pattern.permute.xlu0 0
  %578 = vperm.xlu0 %577, %v110
  %v579 = vpop.permute.xlu0 %578
  %582 = vset.pattern.permute.xlu0 0
  %583 = vperm.xlu0 %582, %v111
  %v584 = vpop.permute.xlu0 %583
  %587 = vset.pattern.permute.xlu0 0
  %588 = vperm.xlu0 %587, %v114
  %v589 = vpop.permute.xlu0 %588
  %592 = vset.pattern.permute.xlu0 0
  %593 = vperm.xlu0 %592, %v115
  %v594 = vpop.permute.xlu0 %593
  %597 = vset.pattern.permute.xlu0 0
  %598 = vperm.xlu0 %597, %v116
  %v599 = vpop.permute.xlu0 %598
  %602 = vset.pattern.permute.xlu0 0
  %603 = vperm.xlu0 %602, %v117
  %v604 = vpop.permute.xlu0 %603
  %607 = vset.pattern.permute.xlu0 0
  %608 = vperm.xlu0 %607, %v118
  %v609 = vpop.permute.xlu0 %608
  %612 = vset.pattern.permute.xlu0 0
  %613 = vperm.xlu0 %612, %v119
  %v614 = vpop.permute.xlu0 %613
  %617 = vset.pattern.permute.xlu0 0
  %618 = vperm.xlu0 %617, %v120
  %v619 = vpop.permute.xlu0 %618
  %622 = vset.pattern.permute.xlu0 0
  %623 = vperm.xlu0 %622, %v121
  %v624 = vpop.permute.xlu0 %623
  %627 = vset.pattern.permute.xlu0 0
  %628 = vperm.xlu0 %627, %v122
  %v629 = vpop.permute.xlu0 %628
  %632 = vset.pattern.permute.xlu0 0
  %633 = vperm.xlu0 %632, %v123
  %v634 = vpop.permute.xlu0 %633
  %637 = vset.pattern.permute.xlu0 0
  %638 = vperm.xlu0 %637, %v124
  %v639 = vpop.permute.xlu0 %638
  %642 = vset.pattern.permute.xlu0 0
  %643 = vperm.xlu0 %642, %v125
  %v644 = vpop.permute.xlu0 %643
  %647 = vset.pattern.permute.xlu0 0
  %648 = vperm.xlu0 %647, %v128
  %v649 = vpop.permute.xlu0 %648
  %652 = vset.pattern.permute.xlu0 0
  %653 = vperm.xlu0 %652, %v129
  %v654 = vpop.permute.xlu0 %653
  %657 = vset.pattern.permute.xlu0 0
  %658 = vperm.xlu0 %657, %v130
  %v659 = vpop.permute.xlu0 %658
  %662 = vset.pattern.permute.xlu0 0
  %663 = vperm.xlu0 %662, %v131
  %v664 = vpop.permute.xlu0 %663
  %667 = vset.pattern.permute.xlu0 0
  %668 = vperm.xlu0 %667, %v132
  %v669 = vpop.permute.xlu0 %668
  %672 = vset.pattern.permute.xlu0 0
  %673 = vperm.xlu0 %672, %v133
  %v674 = vpop.permute.xlu0 %673
  %677 = vset.pattern.permute.xlu0 0
  %678 = vperm.xlu0 %677, %v134
  %v679 = vpop.permute.xlu0 %678
  %682 = vset.pattern.permute.xlu0 0
  %683 = vperm.xlu0 %682, %v135
  %v684 = vpop.permute.xlu0 %683
  %687 = vset.pattern.permute.xlu0 0
  %688 = vperm.xlu0 %687, %v136
  %v689 = vpop.permute.xlu0 %688
  %692 = vset.pattern.permute.xlu0 0
  %693 = vperm.xlu0 %692, %v137
  %v694 = vpop.permute.xlu0 %693
  %697 = vset.pattern.permute.xlu0 0
  %698 = vperm.xlu0 %697, %v138
  %v699 = vpop.permute.xlu0 %698
  %702 = vset.pattern.permute.xlu0 0
  %703 = vperm.xlu0 %702, %v139
  %v704 = vpop.permute.xlu0 %703
  %707 = vset.pattern.permute.xlu0 0
  %708 = vperm.xlu0 %707, %v142
  %v709 = vpop.permute.xlu0 %708
  %712 = vset.pattern.permute.xlu0 0
  %713 = vperm.xlu0 %712, %v143
  %v714 = vpop.permute.xlu0 %713
  %717 = vset.pattern.permute.xlu0 0
  %718 = vperm.xlu0 %717, %v144
  %v719 = vpop.permute.xlu0 %718
  %722 = vset.pattern.permute.xlu0 0
  %723 = vperm.xlu0 %722, %v145
  %v724 = vpop.permute.xlu0 %723
  %727 = vset.pattern.permute.xlu0 0
  %728 = vperm.xlu0 %727, %v146
  %v729 = vpop.permute.xlu0 %728
  %732 = vset.pattern.permute.xlu0 0
  %733 = vperm.xlu0 %732, %v147
  %v734 = vpop.permute.xlu0 %733
  %737 = vset.pattern.permute.xlu0 0
  %738 = vperm.xlu0 %737, %v148
  %v739 = vpop.permute.xlu0 %738
  %742 = vset.pattern.permute.xlu0 0
  %743 = vperm.xlu0 %742, %v149
  %v744 = vpop.permute.xlu0 %743
  %747 = vset.pattern.permute.xlu0 0
  %748 = vperm.xlu0 %747, %v150
  %v749 = vpop.permute.xlu0 %748
  %752 = vset.pattern.permute.xlu0 0
  %753 = vperm.xlu0 %752, %v151
  %v754 = vpop.permute.xlu0 %753
  %757 = vset.pattern.permute.xlu0 0
  %758 = vperm.xlu0 %757, %v152
  %v759 = vpop.permute.xlu0 %758
  %762 = vset.pattern.permute.xlu0 0
  %763 = vperm.xlu0 %762, %v153
  %v764 = vpop.permute.xlu0 %763
  %767 = vset.pattern.permute.xlu0 0
  %768 = vperm.xlu0 %767, %v156
  %v769 = vpop.permute.xlu0 %768
  %772 = vset.pattern.permute.xlu0 0
  %773 = vperm.xlu0 %772, %v157
  %v774 = vpop.permute.xlu0 %773
  %777 = vset.pattern.permute.xlu0 0
  %778 = vperm.xlu0 %777, %v158
  %v779 = vpop.permute.xlu0 %778
  %782 = vset.pattern.permute.xlu0 0
  %783 = vperm.xlu0 %782, %v159
  %v784 = vpop.permute.xlu0 %783
  %787 = vset.pattern.permute.xlu0 0
  %788 = vperm.xlu0 %787, %v160
  %v789 = vpop.permute.xlu0 %788
  %792 = vset.pattern.permute.xlu0 0
  %793 = vperm.xlu0 %792, %v161
  %v794 = vpop.permute.xlu0 %793
  %797 = vset.pattern.permute.xlu0 0
  %798 = vperm.xlu0 %797, %v162
  %v799 = vpop.permute.xlu0 %798
  %802 = vset.pattern.permute.xlu0 0
  %803 = vperm.xlu0 %802, %v163
  %v804 = vpop.permute.xlu0 %803
  %807 = vset.pattern.permute.xlu0 0
  %808 = vperm.xlu0 %807, %v164
  %v809 = vpop.permute.xlu0 %808
  %812 = vset.pattern.permute.xlu0 0
  %813 = vperm.xlu0 %812, %v165
  %v814 = vpop.permute.xlu0 %813
  %817 = vset.pattern.permute.xlu0 0
  %818 = vperm.xlu0 %817, %v166
  %v819 = vpop.permute.xlu0 %818
  %822 = vset.pattern.permute.xlu0 0
  %823 = vperm.xlu0 %822, %v167
  %v824 = vpop.permute.xlu0 %823
  %827 = vset.pattern.permute.xlu0 0
  %828 = vperm.xlu0 %827, %v170
  %v829 = vpop.permute.xlu0 %828
  %832 = vset.pattern.permute.xlu0 0
  %833 = vperm.xlu0 %832, %v171
  %v834 = vpop.permute.xlu0 %833
  %837 = vset.pattern.permute.xlu0 0
  %838 = vperm.xlu0 %837, %v172
  %v839 = vpop.permute.xlu0 %838
  %842 = vset.pattern.permute.xlu0 0
  %843 = vperm.xlu0 %842, %v173
  %v844 = vpop.permute.xlu0 %843
  %847 = vset.pattern.permute.xlu0 0
  %848 = vperm.xlu0 %847, %v174
  %v849 = vpop.permute.xlu0 %848
  %852 = vset.pattern.permute.xlu0 0
  %853 = vperm.xlu0 %852, %v175
  %v854 = vpop.permute.xlu0 %853
  %857 = vset.pattern.permute.xlu0 0
  %858 = vperm.xlu0 %857, %v176
  %v859 = vpop.permute.xlu0 %858
  %862 = vset.pattern.permute.xlu0 0
  %863 = vperm.xlu0 %862, %v177
  %v864 = vpop.permute.xlu0 %863
  %867 = vset.pattern.permute.xlu0 0
  %868 = vperm.xlu0 %867, %v178
  %v869 = vpop.permute.xlu0 %868
  %872 = vset.pattern.permute.xlu0 0
  %873 = vperm.xlu0 %872, %v179
  %v874 = vpop.permute.xlu0 %873
  %877 = vset.pattern.permute.xlu0 0
  %878 = vperm.xlu0 %877, %v180
  %v879 = vpop.permute.xlu0 %878
  %882 = vset.pattern.permute.xlu0 0
  %883 = vperm.xlu0 %882, %v181
  %v884 = vpop.permute.xlu0 %883
  %887 = vset.pattern.permute.xlu0 0
  %888 = vperm.xlu0 %887, %v184
  %v889 = vpop.permute.xlu0 %888
  %892 = vset.pattern.permute.xlu0 0
  %893 = vperm.xlu0 %892, %v185
  %v894 = vpop.permute.xlu0 %893
  %897 = vset.pattern.permute.xlu0 0
  %898 = vperm.xlu0 %897, %v186
  %v899 = vpop.permute.xlu0 %898
  %902 = vset.pattern.permute.xlu0 0
  %903 = vperm.xlu0 %902, %v187
  %v904 = vpop.permute.xlu0 %903
  %907 = vset.pattern.permute.xlu0 0
  %908 = vperm.xlu0 %907, %v188
  %v909 = vpop.permute.xlu0 %908
  %912 = vset.pattern.permute.xlu0 0
  %913 = vperm.xlu0 %912, %v189
  %v914 = vpop.permute.xlu0 %913
  %917 = vset.pattern.permute.xlu0 0
  %918 = vperm.xlu0 %917, %v190
  %v919 = vpop.permute.xlu0 %918
  %922 = vset.pattern.permute.xlu0 0
  %923 = vperm.xlu0 %922, %v191
  %v924 = vpop.permute.xlu0 %923
  %927 = vset.pattern.permute.xlu0 0
  %928 = vperm.xlu0 %927, %v192
  %v929 = vpop.permute.xlu0 %928
  %932 = vset.pattern.permute.xlu0 0
  %933 = vperm.xlu0 %932, %v193
  %v934 = vpop.permute.xlu0 %933
  %937 = vset.pattern.permute.xlu0 0
  %938 = vperm.xlu0 %937, %v194
  %v939 = vpop.permute.xlu0 %938
  %942 = vset.pattern.permute.xlu0 0
  %943 = vperm.xlu0 %942, %v195
  %v944 = vpop.permute.xlu0 %943
  %v946 = vlaneseq
  %v947 = vshrl.u32 %v946, 7
  %v948 = vsub.s32 0, %v947
  %v949 = vrot.slane %v26, %v948
  %v950 = vmul.f32 %v229, %v949
  %v951 = vmul.f32 %v234, %v949
  %v952 = vmul.f32 %v239, %v949
  %v953 = vmul.f32 %v244, %v949
  %v954 = vmul.f32 %v249, %v949
  %v955 = vmul.f32 %v254, %v949
  %v956 = vmul.f32 %v259, %v949
  %v957 = vmul.f32 %v264, %v949
  %v958 = vmul.f32 %v269, %v949
  %v959 = vmul.f32 %v274, %v949
  %v960 = vmul.f32 %v279, %v949
  %v961 = vmul.f32 %v284, %v949
  %v962 = vmul.f32 %v289, %v949
  %v963 = vmul.f32 %v294, %v949
  %v964 = vmul.f32 %v299, %v949
  %v965 = vmul.f32 %v304, %v949
  %v966 = vmul.f32 %v309, %v949
  %v967 = vmul.f32 %v314, %v949
  %v968 = vmul.f32 %v319, %v949
  %v969 = vmul.f32 %v324, %v949
  %v970 = vmul.f32 %v329, %v949
  %v971 = vmul.f32 %v334, %v949
  %v972 = vmul.f32 %v339, %v949
  %v973 = vmul.f32 %v344, %v949
  %v974 = vmul.f32 %v349, %v949
  %v975 = vmul.f32 %v354, %v949
  %v976 = vmul.f32 %v359, %v949
  %v977 = vmul.f32 %v364, %v949
  %v978 = vmul.f32 %v369, %v949
  %v979 = vmul.f32 %v374, %v949
  %v980 = vmul.f32 %v379, %v949
  %v981 = vmul.f32 %v384, %v949
  %v982 = vmul.f32 %v389, %v949
  %v983 = vmul.f32 %v394, %v949
  %v984 = vmul.f32 %v399, %v949
  %v985 = vmul.f32 %v404, %v949
  %v986 = vmul.f32 %v409, %v949
  %v987 = vmul.f32 %v414, %v949
  %v988 = vmul.f32 %v419, %v949
  %v989 = vmul.f32 %v424, %v949
  %v990 = vmul.f32 %v429, %v949
  %v991 = vmul.f32 %v434, %v949
  %v992 = vmul.f32 %v439, %v949
  %v993 = vmul.f32 %v444, %v949
  %v994 = vmul.f32 %v449, %v949
  %v995 = vmul.f32 %v454, %v949
  %v996 = vmul.f32 %v459, %v949
  %v997 = vmul.f32 %v464, %v949
  %v998 = vmul.f32 %v469, %v949
  %v999 = vmul.f32 %v474, %v949
  %v1000 = vmul.f32 %v479, %v949
  %v1001 = vmul.f32 %v484, %v949
  %v1002 = vmul.f32 %v489, %v949
  %v1003 = vmul.f32 %v494, %v949
  %v1004 = vmul.f32 %v499, %v949
  %v1005 = vmul.f32 %v504, %v949
  %v1006 = vmul.f32 %v509, %v949
  %v1007 = vmul.f32 %v514, %v949
  %v1008 = vmul.f32 %v519, %v949
  %v1009 = vmul.f32 %v524, %v949
  %v1010 = vmul.f32 %v529, %v949
  %v1011 = vmul.f32 %v534, %v949
  %v1012 = vmul.f32 %v539, %v949
  %v1013 = vmul.f32 %v544, %v949
  %v1014 = vmul.f32 %v549, %v949
  %v1015 = vmul.f32 %v554, %v949
  %v1016 = vmul.f32 %v559, %v949
  %v1017 = vmul.f32 %v564, %v949
  %v1018 = vmul.f32 %v569, %v949
  %v1019 = vmul.f32 %v574, %v949
  %v1020 = vmul.f32 %v579, %v949
  %v1021 = vmul.f32 %v584, %v949
  %v1022 = vmul.f32 %v589, %v949
  %v1023 = vmul.f32 %v594, %v949
  %v1024 = vmul.f32 %v599, %v949
  %v1025 = vmul.f32 %v604, %v949
  %v1026 = vmul.f32 %v609, %v949
  %v1027 = vmul.f32 %v614, %v949
  %v1028 = vmul.f32 %v619, %v949
  %v1029 = vmul.f32 %v624, %v949
  %v1030 = vmul.f32 %v629, %v949
  %v1031 = vmul.f32 %v634, %v949
  %v1032 = vmul.f32 %v639, %v949
  %v1033 = vmul.f32 %v644, %v949
  %v1034 = vmul.f32 %v649, %v949
  %v1035 = vmul.f32 %v654, %v949
  %v1036 = vmul.f32 %v659, %v949
  %v1037 = vmul.f32 %v664, %v949
  %v1038 = vmul.f32 %v669, %v949
  %v1039 = vmul.f32 %v674, %v949
  %v1040 = vmul.f32 %v679, %v949
  %v1041 = vmul.f32 %v684, %v949
  %v1042 = vmul.f32 %v689, %v949
  %v1043 = vmul.f32 %v694, %v949
  %v1044 = vmul.f32 %v699, %v949
  %v1045 = vmul.f32 %v704, %v949
  %v1046 = vmul.f32 %v709, %v949
  %v1047 = vmul.f32 %v714, %v949
  %v1048 = vmul.f32 %v719, %v949
  %v1049 = vmul.f32 %v724, %v949
  %v1050 = vmul.f32 %v729, %v949
  %v1051 = vmul.f32 %v734, %v949
  %v1052 = vmul.f32 %v739, %v949
  %v1053 = vmul.f32 %v744, %v949
  %v1054 = vmul.f32 %v749, %v949
  %v1055 = vmul.f32 %v754, %v949
  %v1056 = vmul.f32 %v759, %v949
  %v1057 = vmul.f32 %v764, %v949
  %v1058 = vmul.f32 %v769, %v949
  %v1059 = vmul.f32 %v774, %v949
  %v1060 = vmul.f32 %v779, %v949
  %v1061 = vmul.f32 %v784, %v949
  %v1062 = vmul.f32 %v789, %v949
  %v1063 = vmul.f32 %v794, %v949
  %v1064 = vmul.f32 %v799, %v949
  %v1065 = vmul.f32 %v804, %v949
  %v1066 = vmul.f32 %v809, %v949
  %v1067 = vmul.f32 %v814, %v949
  %v1068 = vmul.f32 %v819, %v949
  %v1069 = vmul.f32 %v824, %v949
  %v1070 = vmul.f32 %v829, %v949
  %v1071 = vmul.f32 %v834, %v949
  %v1072 = vmul.f32 %v839, %v949
  %v1073 = vmul.f32 %v844, %v949
  %v1074 = vmul.f32 %v849, %v949
  %v1075 = vmul.f32 %v854, %v949
  %v1076 = vmul.f32 %v859, %v949
  %v1077 = vmul.f32 %v864, %v949
  %v1078 = vmul.f32 %v869, %v949
  %v1079 = vmul.f32 %v874, %v949
  %v1080 = vmul.f32 %v879, %v949
  %v1081 = vmul.f32 %v884, %v949
  %v1082 = vmul.f32 %v889, %v949
  %v1083 = vmul.f32 %v894, %v949
  %v1084 = vmul.f32 %v899, %v949
  %v1085 = vmul.f32 %v904, %v949
  %v1086 = vmul.f32 %v909, %v949
  %v1087 = vmul.f32 %v914, %v949
  %v1088 = vmul.f32 %v919, %v949
  %v1089 = vmul.f32 %v924, %v949
  %v1090 = vmul.f32 %v929, %v949
  %v1091 = vmul.f32 %v934, %v949
  %v1092 = vmul.f32 %v939, %v949
  %v1093 = vmul.f32 %v944, %v949
  %1095 = vset.pattern.permute.xlu0 0
  %1096 = vperm.xlu0 %1095, %v42
  %v1097 = vpop.permute.xlu0 %1096
  %1100 = vset.pattern.permute.xlu0 0
  %1101 = vperm.xlu0 %1100, %v56
  %v1102 = vpop.permute.xlu0 %1101
  %1105 = vset.pattern.permute.xlu0 0
  %1106 = vperm.xlu0 %1105, %v70
  %v1107 = vpop.permute.xlu0 %1106
  %1110 = vset.pattern.permute.xlu0 0
  %1111 = vperm.xlu0 %1110, %v84
  %v1112 = vpop.permute.xlu0 %1111
  %1115 = vset.pattern.permute.xlu0 0
  %1116 = vperm.xlu0 %1115, %v98
  %v1117 = vpop.permute.xlu0 %1116
  %1120 = vset.pattern.permute.xlu0 0
  %1121 = vperm.xlu0 %1120, %v112
  %v1122 = vpop.permute.xlu0 %1121
  %1125 = vset.pattern.permute.xlu0 0
  %1126 = vperm.xlu0 %1125, %v126
  %v1127 = vpop.permute.xlu0 %1126
  %1130 = vset.pattern.permute.xlu0 0
  %1131 = vperm.xlu0 %1130, %v140
  %v1132 = vpop.permute.xlu0 %1131
  %1135 = vset.pattern.permute.xlu0 0
  %1136 = vperm.xlu0 %1135, %v154
  %v1137 = vpop.permute.xlu0 %1136
  %1140 = vset.pattern.permute.xlu0 0
  %1141 = vperm.xlu0 %1140, %v168
  %v1142 = vpop.permute.xlu0 %1141
  %1145 = vset.pattern.permute.xlu0 0
  %1146 = vperm.xlu0 %1145, %v182
  %v1147 = vpop.permute.xlu0 %1146
  %1150 = vset.pattern.permute.xlu0 0
  %1151 = vperm.xlu0 %1150, %v196
  %v1152 = vpop.permute.xlu0 %1151
  %v1154 = vlaneseq
  %v1155 = vshrl.u32 %v1154, 7
  %v1156 = vsub.s32 1, %v1155
  %v1157 = vrot.slane %v26, %v1156
  %v1158 = vmul.f32 %v234, %v1157
  %v1159 = vmul.f32 %v239, %v1157
  %v1160 = vmul.f32 %v244, %v1157
  %v1161 = vmul.f32 %v249, %v1157
  %v1162 = vmul.f32 %v254, %v1157
  %v1163 = vmul.f32 %v259, %v1157
  %v1164 = vmul.f32 %v264, %v1157
  %v1165 = vmul.f32 %v269, %v1157
  %v1166 = vmul.f32 %v274, %v1157
  %v1167 = vmul.f32 %v279, %v1157
  %v1168 = vmul.f32 %v284, %v1157
  %v1169 = vmul.f32 %v1097, %v1157
  %v1170 = vmul.f32 %v294, %v1157
  %v1171 = vmul.f32 %v299, %v1157
  %v1172 = vmul.f32 %v304, %v1157
  %v1173 = vmul.f32 %v309, %v1157
  %v1174 = vmul.f32 %v314, %v1157
  %v1175 = vmul.f32 %v319, %v1157
  %v1176 = vmul.f32 %v324, %v1157
  %v1177 = vmul.f32 %v329, %v1157
  %v1178 = vmul.f32 %v334, %v1157
  %v1179 = vmul.f32 %v339, %v1157
  %v1180 = vmul.f32 %v344, %v1157
  %v1181 = vmul.f32 %v1102, %v1157
  %v1182 = vmul.f32 %v354, %v1157
  %v1183 = vmul.f32 %v359, %v1157
  %v1184 = vmul.f32 %v364, %v1157
  %v1185 = vmul.f32 %v369, %v1157
  %v1186 = vmul.f32 %v374, %v1157
  %v1187 = vmul.f32 %v379, %v1157
  %v1188 = vmul.f32 %v384, %v1157
  %v1189 = vmul.f32 %v389, %v1157
  %v1190 = vmul.f32 %v394, %v1157
  %v1191 = vmul.f32 %v399, %v1157
  %v1192 = vmul.f32 %v404, %v1157
  %v1193 = vmul.f32 %v1107, %v1157
  %v1194 = vmul.f32 %v414, %v1157
  %v1195 = vmul.f32 %v419, %v1157
  %v1196 = vmul.f32 %v424, %v1157
  %v1197 = vmul.f32 %v429, %v1157
  %v1198 = vmul.f32 %v434, %v1157
  %v1199 = vmul.f32 %v439, %v1157
  %v1200 = vmul.f32 %v444, %v1157
  %v1201 = vmul.f32 %v449, %v1157
  %v1202 = vmul.f32 %v454, %v1157
  %v1203 = vmul.f32 %v459, %v1157
  %v1204 = vmul.f32 %v464, %v1157
  %v1205 = vmul.f32 %v1112, %v1157
  %v1206 = vmul.f32 %v474, %v1157
  %v1207 = vmul.f32 %v479, %v1157
  %v1208 = vmul.f32 %v484, %v1157
  %v1209 = vmul.f32 %v489, %v1157
  %v1210 = vmul.f32 %v494, %v1157
  %v1211 = vmul.f32 %v499, %v1157
  %v1212 = vmul.f32 %v504, %v1157
  %v1213 = vmul.f32 %v509, %v1157
  %v1214 = vmul.f32 %v514, %v1157
  %v1215 = vmul.f32 %v519, %v1157
  %v1216 = vmul.f32 %v524, %v1157
  %v1217 = vmul.f32 %v1117, %v1157
  %v1218 = vmul.f32 %v534, %v1157
  %v1219 = vmul.f32 %v539, %v1157
  %v1220 = vmul.f32 %v544, %v1157
  %v1221 = vmul.f32 %v549, %v1157
  %v1222 = vmul.f32 %v554, %v1157
  %v1223 = vmul.f32 %v559, %v1157
  %v1224 = vmul.f32 %v564, %v1157
  %v1225 = vmul.f32 %v569, %v1157
  %v1226 = vmul.f32 %v574, %v1157
  %v1227 = vmul.f32 %v579, %v1157
  %v1228 = vmul.f32 %v584, %v1157
  %v1229 = vmul.f32 %v1122, %v1157
  %v1230 = vmul.f32 %v594, %v1157
  %v1231 = vmul.f32 %v599, %v1157
  %v1232 = vmul.f32 %v604, %v1157
  %v1233 = vmul.f32 %v609, %v1157
  %v1234 = vmul.f32 %v614, %v1157
  %v1235 = vmul.f32 %v619, %v1157
  %v1236 = vmul.f32 %v624, %v1157
  %v1237 = vmul.f32 %v629, %v1157
  %v1238 = vmul.f32 %v634, %v1157
  %v1239 = vmul.f32 %v639, %v1157
  %v1240 = vmul.f32 %v644, %v1157
  %v1241 = vmul.f32 %v1127, %v1157
  %v1242 = vmul.f32 %v654, %v1157
  %v1243 = vmul.f32 %v659, %v1157
  %v1244 = vmul.f32 %v664, %v1157
  %v1245 = vmul.f32 %v669, %v1157
  %v1246 = vmul.f32 %v674, %v1157
  %v1247 = vmul.f32 %v679, %v1157
  %v1248 = vmul.f32 %v684, %v1157
  %v1249 = vmul.f32 %v689, %v1157
  %v1250 = vmul.f32 %v694, %v1157
  %v1251 = vmul.f32 %v699, %v1157
  %v1252 = vmul.f32 %v704, %v1157
  %v1253 = vmul.f32 %v1132, %v1157
  %v1254 = vmul.f32 %v714, %v1157
  %v1255 = vmul.f32 %v719, %v1157
  %v1256 = vmul.f32 %v724, %v1157
  %v1257 = vmul.f32 %v729, %v1157
  %v1258 = vmul.f32 %v734, %v1157
  %v1259 = vmul.f32 %v739, %v1157
  %v1260 = vmul.f32 %v744, %v1157
  %v1261 = vmul.f32 %v749, %v1157
  %v1262 = vmul.f32 %v754, %v1157
  %v1263 = vmul.f32 %v759, %v1157
  %v1264 = vmul.f32 %v764, %v1157
  %v1265 = vmul.f32 %v1137, %v1157
  %v1266 = vmul.f32 %v774, %v1157
  %v1267 = vmul.f32 %v779, %v1157
  %v1268 = vmul.f32 %v784, %v1157
  %v1269 = vmul.f32 %v789, %v1157
  %v1270 = vmul.f32 %v794, %v1157
  %v1271 = vmul.f32 %v799, %v1157
  %v1272 = vmul.f32 %v804, %v1157
  %v1273 = vmul.f32 %v809, %v1157
  %v1274 = vmul.f32 %v814, %v1157
  %v1275 = vmul.f32 %v819, %v1157
  %v1276 = vmul.f32 %v824, %v1157
  %v1277 = vmul.f32 %v1142, %v1157
  %v1278 = vmul.f32 %v834, %v1157
  %v1279 = vmul.f32 %v839, %v1157
  %v1280 = vmul.f32 %v844, %v1157
  %v1281 = vmul.f32 %v849, %v1157
  %v1282 = vmul.f32 %v854, %v1157
  %v1283 = vmul.f32 %v859, %v1157
  %v1284 = vmul.f32 %v864, %v1157
  %v1285 = vmul.f32 %v869, %v1157
  %v1286 = vmul.f32 %v874, %v1157
  %v1287 = vmul.f32 %v879, %v1157
  %v1288 = vmul.f32 %v884, %v1157
  %v1289 = vmul.f32 %v1147, %v1157
  %v1290 = vmul.f32 %v894, %v1157
  %v1291 = vmul.f32 %v899, %v1157
  %v1292 = vmul.f32 %v904, %v1157
  %v1293 = vmul.f32 %v909, %v1157
  %v1294 = vmul.f32 %v914, %v1157
  %v1295 = vmul.f32 %v919, %v1157
  %v1296 = vmul.f32 %v924, %v1157
  %v1297 = vmul.f32 %v929, %v1157
  %v1298 = vmul.f32 %v934, %v1157
  %v1299 = vmul.f32 %v939, %v1157
  %v1300 = vmul.f32 %v944, %v1157
  %v1301 = vmul.f32 %v1152, %v1157
  %v1302 = vadd.f32 %v950, %v1158
  %v1303 = vadd.f32 %v951, %v1159
  %v1304 = vadd.f32 %v952, %v1160
  %v1305 = vadd.f32 %v953, %v1161
  %v1306 = vadd.f32 %v954, %v1162
  %v1307 = vadd.f32 %v955, %v1163
  %v1308 = vadd.f32 %v956, %v1164
  %v1309 = vadd.f32 %v957, %v1165
  %v1310 = vadd.f32 %v958, %v1166
  %v1311 = vadd.f32 %v959, %v1167
  %v1312 = vadd.f32 %v960, %v1168
  %v1313 = vadd.f32 %v961, %v1169
  %v1314 = vadd.f32 %v962, %v1170
  %v1315 = vadd.f32 %v963, %v1171
  %v1316 = vadd.f32 %v964, %v1172
  %v1317 = vadd.f32 %v965, %v1173
  %v1318 = vadd.f32 %v966, %v1174
  %v1319 = vadd.f32 %v967, %v1175
  %v1320 = vadd.f32 %v968, %v1176
  %v1321 = vadd.f32 %v969, %v1177
  %v1322 = vadd.f32 %v970, %v1178
  %v1323 = vadd.f32 %v971, %v1179
  %v1324 = vadd.f32 %v972, %v1180
  %v1325 = vadd.f32 %v973, %v1181
  %v1326 = vadd.f32 %v974, %v1182
  %v1327 = vadd.f32 %v975, %v1183
  %v1328 = vadd.f32 %v976, %v1184
  %v1329 = vadd.f32 %v977, %v1185
  %v1330 = vadd.f32 %v978, %v1186
  %v1331 = vadd.f32 %v979, %v1187
  %v1332 = vadd.f32 %v980, %v1188
  %v1333 = vadd.f32 %v981, %v1189
  %v1334 = vadd.f32 %v982, %v1190
  %v1335 = vadd.f32 %v983, %v1191
  %v1336 = vadd.f32 %v984, %v1192
  %v1337 = vadd.f32 %v985, %v1193
  %v1338 = vadd.f32 %v986, %v1194
  %v1339 = vadd.f32 %v987, %v1195
  %v1340 = vadd.f32 %v988, %v1196
  %v1341 = vadd.f32 %v989, %v1197
  %v1342 = vadd.f32 %v990, %v1198
  %v1343 = vadd.f32 %v991, %v1199
  %v1344 = vadd.f32 %v992, %v1200
  %v1345 = vadd.f32 %v993, %v1201
  %v1346 = vadd.f32 %v994, %v1202
  %v1347 = vadd.f32 %v995, %v1203
  %v1348 = vadd.f32 %v996, %v1204
  %v1349 = vadd.f32 %v997, %v1205
  %v1350 = vadd.f32 %v998, %v1206
  %v1351 = vadd.f32 %v999, %v1207
  %v1352 = vadd.f32 %v1000, %v1208
  %v1353 = vadd.f32 %v1001, %v1209
  %v1354 = vadd.f32 %v1002, %v1210
  %v1355 = vadd.f32 %v1003, %v1211
  %v1356 = vadd.f32 %v1004, %v1212
  %v1357 = vadd.f32 %v1005, %v1213
  %v1358 = vadd.f32 %v1006, %v1214
  %v1359 = vadd.f32 %v1007, %v1215
  %v1360 = vadd.f32 %v1008, %v1216
  %v1361 = vadd.f32 %v1009, %v1217
  %v1362 = vadd.f32 %v1010, %v1218
  %v1363 = vadd.f32 %v1011, %v1219
  %v1364 = vadd.f32 %v1012, %v1220
  %v1365 = vadd.f32 %v1013, %v1221
  %v1366 = vadd.f32 %v1014, %v1222
  %v1367 = vadd.f32 %v1015, %v1223
  %v1368 = vadd.f32 %v1016, %v1224
  %v1369 = vadd.f32 %v1017, %v1225
  %v1370 = vadd.f32 %v1018, %v1226
  %v1371 = vadd.f32 %v1019, %v1227
  %v1372 = vadd.f32 %v1020, %v1228
  %v1373 = vadd.f32 %v1021, %v1229
  %v1374 = vadd.f32 %v1022, %v1230
  %v1375 = vadd.f32 %v1023, %v1231
  %v1376 = vadd.f32 %v1024, %v1232
  %v1377 = vadd.f32 %v1025, %v1233
  %v1378 = vadd.f32 %v1026, %v1234
  %v1379 = vadd.f32 %v1027, %v1235
  %v1380 = vadd.f32 %v1028, %v1236
  %v1381 = vadd.f32 %v1029, %v1237
  %v1382 = vadd.f32 %v1030, %v1238
  %v1383 = vadd.f32 %v1031, %v1239
  %v1384 = vadd.f32 %v1032, %v1240
  %v1385 = vadd.f32 %v1033, %v1241
  %v1386 = vadd.f32 %v1034, %v1242
  %v1387 = vadd.f32 %v1035, %v1243
  %v1388 = vadd.f32 %v1036, %v1244
  %v1389 = vadd.f32 %v1037, %v1245
  %v1390 = vadd.f32 %v1038, %v1246
  %v1391 = vadd.f32 %v1039, %v1247
  %v1392 = vadd.f32 %v1040, %v1248
  %v1393 = vadd.f32 %v1041, %v1249
  %v1394 = vadd.f32 %v1042, %v1250
  %v1395 = vadd.f32 %v1043, %v1251
  %v1396 = vadd.f32 %v1044, %v1252
  %v1397 = vadd.f32 %v1045, %v1253
  %v1398 = vadd.f32 %v1046, %v1254
  %v1399 = vadd.f32 %v1047, %v1255
  %v1400 = vadd.f32 %v1048, %v1256
  %v1401 = vadd.f32 %v1049, %v1257
  %v1402 = vadd.f32 %v1050, %v1258
  %v1403 = vadd.f32 %v1051, %v1259
  %v1404 = vadd.f32 %v1052, %v1260
  %v1405 = vadd.f32 %v1053, %v1261
  %v1406 = vadd.f32 %v1054, %v1262
  %v1407 = vadd.f32 %v1055, %v1263
  %v1408 = vadd.f32 %v1056, %v1264
  %v1409 = vadd.f32 %v1057, %v1265
  %v1410 = vadd.f32 %v1058, %v1266
  %v1411 = vadd.f32 %v1059, %v1267
  %v1412 = vadd.f32 %v1060, %v1268
  %v1413 = vadd.f32 %v1061, %v1269
  %v1414 = vadd.f32 %v1062, %v1270
  %v1415 = vadd.f32 %v1063, %v1271
  %v1416 = vadd.f32 %v1064, %v1272
  %v1417 = vadd.f32 %v1065, %v1273
  %v1418 = vadd.f32 %v1066, %v1274
  %v1419 = vadd.f32 %v1067, %v1275
  %v1420 = vadd.f32 %v1068, %v1276
  %v1421 = vadd.f32 %v1069, %v1277
  %v1422 = vadd.f32 %v1070, %v1278
  %v1423 = vadd.f32 %v1071, %v1279
  %v1424 = vadd.f32 %v1072, %v1280
  %v1425 = vadd.f32 %v1073, %v1281
  %v1426 = vadd.f32 %v1074, %v1282
  %v1427 = vadd.f32 %v1075, %v1283
  %v1428 = vadd.f32 %v1076, %v1284
  %v1429 = vadd.f32 %v1077, %v1285
  %v1430 = vadd.f32 %v1078, %v1286
  %v1431 = vadd.f32 %v1079, %v1287
  %v1432 = vadd.f32 %v1080, %v1288
  %v1433 = vadd.f32 %v1081, %v1289
  %v1434 = vadd.f32 %v1082, %v1290
  %v1435 = vadd.f32 %v1083, %v1291
  %v1436 = vadd.f32 %v1084, %v1292
  %v1437 = vadd.f32 %v1085, %v1293
  %v1438 = vadd.f32 %v1086, %v1294
  %v1439 = vadd.f32 %v1087, %v1295
  %v1440 = vadd.f32 %v1088, %v1296
  %v1441 = vadd.f32 %v1089, %v1297
  %v1442 = vadd.f32 %v1090, %v1298
  %v1443 = vadd.f32 %v1091, %v1299
  %v1444 = vadd.f32 %v1092, %v1300
  %v1445 = vadd.f32 %v1093, %v1301
  %1447 = vset.pattern.permute.xlu0 0
  %1448 = vperm.xlu0 %1447, %v43
  %v1449 = vpop.permute.xlu0 %1448
  %1452 = vset.pattern.permute.xlu0 0
  %1453 = vperm.xlu0 %1452, %v57
  %v1454 = vpop.permute.xlu0 %1453
  %1457 = vset.pattern.permute.xlu0 0
  %1458 = vperm.xlu0 %1457, %v71
  %v1459 = vpop.permute.xlu0 %1458
  %1462 = vset.pattern.permute.xlu0 0
  %1463 = vperm.xlu0 %1462, %v85
  %v1464 = vpop.permute.xlu0 %1463
  %1467 = vset.pattern.permute.xlu0 0
  %1468 = vperm.xlu0 %1467, %v99
  %v1469 = vpop.permute.xlu0 %1468
  %1472 = vset.pattern.permute.xlu0 0
  %1473 = vperm.xlu0 %1472, %v113
  %v1474 = vpop.permute.xlu0 %1473
  %1477 = vset.pattern.permute.xlu0 0
  %1478 = vperm.xlu0 %1477, %v127
  %v1479 = vpop.permute.xlu0 %1478
  %1482 = vset.pattern.permute.xlu0 0
  %1483 = vperm.xlu0 %1482, %v141
  %v1484 = vpop.permute.xlu0 %1483
  %1487 = vset.pattern.permute.xlu0 0
  %1488 = vperm.xlu0 %1487, %v155
  %v1489 = vpop.permute.xlu0 %1488
  %1492 = vset.pattern.permute.xlu0 0
  %1493 = vperm.xlu0 %1492, %v169
  %v1494 = vpop.permute.xlu0 %1493
  %1497 = vset.pattern.permute.xlu0 0
  %1498 = vperm.xlu0 %1497, %v183
  %v1499 = vpop.permute.xlu0 %1498
  %1502 = vset.pattern.permute.xlu0 0
  %1503 = vperm.xlu0 %1502, %v197
  %v1504 = vpop.permute.xlu0 %1503
  %v1506 = vlaneseq
  %v1507 = vshrl.u32 %v1506, 7
  %v1508 = vsub.s32 2, %v1507
  %v1509 = vrot.slane %v26, %v1508
  %v1510 = vmul.f32 %v239, %v1509
  %v1511 = vmul.f32 %v244, %v1509
  %v1512 = vmul.f32 %v249, %v1509
  %v1513 = vmul.f32 %v254, %v1509
  %v1514 = vmul.f32 %v259, %v1509
  %v1515 = vmul.f32 %v264, %v1509
  %v1516 = vmul.f32 %v269, %v1509
  %v1517 = vmul.f32 %v274, %v1509
  %v1518 = vmul.f32 %v279, %v1509
  %v1519 = vmul.f32 %v284, %v1509
  %v1520 = vmul.f32 %v1097, %v1509
  %v1521 = vmul.f32 %v1449, %v1509
  %v1522 = vmul.f32 %v299, %v1509
  %v1523 = vmul.f32 %v304, %v1509
  %v1524 = vmul.f32 %v309, %v1509
  %v1525 = vmul.f32 %v314, %v1509
  %v1526 = vmul.f32 %v319, %v1509
  %v1527 = vmul.f32 %v324, %v1509
  %v1528 = vmul.f32 %v329, %v1509
  %v1529 = vmul.f32 %v334, %v1509
  %v1530 = vmul.f32 %v339, %v1509
  %v1531 = vmul.f32 %v344, %v1509
  %v1532 = vmul.f32 %v1102, %v1509
  %v1533 = vmul.f32 %v1454, %v1509
  %v1534 = vmul.f32 %v359, %v1509
  %v1535 = vmul.f32 %v364, %v1509
  %v1536 = vmul.f32 %v369, %v1509
  %v1537 = vmul.f32 %v374, %v1509
  %v1538 = vmul.f32 %v379, %v1509
  %v1539 = vmul.f32 %v384, %v1509
  %v1540 = vmul.f32 %v389, %v1509
  %v1541 = vmul.f32 %v394, %v1509
  %v1542 = vmul.f32 %v399, %v1509
  %v1543 = vmul.f32 %v404, %v1509
  %v1544 = vmul.f32 %v1107, %v1509
  %v1545 = vmul.f32 %v1459, %v1509
  %v1546 = vmul.f32 %v419, %v1509
  %v1547 = vmul.f32 %v424, %v1509
  %v1548 = vmul.f32 %v429, %v1509
  %v1549 = vmul.f32 %v434, %v1509
  %v1550 = vmul.f32 %v439, %v1509
  %v1551 = vmul.f32 %v444, %v1509
  %v1552 = vmul.f32 %v449, %v1509
  %v1553 = vmul.f32 %v454, %v1509
  %v1554 = vmul.f32 %v459, %v1509
  %v1555 = vmul.f32 %v464, %v1509
  %v1556 = vmul.f32 %v1112, %v1509
  %v1557 = vmul.f32 %v1464, %v1509
  %v1558 = vmul.f32 %v479, %v1509
  %v1559 = vmul.f32 %v484, %v1509
  %v1560 = vmul.f32 %v489, %v1509
  %v1561 = vmul.f32 %v494, %v1509
  %v1562 = vmul.f32 %v499, %v1509
  %v1563 = vmul.f32 %v504, %v1509
  %v1564 = vmul.f32 %v509, %v1509
  %v1565 = vmul.f32 %v514, %v1509
  %v1566 = vmul.f32 %v519, %v1509
  %v1567 = vmul.f32 %v524, %v1509
  %v1568 = vmul.f32 %v1117, %v1509
  %v1569 = vmul.f32 %v1469, %v1509
  %v1570 = vmul.f32 %v539, %v1509
  %v1571 = vmul.f32 %v544, %v1509
  %v1572 = vmul.f32 %v549, %v1509
  %v1573 = vmul.f32 %v554, %v1509
  %v1574 = vmul.f32 %v559, %v1509
  %v1575 = vmul.f32 %v564, %v1509
  %v1576 = vmul.f32 %v569, %v1509
  %v1577 = vmul.f32 %v574, %v1509
  %v1578 = vmul.f32 %v579, %v1509
  %v1579 = vmul.f32 %v584, %v1509
  %v1580 = vmul.f32 %v1122, %v1509
  %v1581 = vmul.f32 %v1474, %v1509
  %v1582 = vmul.f32 %v599, %v1509
  %v1583 = vmul.f32 %v604, %v1509
  %v1584 = vmul.f32 %v609, %v1509
  %v1585 = vmul.f32 %v614, %v1509
  %v1586 = vmul.f32 %v619, %v1509
  %v1587 = vmul.f32 %v624, %v1509
  %v1588 = vmul.f32 %v629, %v1509
  %v1589 = vmul.f32 %v634, %v1509
  %v1590 = vmul.f32 %v639, %v1509
  %v1591 = vmul.f32 %v644, %v1509
  %v1592 = vmul.f32 %v1127, %v1509
  %v1593 = vmul.f32 %v1479, %v1509
  %v1594 = vmul.f32 %v659, %v1509
  %v1595 = vmul.f32 %v664, %v1509
  %v1596 = vmul.f32 %v669, %v1509
  %v1597 = vmul.f32 %v674, %v1509
  %v1598 = vmul.f32 %v679, %v1509
  %v1599 = vmul.f32 %v684, %v1509
  %v1600 = vmul.f32 %v689, %v1509
  %v1601 = vmul.f32 %v694, %v1509
  %v1602 = vmul.f32 %v699, %v1509
  %v1603 = vmul.f32 %v704, %v1509
  %v1604 = vmul.f32 %v1132, %v1509
  %v1605 = vmul.f32 %v1484, %v1509
  %v1606 = vmul.f32 %v719, %v1509
  %v1607 = vmul.f32 %v724, %v1509
  %v1608 = vmul.f32 %v729, %v1509
  %v1609 = vmul.f32 %v734, %v1509
  %v1610 = vmul.f32 %v739, %v1509
  %v1611 = vmul.f32 %v744, %v1509
  %v1612 = vmul.f32 %v749, %v1509
  %v1613 = vmul.f32 %v754, %v1509
  %v1614 = vmul.f32 %v759, %v1509
  %v1615 = vmul.f32 %v764, %v1509
  %v1616 = vmul.f32 %v1137, %v1509
  %v1617 = vmul.f32 %v1489, %v1509
  %v1618 = vmul.f32 %v779, %v1509
  %v1619 = vmul.f32 %v784, %v1509
  %v1620 = vmul.f32 %v789, %v1509
  %v1621 = vmul.f32 %v794, %v1509
  %v1622 = vmul.f32 %v799, %v1509
  %v1623 = vmul.f32 %v804, %v1509
  %v1624 = vmul.f32 %v809, %v1509
  %v1625 = vmul.f32 %v814, %v1509
  %v1626 = vmul.f32 %v819, %v1509
  %v1627 = vmul.f32 %v824, %v1509
  %v1628 = vmul.f32 %v1142, %v1509
  %v1629 = vmul.f32 %v1494, %v1509
  %v1630 = vmul.f32 %v839, %v1509
  %v1631 = vmul.f32 %v844, %v1509
  %v1632 = vmul.f32 %v849, %v1509
  %v1633 = vmul.f32 %v854, %v1509
  %v1634 = vmul.f32 %v859, %v1509
  %v1635 = vmul.f32 %v864, %v1509
  %v1636 = vmul.f32 %v869, %v1509
  %v1637 = vmul.f32 %v874, %v1509
  %v1638 = vmul.f32 %v879, %v1509
  %v1639 = vmul.f32 %v884, %v1509
  %v1640 = vmul.f32 %v1147, %v1509
  %v1641 = vmul.f32 %v1499, %v1509
  %v1642 = vmul.f32 %v899, %v1509
  %v1643 = vmul.f32 %v904, %v1509
  %v1644 = vmul.f32 %v909, %v1509
  %v1645 = vmul.f32 %v914, %v1509
  %v1646 = vmul.f32 %v919, %v1509
  %v1647 = vmul.f32 %v924, %v1509
  %v1648 = vmul.f32 %v929, %v1509
  %v1649 = vmul.f32 %v934, %v1509
  %v1650 = vmul.f32 %v939, %v1509
  %v1651 = vmul.f32 %v944, %v1509
  %v1652 = vmul.f32 %v1152, %v1509
  %v1653 = vmul.f32 %v1504, %v1509
  %v1654 = vadd.f32 %v1302, %v1510
  %v1655 = vadd.f32 %v1303, %v1511
  %v1656 = vadd.f32 %v1304, %v1512
  %v1657 = vadd.f32 %v1305, %v1513
  %v1658 = vadd.f32 %v1306, %v1514
  %v1659 = vadd.f32 %v1307, %v1515
  %v1660 = vadd.f32 %v1308, %v1516
  %v1661 = vadd.f32 %v1309, %v1517
  %v1662 = vadd.f32 %v1310, %v1518
  %v1663 = vadd.f32 %v1311, %v1519
  %v1664 = vadd.f32 %v1312, %v1520
  %v1665 = vadd.f32 %v1313, %v1521
  %v1666 = vadd.f32 %v1314, %v1522
  %v1667 = vadd.f32 %v1315, %v1523
  %v1668 = vadd.f32 %v1316, %v1524
  %v1669 = vadd.f32 %v1317, %v1525
  %v1670 = vadd.f32 %v1318, %v1526
  %v1671 = vadd.f32 %v1319, %v1527
  %v1672 = vadd.f32 %v1320, %v1528
  %v1673 = vadd.f32 %v1321, %v1529
  %v1674 = vadd.f32 %v1322, %v1530
  %v1675 = vadd.f32 %v1323, %v1531
  %v1676 = vadd.f32 %v1324, %v1532
  %v1677 = vadd.f32 %v1325, %v1533
  %v1678 = vadd.f32 %v1326, %v1534
  %v1679 = vadd.f32 %v1327, %v1535
  %v1680 = vadd.f32 %v1328, %v1536
  %v1681 = vadd.f32 %v1329, %v1537
  %v1682 = vadd.f32 %v1330, %v1538
  %v1683 = vadd.f32 %v1331, %v1539
  %v1684 = vadd.f32 %v1332, %v1540
  %v1685 = vadd.f32 %v1333, %v1541
  %v1686 = vadd.f32 %v1334, %v1542
  %v1687 = vadd.f32 %v1335, %v1543
  %v1688 = vadd.f32 %v1336, %v1544
  %v1689 = vadd.f32 %v1337, %v1545
  %v1690 = vadd.f32 %v1338, %v1546
  %v1691 = vadd.f32 %v1339, %v1547
  %v1692 = vadd.f32 %v1340, %v1548
  %v1693 = vadd.f32 %v1341, %v1549
  %v1694 = vadd.f32 %v1342, %v1550
  %v1695 = vadd.f32 %v1343, %v1551
  %v1696 = vadd.f32 %v1344, %v1552
  %v1697 = vadd.f32 %v1345, %v1553
  %v1698 = vadd.f32 %v1346, %v1554
  %v1699 = vadd.f32 %v1347, %v1555
  %v1700 = vadd.f32 %v1348, %v1556
  %v1701 = vadd.f32 %v1349, %v1557
  %v1702 = vadd.f32 %v1350, %v1558
  %v1703 = vadd.f32 %v1351, %v1559
  %v1704 = vadd.f32 %v1352, %v1560
  %v1705 = vadd.f32 %v1353, %v1561
  %v1706 = vadd.f32 %v1354, %v1562
  %v1707 = vadd.f32 %v1355, %v1563
  %v1708 = vadd.f32 %v1356, %v1564
  %v1709 = vadd.f32 %v1357, %v1565
  %v1710 = vadd.f32 %v1358, %v1566
  %v1711 = vadd.f32 %v1359, %v1567
  %v1712 = vadd.f32 %v1360, %v1568
  %v1713 = vadd.f32 %v1361, %v1569
  %v1714 = vadd.f32 %v1362, %v1570
  %v1715 = vadd.f32 %v1363, %v1571
  %v1716 = vadd.f32 %v1364, %v1572
  %v1717 = vadd.f32 %v1365, %v1573
  %v1718 = vadd.f32 %v1366, %v1574
  %v1719 = vadd.f32 %v1367, %v1575
  %v1720 = vadd.f32 %v1368, %v1576
  %v1721 = vadd.f32 %v1369, %v1577
  %v1722 = vadd.f32 %v1370, %v1578
  %v1723 = vadd.f32 %v1371, %v1579
  %v1724 = vadd.f32 %v1372, %v1580
  %v1725 = vadd.f32 %v1373, %v1581
  %v1726 = vadd.f32 %v1374, %v1582
  %v1727 = vadd.f32 %v1375, %v1583
  %v1728 = vadd.f32 %v1376, %v1584
  %v1729 = vadd.f32 %v1377, %v1585
  %v1730 = vadd.f32 %v1378, %v1586
  %v1731 = vadd.f32 %v1379, %v1587
  %v1732 = vadd.f32 %v1380, %v1588
  %v1733 = vadd.f32 %v1381, %v1589
  %v1734 = vadd.f32 %v1382, %v1590
  %v1735 = vadd.f32 %v1383, %v1591
  %v1736 = vadd.f32 %v1384, %v1592
  %v1737 = vadd.f32 %v1385, %v1593
  %v1738 = vadd.f32 %v1386, %v1594
  %v1739 = vadd.f32 %v1387, %v1595
  %v1740 = vadd.f32 %v1388, %v1596
  %v1741 = vadd.f32 %v1389, %v1597
  %v1742 = vadd.f32 %v1390, %v1598
  %v1743 = vadd.f32 %v1391, %v1599
  %v1744 = vadd.f32 %v1392, %v1600
  %v1745 = vadd.f32 %v1393, %v1601
  %v1746 = vadd.f32 %v1394, %v1602
  %v1747 = vadd.f32 %v1395, %v1603
  %v1748 = vadd.f32 %v1396, %v1604
  %v1749 = vadd.f32 %v1397, %v1605
  %v1750 = vadd.f32 %v1398, %v1606
  %v1751 = vadd.f32 %v1399, %v1607
  %v1752 = vadd.f32 %v1400, %v1608
  %v1753 = vadd.f32 %v1401, %v1609
  %v1754 = vadd.f32 %v1402, %v1610
  %v1755 = vadd.f32 %v1403, %v1611
  %v1756 = vadd.f32 %v1404, %v1612
  %v1757 = vadd.f32 %v1405, %v1613
  %v1758 = vadd.f32 %v1406, %v1614
  %v1759 = vadd.f32 %v1407, %v1615
  %v1760 = vadd.f32 %v1408, %v1616
  %v1761 = vadd.f32 %v1409, %v1617
  %v1762 = vadd.f32 %v1410, %v1618
  %v1763 = vadd.f32 %v1411, %v1619
  %v1764 = vadd.f32 %v1412, %v1620
  %v1765 = vadd.f32 %v1413, %v1621
  %v1766 = vadd.f32 %v1414, %v1622
  %v1767 = vadd.f32 %v1415, %v1623
  %v1768 = vadd.f32 %v1416, %v1624
  %v1769 = vadd.f32 %v1417, %v1625
  %v1770 = vadd.f32 %v1418, %v1626
  %v1771 = vadd.f32 %v1419, %v1627
  %v1772 = vadd.f32 %v1420, %v1628
  %v1773 = vadd.f32 %v1421, %v1629
  %v1774 = vadd.f32 %v1422, %v1630
  %v1775 = vadd.f32 %v1423, %v1631
  %v1776 = vadd.f32 %v1424, %v1632
  %v1777 = vadd.f32 %v1425, %v1633
  %v1778 = vadd.f32 %v1426, %v1634
  %v1779 = vadd.f32 %v1427, %v1635
  %v1780 = vadd.f32 %v1428, %v1636
  %v1781 = vadd.f32 %v1429, %v1637
  %v1782 = vadd.f32 %v1430, %v1638
  %v1783 = vadd.f32 %v1431, %v1639
  %v1784 = vadd.f32 %v1432, %v1640
  %v1785 = vadd.f32 %v1433, %v1641
  %v1786 = vadd.f32 %v1434, %v1642
  %v1787 = vadd.f32 %v1435, %v1643
  %v1788 = vadd.f32 %v1436, %v1644
  %v1789 = vadd.f32 %v1437, %v1645
  %v1790 = vadd.f32 %v1438, %v1646
  %v1791 = vadd.f32 %v1439, %v1647
  %v1792 = vadd.f32 %v1440, %v1648
  %v1793 = vadd.f32 %v1441, %v1649
  %v1794 = vadd.f32 %v1442, %v1650
  %v1795 = vadd.f32 %v1443, %v1651
  %v1796 = vadd.f32 %v1444, %v1652
  %v1797 = vadd.f32 %v1445, %v1653
  %1799 = vset.pattern.permute.xlu0 0
  %1800 = vperm.xlu0 %1799, %v198
  %v1801 = vpop.permute.xlu0 %1800
  %1804 = vset.pattern.permute.xlu0 0
  %1805 = vperm.xlu0 %1804, %v199
  %v1806 = vpop.permute.xlu0 %1805
  %1809 = vset.pattern.permute.xlu0 0
  %1810 = vperm.xlu0 %1809, %v200
  %v1811 = vpop.permute.xlu0 %1810
  %1814 = vset.pattern.permute.xlu0 0
  %1815 = vperm.xlu0 %1814, %v201
  %v1816 = vpop.permute.xlu0 %1815
  %1819 = vset.pattern.permute.xlu0 0
  %1820 = vperm.xlu0 %1819, %v202
  %v1821 = vpop.permute.xlu0 %1820
  %1824 = vset.pattern.permute.xlu0 0
  %1825 = vperm.xlu0 %1824, %v203
  %v1826 = vpop.permute.xlu0 %1825
  %1829 = vset.pattern.permute.xlu0 0
  %1830 = vperm.xlu0 %1829, %v204
  %v1831 = vpop.permute.xlu0 %1830
  %1834 = vset.pattern.permute.xlu0 0
  %1835 = vperm.xlu0 %1834, %v205
  %v1836 = vpop.permute.xlu0 %1835
  %1839 = vset.pattern.permute.xlu0 0
  %1840 = vperm.xlu0 %1839, %v206
  %v1841 = vpop.permute.xlu0 %1840
  %1844 = vset.pattern.permute.xlu0 0
  %1845 = vperm.xlu0 %1844, %v207
  %v1846 = vpop.permute.xlu0 %1845
  %1849 = vset.pattern.permute.xlu0 0
  %1850 = vperm.xlu0 %1849, %v208
  %v1851 = vpop.permute.xlu0 %1850
  %1854 = vset.pattern.permute.xlu0 0
  %1855 = vperm.xlu0 %1854, %v209
  %v1856 = vpop.permute.xlu0 %1855
  %v1858 = vlaneseq
  %v1859 = vshrl.u32 %v1858, 7
  %v1860 = vsub.s32 3, %v1859
  %v1861 = vrot.slane %v26, %v1860
  %v1862 = vmul.f32 %v289, %v1861
  %v1863 = vmul.f32 %v294, %v1861
  %v1864 = vmul.f32 %v299, %v1861
  %v1865 = vmul.f32 %v304, %v1861
  %v1866 = vmul.f32 %v309, %v1861
  %v1867 = vmul.f32 %v314, %v1861
  %v1868 = vmul.f32 %v319, %v1861
  %v1869 = vmul.f32 %v324, %v1861
  %v1870 = vmul.f32 %v329, %v1861
  %v1871 = vmul.f32 %v334, %v1861
  %v1872 = vmul.f32 %v339, %v1861
  %v1873 = vmul.f32 %v344, %v1861
  %v1874 = vmul.f32 %v349, %v1861
  %v1875 = vmul.f32 %v354, %v1861
  %v1876 = vmul.f32 %v359, %v1861
  %v1877 = vmul.f32 %v364, %v1861
  %v1878 = vmul.f32 %v369, %v1861
  %v1879 = vmul.f32 %v374, %v1861
  %v1880 = vmul.f32 %v379, %v1861
  %v1881 = vmul.f32 %v384, %v1861
  %v1882 = vmul.f32 %v389, %v1861
  %v1883 = vmul.f32 %v394, %v1861
  %v1884 = vmul.f32 %v399, %v1861
  %v1885 = vmul.f32 %v404, %v1861
  %v1886 = vmul.f32 %v409, %v1861
  %v1887 = vmul.f32 %v414, %v1861
  %v1888 = vmul.f32 %v419, %v1861
  %v1889 = vmul.f32 %v424, %v1861
  %v1890 = vmul.f32 %v429, %v1861
  %v1891 = vmul.f32 %v434, %v1861
  %v1892 = vmul.f32 %v439, %v1861
  %v1893 = vmul.f32 %v444, %v1861
  %v1894 = vmul.f32 %v449, %v1861
  %v1895 = vmul.f32 %v454, %v1861
  %v1896 = vmul.f32 %v459, %v1861
  %v1897 = vmul.f32 %v464, %v1861
  %v1898 = vmul.f32 %v469, %v1861
  %v1899 = vmul.f32 %v474, %v1861
  %v1900 = vmul.f32 %v479, %v1861
  %v1901 = vmul.f32 %v484, %v1861
  %v1902 = vmul.f32 %v489, %v1861
  %v1903 = vmul.f32 %v494, %v1861
  %v1904 = vmul.f32 %v499, %v1861
  %v1905 = vmul.f32 %v504, %v1861
  %v1906 = vmul.f32 %v509, %v1861
  %v1907 = vmul.f32 %v514, %v1861
  %v1908 = vmul.f32 %v519, %v1861
  %v1909 = vmul.f32 %v524, %v1861
  %v1910 = vmul.f32 %v529, %v1861
  %v1911 = vmul.f32 %v534, %v1861
  %v1912 = vmul.f32 %v539, %v1861
  %v1913 = vmul.f32 %v544, %v1861
  %v1914 = vmul.f32 %v549, %v1861
  %v1915 = vmul.f32 %v554, %v1861
  %v1916 = vmul.f32 %v559, %v1861
  %v1917 = vmul.f32 %v564, %v1861
  %v1918 = vmul.f32 %v569, %v1861
  %v1919 = vmul.f32 %v574, %v1861
  %v1920 = vmul.f32 %v579, %v1861
  %v1921 = vmul.f32 %v584, %v1861
  %v1922 = vmul.f32 %v589, %v1861
  %v1923 = vmul.f32 %v594, %v1861
  %v1924 = vmul.f32 %v599, %v1861
  %v1925 = vmul.f32 %v604, %v1861
  %v1926 = vmul.f32 %v609, %v1861
  %v1927 = vmul.f32 %v614, %v1861
  %v1928 = vmul.f32 %v619, %v1861
  %v1929 = vmul.f32 %v624, %v1861
  %v1930 = vmul.f32 %v629, %v1861
  %v1931 = vmul.f32 %v634, %v1861
  %v1932 = vmul.f32 %v639, %v1861
  %v1933 = vmul.f32 %v644, %v1861
  %v1934 = vmul.f32 %v649, %v1861
  %v1935 = vmul.f32 %v654, %v1861
  %v1936 = vmul.f32 %v659, %v1861
  %v1937 = vmul.f32 %v664, %v1861
  %v1938 = vmul.f32 %v669, %v1861
  %v1939 = vmul.f32 %v674, %v1861
  %v1940 = vmul.f32 %v679, %v1861
  %v1941 = vmul.f32 %v684, %v1861
  %v1942 = vmul.f32 %v689, %v1861
  %v1943 = vmul.f32 %v694, %v1861
  %v1944 = vmul.f32 %v699, %v1861
  %v1945 = vmul.f32 %v704, %v1861
  %v1946 = vmul.f32 %v709, %v1861
  %v1947 = vmul.f32 %v714, %v1861
  %v1948 = vmul.f32 %v719, %v1861
  %v1949 = vmul.f32 %v724, %v1861
  %v1950 = vmul.f32 %v729, %v1861
  %v1951 = vmul.f32 %v734, %v1861
  %v1952 = vmul.f32 %v739, %v1861
  %v1953 = vmul.f32 %v744, %v1861
  %v1954 = vmul.f32 %v749, %v1861
  %v1955 = vmul.f32 %v754, %v1861
  %v1956 = vmul.f32 %v759, %v1861
  %v1957 = vmul.f32 %v764, %v1861
  %v1958 = vmul.f32 %v769, %v1861
  %v1959 = vmul.f32 %v774, %v1861
  %v1960 = vmul.f32 %v779, %v1861
  %v1961 = vmul.f32 %v784, %v1861
  %v1962 = vmul.f32 %v789, %v1861
  %v1963 = vmul.f32 %v794, %v1861
  %v1964 = vmul.f32 %v799, %v1861
  %v1965 = vmul.f32 %v804, %v1861
  %v1966 = vmul.f32 %v809, %v1861
  %v1967 = vmul.f32 %v814, %v1861
  %v1968 = vmul.f32 %v819, %v1861
  %v1969 = vmul.f32 %v824, %v1861
  %v1970 = vmul.f32 %v829, %v1861
  %v1971 = vmul.f32 %v834, %v1861
  %v1972 = vmul.f32 %v839, %v1861
  %v1973 = vmul.f32 %v844, %v1861
  %v1974 = vmul.f32 %v849, %v1861
  %v1975 = vmul.f32 %v854, %v1861
  %v1976 = vmul.f32 %v859, %v1861
  %v1977 = vmul.f32 %v864, %v1861
  %v1978 = vmul.f32 %v869, %v1861
  %v1979 = vmul.f32 %v874, %v1861
  %v1980 = vmul.f32 %v879, %v1861
  %v1981 = vmul.f32 %v884, %v1861
  %v1982 = vmul.f32 %v889, %v1861
  %v1983 = vmul.f32 %v894, %v1861
  %v1984 = vmul.f32 %v899, %v1861
  %v1985 = vmul.f32 %v904, %v1861
  %v1986 = vmul.f32 %v909, %v1861
  %v1987 = vmul.f32 %v914, %v1861
  %v1988 = vmul.f32 %v919, %v1861
  %v1989 = vmul.f32 %v924, %v1861
  %v1990 = vmul.f32 %v929, %v1861
  %v1991 = vmul.f32 %v934, %v1861
  %v1992 = vmul.f32 %v939, %v1861
  %v1993 = vmul.f32 %v944, %v1861
  %v1994 = vmul.f32 %v1801, %v1861
  %v1995 = vmul.f32 %v1806, %v1861
  %v1996 = vmul.f32 %v1811, %v1861
  %v1997 = vmul.f32 %v1816, %v1861
  %v1998 = vmul.f32 %v1821, %v1861
  %v1999 = vmul.f32 %v1826, %v1861
  %v2000 = vmul.f32 %v1831, %v1861
  %v2001 = vmul.f32 %v1836, %v1861
  %v2002 = vmul.f32 %v1841, %v1861
  %v2003 = vmul.f32 %v1846, %v1861
  %v2004 = vmul.f32 %v1851, %v1861
  %v2005 = vmul.f32 %v1856, %v1861
  %v2006 = vadd.f32 %v1654, %v1862
  %v2007 = vadd.f32 %v1655, %v1863
  %v2008 = vadd.f32 %v1656, %v1864
  %v2009 = vadd.f32 %v1657, %v1865
  %v2010 = vadd.f32 %v1658, %v1866
  %v2011 = vadd.f32 %v1659, %v1867
  %v2012 = vadd.f32 %v1660, %v1868
  %v2013 = vadd.f32 %v1661, %v1869
  %v2014 = vadd.f32 %v1662, %v1870
  %v2015 = vadd.f32 %v1663, %v1871
  %v2016 = vadd.f32 %v1664, %v1872
  %v2017 = vadd.f32 %v1665, %v1873
  %v2018 = vadd.f32 %v1666, %v1874
  %v2019 = vadd.f32 %v1667, %v1875
  %v2020 = vadd.f32 %v1668, %v1876
  %v2021 = vadd.f32 %v1669, %v1877
  %v2022 = vadd.f32 %v1670, %v1878
  %v2023 = vadd.f32 %v1671, %v1879
  %v2024 = vadd.f32 %v1672, %v1880
  %v2025 = vadd.f32 %v1673, %v1881
  %v2026 = vadd.f32 %v1674, %v1882
  %v2027 = vadd.f32 %v1675, %v1883
  %v2028 = vadd.f32 %v1676, %v1884
  %v2029 = vadd.f32 %v1677, %v1885
  %v2030 = vadd.f32 %v1678, %v1886
  %v2031 = vadd.f32 %v1679, %v1887
  %v2032 = vadd.f32 %v1680, %v1888
  %v2033 = vadd.f32 %v1681, %v1889
  %v2034 = vadd.f32 %v1682, %v1890
  %v2035 = vadd.f32 %v1683, %v1891
  %v2036 = vadd.f32 %v1684, %v1892
  %v2037 = vadd.f32 %v1685, %v1893
  %v2038 = vadd.f32 %v1686, %v1894
  %v2039 = vadd.f32 %v1687, %v1895
  %v2040 = vadd.f32 %v1688, %v1896
  %v2041 = vadd.f32 %v1689, %v1897
  %v2042 = vadd.f32 %v1690, %v1898
  %v2043 = vadd.f32 %v1691, %v1899
  %v2044 = vadd.f32 %v1692, %v1900
  %v2045 = vadd.f32 %v1693, %v1901
  %v2046 = vadd.f32 %v1694, %v1902
  %v2047 = vadd.f32 %v1695, %v1903
  %v2048 = vadd.f32 %v1696, %v1904
  %v2049 = vadd.f32 %v1697, %v1905
  %v2050 = vadd.f32 %v1698, %v1906
  %v2051 = vadd.f32 %v1699, %v1907
  %v2052 = vadd.f32 %v1700, %v1908
  %v2053 = vadd.f32 %v1701, %v1909
  %v2054 = vadd.f32 %v1702, %v1910
  %v2055 = vadd.f32 %v1703, %v1911
  %v2056 = vadd.f32 %v1704, %v1912
  %v2057 = vadd.f32 %v1705, %v1913
  %v2058 = vadd.f32 %v1706, %v1914
  %v2059 = vadd.f32 %v1707, %v1915
  %v2060 = vadd.f32 %v1708, %v1916
  %v2061 = vadd.f32 %v1709, %v1917
  %v2062 = vadd.f32 %v1710, %v1918
  %v2063 = vadd.f32 %v1711, %v1919
  %v2064 = vadd.f32 %v1712, %v1920
  %v2065 = vadd.f32 %v1713, %v1921
  %v2066 = vadd.f32 %v1714, %v1922
  %v2067 = vadd.f32 %v1715, %v1923
  %v2068 = vadd.f32 %v1716, %v1924
  %v2069 = vadd.f32 %v1717, %v1925
  %v2070 = vadd.f32 %v1718, %v1926
  %v2071 = vadd.f32 %v1719, %v1927
  %v2072 = vadd.f32 %v1720, %v1928
  %v2073 = vadd.f32 %v1721, %v1929
  %v2074 = vadd.f32 %v1722, %v1930
  %v2075 = vadd.f32 %v1723, %v1931
  %v2076 = vadd.f32 %v1724, %v1932
  %v2077 = vadd.f32 %v1725, %v1933
  %v2078 = vadd.f32 %v1726, %v1934
  %v2079 = vadd.f32 %v1727, %v1935
  %v2080 = vadd.f32 %v1728, %v1936
  %v2081 = vadd.f32 %v1729, %v1937
  %v2082 = vadd.f32 %v1730, %v1938
  %v2083 = vadd.f32 %v1731, %v1939
  %v2084 = vadd.f32 %v1732, %v1940
  %v2085 = vadd.f32 %v1733, %v1941
  %v2086 = vadd.f32 %v1734, %v1942
  %v2087 = vadd.f32 %v1735, %v1943
  %v2088 = vadd.f32 %v1736, %v1944
  %v2089 = vadd.f32 %v1737, %v1945
  %v2090 = vadd.f32 %v1738, %v1946
  %v2091 = vadd.f32 %v1739, %v1947
  %v2092 = vadd.f32 %v1740, %v1948
  %v2093 = vadd.f32 %v1741, %v1949
  %v2094 = vadd.f32 %v1742, %v1950
  %v2095 = vadd.f32 %v1743, %v1951
  %v2096 = vadd.f32 %v1744, %v1952
  %v2097 = vadd.f32 %v1745, %v1953
  %v2098 = vadd.f32 %v1746, %v1954
  %v2099 = vadd.f32 %v1747, %v1955
  %v2100 = vadd.f32 %v1748, %v1956
  %v2101 = vadd.f32 %v1749, %v1957
  %v2102 = vadd.f32 %v1750, %v1958
  %v2103 = vadd.f32 %v1751, %v1959
  %v2104 = vadd.f32 %v1752, %v1960
  %v2105 = vadd.f32 %v1753, %v1961
  %v2106 = vadd.f32 %v1754, %v1962
  %v2107 = vadd.f32 %v1755, %v1963
  %v2108 = vadd.f32 %v1756, %v1964
  %v2109 = vadd.f32 %v1757, %v1965
  %v2110 = vadd.f32 %v1758, %v1966
  %v2111 = vadd.f32 %v1759, %v1967
  %v2112 = vadd.f32 %v1760, %v1968
  %v2113 = vadd.f32 %v1761, %v1969
  %v2114 = vadd.f32 %v1762, %v1970
  %v2115 = vadd.f32 %v1763, %v1971
  %v2116 = vadd.f32 %v1764, %v1972
  %v2117 = vadd.f32 %v1765, %v1973
  %v2118 = vadd.f32 %v1766, %v1974
  %v2119 = vadd.f32 %v1767, %v1975
  %v2120 = vadd.f32 %v1768, %v1976
  %v2121 = vadd.f32 %v1769, %v1977
  %v2122 = vadd.f32 %v1770, %v1978
  %v2123 = vadd.f32 %v1771, %v1979
  %v2124 = vadd.f32 %v1772, %v1980
  %v2125 = vadd.f32 %v1773, %v1981
  %v2126 = vadd.f32 %v1774, %v1982
  %v2127 = vadd.f32 %v1775, %v1983
  %v2128 = vadd.f32 %v1776, %v1984
  %v2129 = vadd.f32 %v1777, %v1985
  %v2130 = vadd.f32 %v1778, %v1986
  %v2131 = vadd.f32 %v1779, %v1987
  %v2132 = vadd.f32 %v1780, %v1988
  %v2133 = vadd.f32 %v1781, %v1989
  %v2134 = vadd.f32 %v1782, %v1990
  %v2135 = vadd.f32 %v1783, %v1991
  %v2136 = vadd.f32 %v1784, %v1992
  %v2137 = vadd.f32 %v1785, %v1993
  %v2138 = vadd.f32 %v1786, %v1994
  %v2139 = vadd.f32 %v1787, %v1995
  %v2140 = vadd.f32 %v1788, %v1996
  %v2141 = vadd.f32 %v1789, %v1997
  %v2142 = vadd.f32 %v1790, %v1998
  %v2143 = vadd.f32 %v1791, %v1999
  %v2144 = vadd.f32 %v1792, %v2000
  %v2145 = vadd.f32 %v1793, %v2001
  %v2146 = vadd.f32 %v1794, %v2002
  %v2147 = vadd.f32 %v1795, %v2003
  %v2148 = vadd.f32 %v1796, %v2004
  %v2149 = vadd.f32 %v1797, %v2005
  %2151 = vset.pattern.permute.xlu0 0
  %2152 = vperm.xlu0 %2151, %v210
  %v2153 = vpop.permute.xlu0 %2152
  %v2155 = vlaneseq
  %v2156 = vshrl.u32 %v2155, 7
  %v2157 = vsub.s32 4, %v2156
  %v2158 = vrot.slane %v26, %v2157
  %v2159 = vmul.f32 %v294, %v2158
  %v2160 = vmul.f32 %v299, %v2158
  %v2161 = vmul.f32 %v304, %v2158
  %v2162 = vmul.f32 %v309, %v2158
  %v2163 = vmul.f32 %v314, %v2158
  %v2164 = vmul.f32 %v319, %v2158
  %v2165 = vmul.f32 %v324, %v2158
  %v2166 = vmul.f32 %v329, %v2158
  %v2167 = vmul.f32 %v334, %v2158
  %v2168 = vmul.f32 %v339, %v2158
  %v2169 = vmul.f32 %v344, %v2158
  %v2170 = vmul.f32 %v1102, %v2158
  %v2171 = vmul.f32 %v354, %v2158
  %v2172 = vmul.f32 %v359, %v2158
  %v2173 = vmul.f32 %v364, %v2158
  %v2174 = vmul.f32 %v369, %v2158
  %v2175 = vmul.f32 %v374, %v2158
  %v2176 = vmul.f32 %v379, %v2158
  %v2177 = vmul.f32 %v384, %v2158
  %v2178 = vmul.f32 %v389, %v2158
  %v2179 = vmul.f32 %v394, %v2158
  %v2180 = vmul.f32 %v399, %v2158
  %v2181 = vmul.f32 %v404, %v2158
  %v2182 = vmul.f32 %v1107, %v2158
  %v2183 = vmul.f32 %v414, %v2158
  %v2184 = vmul.f32 %v419, %v2158
  %v2185 = vmul.f32 %v424, %v2158
  %v2186 = vmul.f32 %v429, %v2158
  %v2187 = vmul.f32 %v434, %v2158
  %v2188 = vmul.f32 %v439, %v2158
  %v2189 = vmul.f32 %v444, %v2158
  %v2190 = vmul.f32 %v449, %v2158
  %v2191 = vmul.f32 %v454, %v2158
  %v2192 = vmul.f32 %v459, %v2158
  %v2193 = vmul.f32 %v464, %v2158
  %v2194 = vmul.f32 %v1112, %v2158
  %v2195 = vmul.f32 %v474, %v2158
  %v2196 = vmul.f32 %v479, %v2158
  %v2197 = vmul.f32 %v484, %v2158
  %v2198 = vmul.f32 %v489, %v2158
  %v2199 = vmul.f32 %v494, %v2158
  %v2200 = vmul.f32 %v499, %v2158
  %v2201 = vmul.f32 %v504, %v2158
  %v2202 = vmul.f32 %v509, %v2158
  %v2203 = vmul.f32 %v514, %v2158
  %v2204 = vmul.f32 %v519, %v2158
  %v2205 = vmul.f32 %v524, %v2158
  %v2206 = vmul.f32 %v1117, %v2158
  %v2207 = vmul.f32 %v534, %v2158
  %v2208 = vmul.f32 %v539, %v2158
  %v2209 = vmul.f32 %v544, %v2158
  %v2210 = vmul.f32 %v549, %v2158
  %v2211 = vmul.f32 %v554, %v2158
  %v2212 = vmul.f32 %v559, %v2158
  %v2213 = vmul.f32 %v564, %v2158
  %v2214 = vmul.f32 %v569, %v2158
  %v2215 = vmul.f32 %v574, %v2158
  %v2216 = vmul.f32 %v579, %v2158
  %v2217 = vmul.f32 %v584, %v2158
  %v2218 = vmul.f32 %v1122, %v2158
  %v2219 = vmul.f32 %v594, %v2158
  %v2220 = vmul.f32 %v599, %v2158
  %v2221 = vmul.f32 %v604, %v2158
  %v2222 = vmul.f32 %v609, %v2158
  %v2223 = vmul.f32 %v614, %v2158
  %v2224 = vmul.f32 %v619, %v2158
  %v2225 = vmul.f32 %v624, %v2158
  %v2226 = vmul.f32 %v629, %v2158
  %v2227 = vmul.f32 %v634, %v2158
  %v2228 = vmul.f32 %v639, %v2158
  %v2229 = vmul.f32 %v644, %v2158
  %v2230 = vmul.f32 %v1127, %v2158
  %v2231 = vmul.f32 %v654, %v2158
  %v2232 = vmul.f32 %v659, %v2158
  %v2233 = vmul.f32 %v664, %v2158
  %v2234 = vmul.f32 %v669, %v2158
  %v2235 = vmul.f32 %v674, %v2158
  %v2236 = vmul.f32 %v679, %v2158
  %v2237 = vmul.f32 %v684, %v2158
  %v2238 = vmul.f32 %v689, %v2158
  %v2239 = vmul.f32 %v694, %v2158
  %v2240 = vmul.f32 %v699, %v2158
  %v2241 = vmul.f32 %v704, %v2158
  %v2242 = vmul.f32 %v1132, %v2158
  %v2243 = vmul.f32 %v714, %v2158
  %v2244 = vmul.f32 %v719, %v2158
  %v2245 = vmul.f32 %v724, %v2158
  %v2246 = vmul.f32 %v729, %v2158
  %v2247 = vmul.f32 %v734, %v2158
  %v2248 = vmul.f32 %v739, %v2158
  %v2249 = vmul.f32 %v744, %v2158
  %v2250 = vmul.f32 %v749, %v2158
  %v2251 = vmul.f32 %v754, %v2158
  %v2252 = vmul.f32 %v759, %v2158
  %v2253 = vmul.f32 %v764, %v2158
  %v2254 = vmul.f32 %v1137, %v2158
  %v2255 = vmul.f32 %v774, %v2158
  %v2256 = vmul.f32 %v779, %v2158
  %v2257 = vmul.f32 %v784, %v2158
  %v2258 = vmul.f32 %v789, %v2158
  %v2259 = vmul.f32 %v794, %v2158
  %v2260 = vmul.f32 %v799, %v2158
  %v2261 = vmul.f32 %v804, %v2158
  %v2262 = vmul.f32 %v809, %v2158
  %v2263 = vmul.f32 %v814, %v2158
  %v2264 = vmul.f32 %v819, %v2158
  %v2265 = vmul.f32 %v824, %v2158
  %v2266 = vmul.f32 %v1142, %v2158
  %v2267 = vmul.f32 %v834, %v2158
  %v2268 = vmul.f32 %v839, %v2158
  %v2269 = vmul.f32 %v844, %v2158
  %v2270 = vmul.f32 %v849, %v2158
  %v2271 = vmul.f32 %v854, %v2158
  %v2272 = vmul.f32 %v859, %v2158
  %v2273 = vmul.f32 %v864, %v2158
  %v2274 = vmul.f32 %v869, %v2158
  %v2275 = vmul.f32 %v874, %v2158
  %v2276 = vmul.f32 %v879, %v2158
  %v2277 = vmul.f32 %v884, %v2158
  %v2278 = vmul.f32 %v1147, %v2158
  %v2279 = vmul.f32 %v894, %v2158
  %v2280 = vmul.f32 %v899, %v2158
  %v2281 = vmul.f32 %v904, %v2158
  %v2282 = vmul.f32 %v909, %v2158
  %v2283 = vmul.f32 %v914, %v2158
  %v2284 = vmul.f32 %v919, %v2158
  %v2285 = vmul.f32 %v924, %v2158
  %v2286 = vmul.f32 %v929, %v2158
  %v2287 = vmul.f32 %v934, %v2158
  %v2288 = vmul.f32 %v939, %v2158
  %v2289 = vmul.f32 %v944, %v2158
  %v2290 = vmul.f32 %v1152, %v2158
  %v2291 = vmul.f32 %v1806, %v2158
  %v2292 = vmul.f32 %v1811, %v2158
  %v2293 = vmul.f32 %v1816, %v2158
  %v2294 = vmul.f32 %v1821, %v2158
  %v2295 = vmul.f32 %v1826, %v2158
  %v2296 = vmul.f32 %v1831, %v2158
  %v2297 = vmul.f32 %v1836, %v2158
  %v2298 = vmul.f32 %v1841, %v2158
  %v2299 = vmul.f32 %v1846, %v2158
  %v2300 = vmul.f32 %v1851, %v2158
  %v2301 = vmul.f32 %v1856, %v2158
  %v2302 = vmul.f32 %v2153, %v2158
  %v2303 = vadd.f32 %v2006, %v2159
  %v2304 = vadd.f32 %v2007, %v2160
  %v2305 = vadd.f32 %v2008, %v2161
  %v2306 = vadd.f32 %v2009, %v2162
  %v2307 = vadd.f32 %v2010, %v2163
  %v2308 = vadd.f32 %v2011, %v2164
  %v2309 = vadd.f32 %v2012, %v2165
  %v2310 = vadd.f32 %v2013, %v2166
  %v2311 = vadd.f32 %v2014, %v2167
  %v2312 = vadd.f32 %v2015, %v2168
  %v2313 = vadd.f32 %v2016, %v2169
  %v2314 = vadd.f32 %v2017, %v2170
  %v2315 = vadd.f32 %v2018, %v2171
  %v2316 = vadd.f32 %v2019, %v2172
  %v2317 = vadd.f32 %v2020, %v2173
  %v2318 = vadd.f32 %v2021, %v2174
  %v2319 = vadd.f32 %v2022, %v2175
  %v2320 = vadd.f32 %v2023, %v2176
  %v2321 = vadd.f32 %v2024, %v2177
  %v2322 = vadd.f32 %v2025, %v2178
  %v2323 = vadd.f32 %v2026, %v2179
  %v2324 = vadd.f32 %v2027, %v2180
  %v2325 = vadd.f32 %v2028, %v2181
  %v2326 = vadd.f32 %v2029, %v2182
  %v2327 = vadd.f32 %v2030, %v2183
  %v2328 = vadd.f32 %v2031, %v2184
  %v2329 = vadd.f32 %v2032, %v2185
  %v2330 = vadd.f32 %v2033, %v2186
  %v2331 = vadd.f32 %v2034, %v2187
  %v2332 = vadd.f32 %v2035, %v2188
  %v2333 = vadd.f32 %v2036, %v2189
  %v2334 = vadd.f32 %v2037, %v2190
  %v2335 = vadd.f32 %v2038, %v2191
  %v2336 = vadd.f32 %v2039, %v2192
  %v2337 = vadd.f32 %v2040, %v2193
  %v2338 = vadd.f32 %v2041, %v2194
  %v2339 = vadd.f32 %v2042, %v2195
  %v2340 = vadd.f32 %v2043, %v2196
  %v2341 = vadd.f32 %v2044, %v2197
  %v2342 = vadd.f32 %v2045, %v2198
  %v2343 = vadd.f32 %v2046, %v2199
  %v2344 = vadd.f32 %v2047, %v2200
  %v2345 = vadd.f32 %v2048, %v2201
  %v2346 = vadd.f32 %v2049, %v2202
  %v2347 = vadd.f32 %v2050, %v2203
  %v2348 = vadd.f32 %v2051, %v2204
  %v2349 = vadd.f32 %v2052, %v2205
  %v2350 = vadd.f32 %v2053, %v2206
  %v2351 = vadd.f32 %v2054, %v2207
  %v2352 = vadd.f32 %v2055, %v2208
  %v2353 = vadd.f32 %v2056, %v2209
  %v2354 = vadd.f32 %v2057, %v2210
  %v2355 = vadd.f32 %v2058, %v2211
  %v2356 = vadd.f32 %v2059, %v2212
  %v2357 = vadd.f32 %v2060, %v2213
  %v2358 = vadd.f32 %v2061, %v2214
  %v2359 = vadd.f32 %v2062, %v2215
  %v2360 = vadd.f32 %v2063, %v2216
  %v2361 = vadd.f32 %v2064, %v2217
  %v2362 = vadd.f32 %v2065, %v2218
  %v2363 = vadd.f32 %v2066, %v2219
  %v2364 = vadd.f32 %v2067, %v2220
  %v2365 = vadd.f32 %v2068, %v2221
  %v2366 = vadd.f32 %v2069, %v2222
  %v2367 = vadd.f32 %v2070, %v2223
  %v2368 = vadd.f32 %v2071, %v2224
  %v2369 = vadd.f32 %v2072, %v2225
  %v2370 = vadd.f32 %v2073, %v2226
  %v2371 = vadd.f32 %v2074, %v2227
  %v2372 = vadd.f32 %v2075, %v2228
  %v2373 = vadd.f32 %v2076, %v2229
  %v2374 = vadd.f32 %v2077, %v2230
  %v2375 = vadd.f32 %v2078, %v2231
  %v2376 = vadd.f32 %v2079, %v2232
  %v2377 = vadd.f32 %v2080, %v2233
  %v2378 = vadd.f32 %v2081, %v2234
  %v2379 = vadd.f32 %v2082, %v2235
  %v2380 = vadd.f32 %v2083, %v2236
  %v2381 = vadd.f32 %v2084, %v2237
  %v2382 = vadd.f32 %v2085, %v2238
  %v2383 = vadd.f32 %v2086, %v2239
  %v2384 = vadd.f32 %v2087, %v2240
  %v2385 = vadd.f32 %v2088, %v2241
  %v2386 = vadd.f32 %v2089, %v2242
  %v2387 = vadd.f32 %v2090, %v2243
  %v2388 = vadd.f32 %v2091, %v2244
  %v2389 = vadd.f32 %v2092, %v2245
  %v2390 = vadd.f32 %v2093, %v2246
  %v2391 = vadd.f32 %v2094, %v2247
  %v2392 = vadd.f32 %v2095, %v2248
  %v2393 = vadd.f32 %v2096, %v2249
  %v2394 = vadd.f32 %v2097, %v2250
  %v2395 = vadd.f32 %v2098, %v2251
  %v2396 = vadd.f32 %v2099, %v2252
  %v2397 = vadd.f32 %v2100, %v2253
  %v2398 = vadd.f32 %v2101, %v2254
  %v2399 = vadd.f32 %v2102, %v2255
  %v2400 = vadd.f32 %v2103, %v2256
  %v2401 = vadd.f32 %v2104, %v2257
  %v2402 = vadd.f32 %v2105, %v2258
  %v2403 = vadd.f32 %v2106, %v2259
  %v2404 = vadd.f32 %v2107, %v2260
  %v2405 = vadd.f32 %v2108, %v2261
  %v2406 = vadd.f32 %v2109, %v2262
  %v2407 = vadd.f32 %v2110, %v2263
  %v2408 = vadd.f32 %v2111, %v2264
  %v2409 = vadd.f32 %v2112, %v2265
  %v2410 = vadd.f32 %v2113, %v2266
  %v2411 = vadd.f32 %v2114, %v2267
  %v2412 = vadd.f32 %v2115, %v2268
  %v2413 = vadd.f32 %v2116, %v2269
  %v2414 = vadd.f32 %v2117, %v2270
  %v2415 = vadd.f32 %v2118, %v2271
  %v2416 = vadd.f32 %v2119, %v2272
  %v2417 = vadd.f32 %v2120, %v2273
  %v2418 = vadd.f32 %v2121, %v2274
  %v2419 = vadd.f32 %v2122, %v2275
  %v2420 = vadd.f32 %v2123, %v2276
  %v2421 = vadd.f32 %v2124, %v2277
  %v2422 = vadd.f32 %v2125, %v2278
  %v2423 = vadd.f32 %v2126, %v2279
  %v2424 = vadd.f32 %v2127, %v2280
  %v2425 = vadd.f32 %v2128, %v2281
  %v2426 = vadd.f32 %v2129, %v2282
  %v2427 = vadd.f32 %v2130, %v2283
  %v2428 = vadd.f32 %v2131, %v2284
  %v2429 = vadd.f32 %v2132, %v2285
  %v2430 = vadd.f32 %v2133, %v2286
  %v2431 = vadd.f32 %v2134, %v2287
  %v2432 = vadd.f32 %v2135, %v2288
  %v2433 = vadd.f32 %v2136, %v2289
  %v2434 = vadd.f32 %v2137, %v2290
  %v2435 = vadd.f32 %v2138, %v2291
  %v2436 = vadd.f32 %v2139, %v2292
  %v2437 = vadd.f32 %v2140, %v2293
  %v2438 = vadd.f32 %v2141, %v2294
  %v2439 = vadd.f32 %v2142, %v2295
  %v2440 = vadd.f32 %v2143, %v2296
  %v2441 = vadd.f32 %v2144, %v2297
  %v2442 = vadd.f32 %v2145, %v2298
  %v2443 = vadd.f32 %v2146, %v2299
  %v2444 = vadd.f32 %v2147, %v2300
  %v2445 = vadd.f32 %v2148, %v2301
  %v2446 = vadd.f32 %v2149, %v2302
  %2448 = vset.pattern.permute.xlu0 0
  %2449 = vperm.xlu0 %2448, %v211
  %v2450 = vpop.permute.xlu0 %2449
  %v2452 = vlaneseq
  %v2453 = vshrl.u32 %v2452, 7
  %v2454 = vsub.s32 5, %v2453
  %v2455 = vrot.slane %v26, %v2454
  %v2456 = vmul.f32 %v299, %v2455
  %v2457 = vmul.f32 %v304, %v2455
  %v2458 = vmul.f32 %v309, %v2455
  %v2459 = vmul.f32 %v314, %v2455
  %v2460 = vmul.f32 %v319, %v2455
  %v2461 = vmul.f32 %v324, %v2455
  %v2462 = vmul.f32 %v329, %v2455
  %v2463 = vmul.f32 %v334, %v2455
  %v2464 = vmul.f32 %v339, %v2455
  %v2465 = vmul.f32 %v344, %v2455
  %v2466 = vmul.f32 %v1102, %v2455
  %v2467 = vmul.f32 %v1454, %v2455
  %v2468 = vmul.f32 %v359, %v2455
  %v2469 = vmul.f32 %v364, %v2455
  %v2470 = vmul.f32 %v369, %v2455
  %v2471 = vmul.f32 %v374, %v2455
  %v2472 = vmul.f32 %v379, %v2455
  %v2473 = vmul.f32 %v384, %v2455
  %v2474 = vmul.f32 %v389, %v2455
  %v2475 = vmul.f32 %v394, %v2455
  %v2476 = vmul.f32 %v399, %v2455
  %v2477 = vmul.f32 %v404, %v2455
  %v2478 = vmul.f32 %v1107, %v2455
  %v2479 = vmul.f32 %v1459, %v2455
  %v2480 = vmul.f32 %v419, %v2455
  %v2481 = vmul.f32 %v424, %v2455
  %v2482 = vmul.f32 %v429, %v2455
  %v2483 = vmul.f32 %v434, %v2455
  %v2484 = vmul.f32 %v439, %v2455
  %v2485 = vmul.f32 %v444, %v2455
  %v2486 = vmul.f32 %v449, %v2455
  %v2487 = vmul.f32 %v454, %v2455
  %v2488 = vmul.f32 %v459, %v2455
  %v2489 = vmul.f32 %v464, %v2455
  %v2490 = vmul.f32 %v1112, %v2455
  %v2491 = vmul.f32 %v1464, %v2455
  %v2492 = vmul.f32 %v479, %v2455
  %v2493 = vmul.f32 %v484, %v2455
  %v2494 = vmul.f32 %v489, %v2455
  %v2495 = vmul.f32 %v494, %v2455
  %v2496 = vmul.f32 %v499, %v2455
  %v2497 = vmul.f32 %v504, %v2455
  %v2498 = vmul.f32 %v509, %v2455
  %v2499 = vmul.f32 %v514, %v2455
  %v2500 = vmul.f32 %v519, %v2455
  %v2501 = vmul.f32 %v524, %v2455
  %v2502 = vmul.f32 %v1117, %v2455
  %v2503 = vmul.f32 %v1469, %v2455
  %v2504 = vmul.f32 %v539, %v2455
  %v2505 = vmul.f32 %v544, %v2455
  %v2506 = vmul.f32 %v549, %v2455
  %v2507 = vmul.f32 %v554, %v2455
  %v2508 = vmul.f32 %v559, %v2455
  %v2509 = vmul.f32 %v564, %v2455
  %v2510 = vmul.f32 %v569, %v2455
  %v2511 = vmul.f32 %v574, %v2455
  %v2512 = vmul.f32 %v579, %v2455
  %v2513 = vmul.f32 %v584, %v2455
  %v2514 = vmul.f32 %v1122, %v2455
  %v2515 = vmul.f32 %v1474, %v2455
  %v2516 = vmul.f32 %v599, %v2455
  %v2517 = vmul.f32 %v604, %v2455
  %v2518 = vmul.f32 %v609, %v2455
  %v2519 = vmul.f32 %v614, %v2455
  %v2520 = vmul.f32 %v619, %v2455
  %v2521 = vmul.f32 %v624, %v2455
  %v2522 = vmul.f32 %v629, %v2455
  %v2523 = vmul.f32 %v634, %v2455
  %v2524 = vmul.f32 %v639, %v2455
  %v2525 = vmul.f32 %v644, %v2455
  %v2526 = vmul.f32 %v1127, %v2455
  %v2527 = vmul.f32 %v1479, %v2455
  %v2528 = vmul.f32 %v659, %v2455
  %v2529 = vmul.f32 %v664, %v2455
  %v2530 = vmul.f32 %v669, %v2455
  %v2531 = vmul.f32 %v674, %v2455
  %v2532 = vmul.f32 %v679, %v2455
  %v2533 = vmul.f32 %v684, %v2455
  %v2534 = vmul.f32 %v689, %v2455
  %v2535 = vmul.f32 %v694, %v2455
  %v2536 = vmul.f32 %v699, %v2455
  %v2537 = vmul.f32 %v704, %v2455
  %v2538 = vmul.f32 %v1132, %v2455
  %v2539 = vmul.f32 %v1484, %v2455
  %v2540 = vmul.f32 %v719, %v2455
  %v2541 = vmul.f32 %v724, %v2455
  %v2542 = vmul.f32 %v729, %v2455
  %v2543 = vmul.f32 %v734, %v2455
  %v2544 = vmul.f32 %v739, %v2455
  %v2545 = vmul.f32 %v744, %v2455
  %v2546 = vmul.f32 %v749, %v2455
  %v2547 = vmul.f32 %v754, %v2455
  %v2548 = vmul.f32 %v759, %v2455
  %v2549 = vmul.f32 %v764, %v2455
  %v2550 = vmul.f32 %v1137, %v2455
  %v2551 = vmul.f32 %v1489, %v2455
  %v2552 = vmul.f32 %v779, %v2455
  %v2553 = vmul.f32 %v784, %v2455
  %v2554 = vmul.f32 %v789, %v2455
  %v2555 = vmul.f32 %v794, %v2455
  %v2556 = vmul.f32 %v799, %v2455
  %v2557 = vmul.f32 %v804, %v2455
  %v2558 = vmul.f32 %v809, %v2455
  %v2559 = vmul.f32 %v814, %v2455
  %v2560 = vmul.f32 %v819, %v2455
  %v2561 = vmul.f32 %v824, %v2455
  %v2562 = vmul.f32 %v1142, %v2455
  %v2563 = vmul.f32 %v1494, %v2455
  %v2564 = vmul.f32 %v839, %v2455
  %v2565 = vmul.f32 %v844, %v2455
  %v2566 = vmul.f32 %v849, %v2455
  %v2567 = vmul.f32 %v854, %v2455
  %v2568 = vmul.f32 %v859, %v2455
  %v2569 = vmul.f32 %v864, %v2455
  %v2570 = vmul.f32 %v869, %v2455
  %v2571 = vmul.f32 %v874, %v2455
  %v2572 = vmul.f32 %v879, %v2455
  %v2573 = vmul.f32 %v884, %v2455
  %v2574 = vmul.f32 %v1147, %v2455
  %v2575 = vmul.f32 %v1499, %v2455
  %v2576 = vmul.f32 %v899, %v2455
  %v2577 = vmul.f32 %v904, %v2455
  %v2578 = vmul.f32 %v909, %v2455
  %v2579 = vmul.f32 %v914, %v2455
  %v2580 = vmul.f32 %v919, %v2455
  %v2581 = vmul.f32 %v924, %v2455
  %v2582 = vmul.f32 %v929, %v2455
  %v2583 = vmul.f32 %v934, %v2455
  %v2584 = vmul.f32 %v939, %v2455
  %v2585 = vmul.f32 %v944, %v2455
  %v2586 = vmul.f32 %v1152, %v2455
  %v2587 = vmul.f32 %v1504, %v2455
  %v2588 = vmul.f32 %v1811, %v2455
  %v2589 = vmul.f32 %v1816, %v2455
  %v2590 = vmul.f32 %v1821, %v2455
  %v2591 = vmul.f32 %v1826, %v2455
  %v2592 = vmul.f32 %v1831, %v2455
  %v2593 = vmul.f32 %v1836, %v2455
  %v2594 = vmul.f32 %v1841, %v2455
  %v2595 = vmul.f32 %v1846, %v2455
  %v2596 = vmul.f32 %v1851, %v2455
  %v2597 = vmul.f32 %v1856, %v2455
  %v2598 = vmul.f32 %v2153, %v2455
  %v2599 = vmul.f32 %v2450, %v2455
  %v2600 = vadd.f32 %v2303, %v2456
  %v2601 = vadd.f32 %v2304, %v2457
  %v2602 = vadd.f32 %v2305, %v2458
  %v2603 = vadd.f32 %v2306, %v2459
  %v2604 = vadd.f32 %v2307, %v2460
  %v2605 = vadd.f32 %v2308, %v2461
  %v2606 = vadd.f32 %v2309, %v2462
  %v2607 = vadd.f32 %v2310, %v2463
  %v2608 = vadd.f32 %v2311, %v2464
  %v2609 = vadd.f32 %v2312, %v2465
  %v2610 = vadd.f32 %v2313, %v2466
  %v2611 = vadd.f32 %v2314, %v2467
  %v2612 = vadd.f32 %v2315, %v2468
  %v2613 = vadd.f32 %v2316, %v2469
  %v2614 = vadd.f32 %v2317, %v2470
  %v2615 = vadd.f32 %v2318, %v2471
  %v2616 = vadd.f32 %v2319, %v2472
  %v2617 = vadd.f32 %v2320, %v2473
  %v2618 = vadd.f32 %v2321, %v2474
  %v2619 = vadd.f32 %v2322, %v2475
  %v2620 = vadd.f32 %v2323, %v2476
  %v2621 = vadd.f32 %v2324, %v2477
  %v2622 = vadd.f32 %v2325, %v2478
  %v2623 = vadd.f32 %v2326, %v2479
  %v2624 = vadd.f32 %v2327, %v2480
  %v2625 = vadd.f32 %v2328, %v2481
  %v2626 = vadd.f32 %v2329, %v2482
  %v2627 = vadd.f32 %v2330, %v2483
  %v2628 = vadd.f32 %v2331, %v2484
  %v2629 = vadd.f32 %v2332, %v2485
  %v2630 = vadd.f32 %v2333, %v2486
  %v2631 = vadd.f32 %v2334, %v2487
  %v2632 = vadd.f32 %v2335, %v2488
  %v2633 = vadd.f32 %v2336, %v2489
  %v2634 = vadd.f32 %v2337, %v2490
  %v2635 = vadd.f32 %v2338, %v2491
  %v2636 = vadd.f32 %v2339, %v2492
  %v2637 = vadd.f32 %v2340, %v2493
  %v2638 = vadd.f32 %v2341, %v2494
  %v2639 = vadd.f32 %v2342, %v2495
  %v2640 = vadd.f32 %v2343, %v2496
  %v2641 = vadd.f32 %v2344, %v2497
  %v2642 = vadd.f32 %v2345, %v2498
  %v2643 = vadd.f32 %v2346, %v2499
  %v2644 = vadd.f32 %v2347, %v2500
  %v2645 = vadd.f32 %v2348, %v2501
  %v2646 = vadd.f32 %v2349, %v2502
  %v2647 = vadd.f32 %v2350, %v2503
  %v2648 = vadd.f32 %v2351, %v2504
  %v2649 = vadd.f32 %v2352, %v2505
  %v2650 = vadd.f32 %v2353, %v2506
  %v2651 = vadd.f32 %v2354, %v2507
  %v2652 = vadd.f32 %v2355, %v2508
  %v2653 = vadd.f32 %v2356, %v2509
  %v2654 = vadd.f32 %v2357, %v2510
  %v2655 = vadd.f32 %v2358, %v2511
  %v2656 = vadd.f32 %v2359, %v2512
  %v2657 = vadd.f32 %v2360, %v2513
  %v2658 = vadd.f32 %v2361, %v2514
  %v2659 = vadd.f32 %v2362, %v2515
  %v2660 = vadd.f32 %v2363, %v2516
  %v2661 = vadd.f32 %v2364, %v2517
  %v2662 = vadd.f32 %v2365, %v2518
  %v2663 = vadd.f32 %v2366, %v2519
  %v2664 = vadd.f32 %v2367, %v2520
  %v2665 = vadd.f32 %v2368, %v2521
  %v2666 = vadd.f32 %v2369, %v2522
  %v2667 = vadd.f32 %v2370, %v2523
  %v2668 = vadd.f32 %v2371, %v2524
  %v2669 = vadd.f32 %v2372, %v2525
  %v2670 = vadd.f32 %v2373, %v2526
  %v2671 = vadd.f32 %v2374, %v2527
  %v2672 = vadd.f32 %v2375, %v2528
  %v2673 = vadd.f32 %v2376, %v2529
  %v2674 = vadd.f32 %v2377, %v2530
  %v2675 = vadd.f32 %v2378, %v2531
  %v2676 = vadd.f32 %v2379, %v2532
  %v2677 = vadd.f32 %v2380, %v2533
  %v2678 = vadd.f32 %v2381, %v2534
  %v2679 = vadd.f32 %v2382, %v2535
  %v2680 = vadd.f32 %v2383, %v2536
  %v2681 = vadd.f32 %v2384, %v2537
  %v2682 = vadd.f32 %v2385, %v2538
  %v2683 = vadd.f32 %v2386, %v2539
  %v2684 = vadd.f32 %v2387, %v2540
  %v2685 = vadd.f32 %v2388, %v2541
  %v2686 = vadd.f32 %v2389, %v2542
  %v2687 = vadd.f32 %v2390, %v2543
  %v2688 = vadd.f32 %v2391, %v2544
  %v2689 = vadd.f32 %v2392, %v2545
  %v2690 = vadd.f32 %v2393, %v2546
  %v2691 = vadd.f32 %v2394, %v2547
  %v2692 = vadd.f32 %v2395, %v2548
  %v2693 = vadd.f32 %v2396, %v2549
  %v2694 = vadd.f32 %v2397, %v2550
  %v2695 = vadd.f32 %v2398, %v2551
  %v2696 = vadd.f32 %v2399, %v2552
  %v2697 = vadd.f32 %v2400, %v2553
  %v2698 = vadd.f32 %v2401, %v2554
  %v2699 = vadd.f32 %v2402, %v2555
  %v2700 = vadd.f32 %v2403, %v2556
  %v2701 = vadd.f32 %v2404, %v2557
  %v2702 = vadd.f32 %v2405, %v2558
  %v2703 = vadd.f32 %v2406, %v2559
  %v2704 = vadd.f32 %v2407, %v2560
  %v2705 = vadd.f32 %v2408, %v2561
  %v2706 = vadd.f32 %v2409, %v2562
  %v2707 = vadd.f32 %v2410, %v2563
  %v2708 = vadd.f32 %v2411, %v2564
  %v2709 = vadd.f32 %v2412, %v2565
  %v2710 = vadd.f32 %v2413, %v2566
  %v2711 = vadd.f32 %v2414, %v2567
  %v2712 = vadd.f32 %v2415, %v2568
  %v2713 = vadd.f32 %v2416, %v2569
  %v2714 = vadd.f32 %v2417, %v2570
  %v2715 = vadd.f32 %v2418, %v2571
  %v2716 = vadd.f32 %v2419, %v2572
  %v2717 = vadd.f32 %v2420, %v2573
  %v2718 = vadd.f32 %v2421, %v2574
  %v2719 = vadd.f32 %v2422, %v2575
  %v2720 = vadd.f32 %v2423, %v2576
  %v2721 = vadd.f32 %v2424, %v2577
  %v2722 = vadd.f32 %v2425, %v2578
  %v2723 = vadd.f32 %v2426, %v2579
  %v2724 = vadd.f32 %v2427, %v2580
  %v2725 = vadd.f32 %v2428, %v2581
  %v2726 = vadd.f32 %v2429, %v2582
  %v2727 = vadd.f32 %v2430, %v2583
  %v2728 = vadd.f32 %v2431, %v2584
  %v2729 = vadd.f32 %v2432, %v2585
  %v2730 = vadd.f32 %v2433, %v2586
  %v2731 = vadd.f32 %v2434, %v2587
  %v2732 = vadd.f32 %v2435, %v2588
  %v2733 = vadd.f32 %v2436, %v2589
  %v2734 = vadd.f32 %v2437, %v2590
  %v2735 = vadd.f32 %v2438, %v2591
  %v2736 = vadd.f32 %v2439, %v2592
  %v2737 = vadd.f32 %v2440, %v2593
  %v2738 = vadd.f32 %v2441, %v2594
  %v2739 = vadd.f32 %v2442, %v2595
  %v2740 = vadd.f32 %v2443, %v2596
  %v2741 = vadd.f32 %v2444, %v2597
  %v2742 = vadd.f32 %v2445, %v2598
  %v2743 = vadd.f32 %v2446, %v2599
  %2745 = vset.pattern.permute.xlu0 0
  %2746 = vperm.xlu0 %2745, %v212
  %v2747 = vpop.permute.xlu0 %2746
  %2750 = vset.pattern.permute.xlu0 0
  %2751 = vperm.xlu0 %2750, %v213
  %v2752 = vpop.permute.xlu0 %2751
  %2755 = vset.pattern.permute.xlu0 0
  %2756 = vperm.xlu0 %2755, %v214
  %v2757 = vpop.permute.xlu0 %2756
  %2760 = vset.pattern.permute.xlu0 0
  %2761 = vperm.xlu0 %2760, %v215
  %v2762 = vpop.permute.xlu0 %2761
  %2765 = vset.pattern.permute.xlu0 0
  %2766 = vperm.xlu0 %2765, %v216
  %v2767 = vpop.permute.xlu0 %2766
  %2770 = vset.pattern.permute.xlu0 0
  %2771 = vperm.xlu0 %2770, %v217
  %v2772 = vpop.permute.xlu0 %2771
  %2775 = vset.pattern.permute.xlu0 0
  %2776 = vperm.xlu0 %2775, %v218
  %v2777 = vpop.permute.xlu0 %2776
  %2780 = vset.pattern.permute.xlu0 0
  %2781 = vperm.xlu0 %2780, %v219
  %v2782 = vpop.permute.xlu0 %2781
  %2785 = vset.pattern.permute.xlu0 0
  %2786 = vperm.xlu0 %2785, %v220
  %v2787 = vpop.permute.xlu0 %2786
  %2790 = vset.pattern.permute.xlu0 0
  %2791 = vperm.xlu0 %2790, %v221
  %v2792 = vpop.permute.xlu0 %2791
  %2795 = vset.pattern.permute.xlu0 0
  %2796 = vperm.xlu0 %2795, %v222
  %v2797 = vpop.permute.xlu0 %2796
  %2800 = vset.pattern.permute.xlu0 0
  %2801 = vperm.xlu0 %2800, %v223
  %v2802 = vpop.permute.xlu0 %2801
  %v2804 = vlaneseq
  %v2805 = vshrl.u32 %v2804, 7
  %v2806 = vsub.s32 6, %v2805
  %v2807 = vrot.slane %v26, %v2806
  %v2808 = vmul.f32 %v349, %v2807
  %v2809 = vmul.f32 %v354, %v2807
  %v2810 = vmul.f32 %v359, %v2807
  %v2811 = vmul.f32 %v364, %v2807
  %v2812 = vmul.f32 %v369, %v2807
  %v2813 = vmul.f32 %v374, %v2807
  %v2814 = vmul.f32 %v379, %v2807
  %v2815 = vmul.f32 %v384, %v2807
  %v2816 = vmul.f32 %v389, %v2807
  %v2817 = vmul.f32 %v394, %v2807
  %v2818 = vmul.f32 %v399, %v2807
  %v2819 = vmul.f32 %v404, %v2807
  %v2820 = vmul.f32 %v409, %v2807
  %v2821 = vmul.f32 %v414, %v2807
  %v2822 = vmul.f32 %v419, %v2807
  %v2823 = vmul.f32 %v424, %v2807
  %v2824 = vmul.f32 %v429, %v2807
  %v2825 = vmul.f32 %v434, %v2807
  %v2826 = vmul.f32 %v439, %v2807
  %v2827 = vmul.f32 %v444, %v2807
  %v2828 = vmul.f32 %v449, %v2807
  %v2829 = vmul.f32 %v454, %v2807
  %v2830 = vmul.f32 %v459, %v2807
  %v2831 = vmul.f32 %v464, %v2807
  %v2832 = vmul.f32 %v469, %v2807
  %v2833 = vmul.f32 %v474, %v2807
  %v2834 = vmul.f32 %v479, %v2807
  %v2835 = vmul.f32 %v484, %v2807
  %v2836 = vmul.f32 %v489, %v2807
  %v2837 = vmul.f32 %v494, %v2807
  %v2838 = vmul.f32 %v499, %v2807
  %v2839 = vmul.f32 %v504, %v2807
  %v2840 = vmul.f32 %v509, %v2807
  %v2841 = vmul.f32 %v514, %v2807
  %v2842 = vmul.f32 %v519, %v2807
  %v2843 = vmul.f32 %v524, %v2807
  %v2844 = vmul.f32 %v529, %v2807
  %v2845 = vmul.f32 %v534, %v2807
  %v2846 = vmul.f32 %v539, %v2807
  %v2847 = vmul.f32 %v544, %v2807
  %v2848 = vmul.f32 %v549, %v2807
  %v2849 = vmul.f32 %v554, %v2807
  %v2850 = vmul.f32 %v559, %v2807
  %v2851 = vmul.f32 %v564, %v2807
  %v2852 = vmul.f32 %v569, %v2807
  %v2853 = vmul.f32 %v574, %v2807
  %v2854 = vmul.f32 %v579, %v2807
  %v2855 = vmul.f32 %v584, %v2807
  %v2856 = vmul.f32 %v589, %v2807
  %v2857 = vmul.f32 %v594, %v2807
  %v2858 = vmul.f32 %v599, %v2807
  %v2859 = vmul.f32 %v604, %v2807
  %v2860 = vmul.f32 %v609, %v2807
  %v2861 = vmul.f32 %v614, %v2807
  %v2862 = vmul.f32 %v619, %v2807
  %v2863 = vmul.f32 %v624, %v2807
  %v2864 = vmul.f32 %v629, %v2807
  %v2865 = vmul.f32 %v634, %v2807
  %v2866 = vmul.f32 %v639, %v2807
  %v2867 = vmul.f32 %v644, %v2807
  %v2868 = vmul.f32 %v649, %v2807
  %v2869 = vmul.f32 %v654, %v2807
  %v2870 = vmul.f32 %v659, %v2807
  %v2871 = vmul.f32 %v664, %v2807
  %v2872 = vmul.f32 %v669, %v2807
  %v2873 = vmul.f32 %v674, %v2807
  %v2874 = vmul.f32 %v679, %v2807
  %v2875 = vmul.f32 %v684, %v2807
  %v2876 = vmul.f32 %v689, %v2807
  %v2877 = vmul.f32 %v694, %v2807
  %v2878 = vmul.f32 %v699, %v2807
  %v2879 = vmul.f32 %v704, %v2807
  %v2880 = vmul.f32 %v709, %v2807
  %v2881 = vmul.f32 %v714, %v2807
  %v2882 = vmul.f32 %v719, %v2807
  %v2883 = vmul.f32 %v724, %v2807
  %v2884 = vmul.f32 %v729, %v2807
  %v2885 = vmul.f32 %v734, %v2807
  %v2886 = vmul.f32 %v739, %v2807
  %v2887 = vmul.f32 %v744, %v2807
  %v2888 = vmul.f32 %v749, %v2807
  %v2889 = vmul.f32 %v754, %v2807
  %v2890 = vmul.f32 %v759, %v2807
  %v2891 = vmul.f32 %v764, %v2807
  %v2892 = vmul.f32 %v769, %v2807
  %v2893 = vmul.f32 %v774, %v2807
  %v2894 = vmul.f32 %v779, %v2807
  %v2895 = vmul.f32 %v784, %v2807
  %v2896 = vmul.f32 %v789, %v2807
  %v2897 = vmul.f32 %v794, %v2807
  %v2898 = vmul.f32 %v799, %v2807
  %v2899 = vmul.f32 %v804, %v2807
  %v2900 = vmul.f32 %v809, %v2807
  %v2901 = vmul.f32 %v814, %v2807
  %v2902 = vmul.f32 %v819, %v2807
  %v2903 = vmul.f32 %v824, %v2807
  %v2904 = vmul.f32 %v829, %v2807
  %v2905 = vmul.f32 %v834, %v2807
  %v2906 = vmul.f32 %v839, %v2807
  %v2907 = vmul.f32 %v844, %v2807
  %v2908 = vmul.f32 %v849, %v2807
  %v2909 = vmul.f32 %v854, %v2807
  %v2910 = vmul.f32 %v859, %v2807
  %v2911 = vmul.f32 %v864, %v2807
  %v2912 = vmul.f32 %v869, %v2807
  %v2913 = vmul.f32 %v874, %v2807
  %v2914 = vmul.f32 %v879, %v2807
  %v2915 = vmul.f32 %v884, %v2807
  %v2916 = vmul.f32 %v889, %v2807
  %v2917 = vmul.f32 %v894, %v2807
  %v2918 = vmul.f32 %v899, %v2807
  %v2919 = vmul.f32 %v904, %v2807
  %v2920 = vmul.f32 %v909, %v2807
  %v2921 = vmul.f32 %v914, %v2807
  %v2922 = vmul.f32 %v919, %v2807
  %v2923 = vmul.f32 %v924, %v2807
  %v2924 = vmul.f32 %v929, %v2807
  %v2925 = vmul.f32 %v934, %v2807
  %v2926 = vmul.f32 %v939, %v2807
  %v2927 = vmul.f32 %v944, %v2807
  %v2928 = vmul.f32 %v1801, %v2807
  %v2929 = vmul.f32 %v1806, %v2807
  %v2930 = vmul.f32 %v1811, %v2807
  %v2931 = vmul.f32 %v1816, %v2807
  %v2932 = vmul.f32 %v1821, %v2807
  %v2933 = vmul.f32 %v1826, %v2807
  %v2934 = vmul.f32 %v1831, %v2807
  %v2935 = vmul.f32 %v1836, %v2807
  %v2936 = vmul.f32 %v1841, %v2807
  %v2937 = vmul.f32 %v1846, %v2807
  %v2938 = vmul.f32 %v1851, %v2807
  %v2939 = vmul.f32 %v1856, %v2807
  %v2940 = vmul.f32 %v2747, %v2807
  %v2941 = vmul.f32 %v2752, %v2807
  %v2942 = vmul.f32 %v2757, %v2807
  %v2943 = vmul.f32 %v2762, %v2807
  %v2944 = vmul.f32 %v2767, %v2807
  %v2945 = vmul.f32 %v2772, %v2807
  %v2946 = vmul.f32 %v2777, %v2807
  %v2947 = vmul.f32 %v2782, %v2807
  %v2948 = vmul.f32 %v2787, %v2807
  %v2949 = vmul.f32 %v2792, %v2807
  %v2950 = vmul.f32 %v2797, %v2807
  %v2951 = vmul.f32 %v2802, %v2807
  %v2952 = vadd.f32 %v2600, %v2808
  %v2953 = vadd.f32 %v2601, %v2809
  %v2954 = vadd.f32 %v2602, %v2810
  %v2955 = vadd.f32 %v2603, %v2811
  %v2956 = vadd.f32 %v2604, %v2812
  %v2957 = vadd.f32 %v2605, %v2813
  %v2958 = vadd.f32 %v2606, %v2814
  %v2959 = vadd.f32 %v2607, %v2815
  %v2960 = vadd.f32 %v2608, %v2816
  %v2961 = vadd.f32 %v2609, %v2817
  %v2962 = vadd.f32 %v2610, %v2818
  %v2963 = vadd.f32 %v2611, %v2819
  %v2964 = vadd.f32 %v2612, %v2820
  %v2965 = vadd.f32 %v2613, %v2821
  %v2966 = vadd.f32 %v2614, %v2822
  %v2967 = vadd.f32 %v2615, %v2823
  %v2968 = vadd.f32 %v2616, %v2824
  %v2969 = vadd.f32 %v2617, %v2825
  %v2970 = vadd.f32 %v2618, %v2826
  %v2971 = vadd.f32 %v2619, %v2827
  %v2972 = vadd.f32 %v2620, %v2828
  %v2973 = vadd.f32 %v2621, %v2829
  %v2974 = vadd.f32 %v2622, %v2830
  %v2975 = vadd.f32 %v2623, %v2831
  %v2976 = vadd.f32 %v2624, %v2832
  %v2977 = vadd.f32 %v2625, %v2833
  %v2978 = vadd.f32 %v2626, %v2834
  %v2979 = vadd.f32 %v2627, %v2835
  %v2980 = vadd.f32 %v2628, %v2836
  %v2981 = vadd.f32 %v2629, %v2837
  %v2982 = vadd.f32 %v2630, %v2838
  %v2983 = vadd.f32 %v2631, %v2839
  %v2984 = vadd.f32 %v2632, %v2840
  %v2985 = vadd.f32 %v2633, %v2841
  %v2986 = vadd.f32 %v2634, %v2842
  %v2987 = vadd.f32 %v2635, %v2843
  %v2988 = vadd.f32 %v2636, %v2844
  %v2989 = vadd.f32 %v2637, %v2845
  %v2990 = vadd.f32 %v2638, %v2846
  %v2991 = vadd.f32 %v2639, %v2847
  %v2992 = vadd.f32 %v2640, %v2848
  %v2993 = vadd.f32 %v2641, %v2849
  %v2994 = vadd.f32 %v2642, %v2850
  %v2995 = vadd.f32 %v2643, %v2851
  %v2996 = vadd.f32 %v2644, %v2852
  %v2997 = vadd.f32 %v2645, %v2853
  %v2998 = vadd.f32 %v2646, %v2854
  %v2999 = vadd.f32 %v2647, %v2855
  %v3000 = vadd.f32 %v2648, %v2856
  %v3001 = vadd.f32 %v2649, %v2857
  %v3002 = vadd.f32 %v2650, %v2858
  %v3003 = vadd.f32 %v2651, %v2859
  %v3004 = vadd.f32 %v2652, %v2860
  %v3005 = vadd.f32 %v2653, %v2861
  %v3006 = vadd.f32 %v2654, %v2862
  %v3007 = vadd.f32 %v2655, %v2863
  %v3008 = vadd.f32 %v2656, %v2864
  %v3009 = vadd.f32 %v2657, %v2865
  %v3010 = vadd.f32 %v2658, %v2866
  %v3011 = vadd.f32 %v2659, %v2867
  %v3012 = vadd.f32 %v2660, %v2868
  %v3013 = vadd.f32 %v2661, %v2869
  %v3014 = vadd.f32 %v2662, %v2870
  %v3015 = vadd.f32 %v2663, %v2871
  %v3016 = vadd.f32 %v2664, %v2872
  %v3017 = vadd.f32 %v2665, %v2873
  %v3018 = vadd.f32 %v2666, %v2874
  %v3019 = vadd.f32 %v2667, %v2875
  %v3020 = vadd.f32 %v2668, %v2876
  %v3021 = vadd.f32 %v2669, %v2877
  %v3022 = vadd.f32 %v2670, %v2878
  %v3023 = vadd.f32 %v2671, %v2879
  %v3024 = vadd.f32 %v2672, %v2880
  %v3025 = vadd.f32 %v2673, %v2881
  %v3026 = vadd.f32 %v2674, %v2882
  %v3027 = vadd.f32 %v2675, %v2883
  %v3028 = vadd.f32 %v2676, %v2884
  %v3029 = vadd.f32 %v2677, %v2885
  %v3030 = vadd.f32 %v2678, %v2886
  %v3031 = vadd.f32 %v2679, %v2887
  %v3032 = vadd.f32 %v2680, %v2888
  %v3033 = vadd.f32 %v2681, %v2889
  %v3034 = vadd.f32 %v2682, %v2890
  %v3035 = vadd.f32 %v2683, %v2891
  %v3036 = vadd.f32 %v2684, %v2892
  %v3037 = vadd.f32 %v2685, %v2893
  %v3038 = vadd.f32 %v2686, %v2894
  %v3039 = vadd.f32 %v2687, %v2895
  %v3040 = vadd.f32 %v2688, %v2896
  %v3041 = vadd.f32 %v2689, %v2897
  %v3042 = vadd.f32 %v2690, %v2898
  %v3043 = vadd.f32 %v2691, %v2899
  %v3044 = vadd.f32 %v2692, %v2900
  %v3045 = vadd.f32 %v2693, %v2901
  %v3046 = vadd.f32 %v2694, %v2902
  %v3047 = vadd.f32 %v2695, %v2903
  %v3048 = vadd.f32 %v2696, %v2904
  %v3049 = vadd.f32 %v2697, %v2905
  %v3050 = vadd.f32 %v2698, %v2906
  %v3051 = vadd.f32 %v2699, %v2907
  %v3052 = vadd.f32 %v2700, %v2908
  %v3053 = vadd.f32 %v2701, %v2909
  %v3054 = vadd.f32 %v2702, %v2910
  %v3055 = vadd.f32 %v2703, %v2911
  %v3056 = vadd.f32 %v2704, %v2912
  %v3057 = vadd.f32 %v2705, %v2913
  %v3058 = vadd.f32 %v2706, %v2914
  %v3059 = vadd.f32 %v2707, %v2915
  %v3060 = vadd.f32 %v2708, %v2916
  %v3061 = vadd.f32 %v2709, %v2917
  %v3062 = vadd.f32 %v2710, %v2918
  %v3063 = vadd.f32 %v2711, %v2919
  %v3064 = vadd.f32 %v2712, %v2920
  %v3065 = vadd.f32 %v2713, %v2921
  %v3066 = vadd.f32 %v2714, %v2922
  %v3067 = vadd.f32 %v2715, %v2923
  %v3068 = vadd.f32 %v2716, %v2924
  %v3069 = vadd.f32 %v2717, %v2925
  %v3070 = vadd.f32 %v2718, %v2926
  %v3071 = vadd.f32 %v2719, %v2927
  %v3072 = vadd.f32 %v2720, %v2928
  %v3073 = vadd.f32 %v2721, %v2929
  %v3074 = vadd.f32 %v2722, %v2930
  %v3075 = vadd.f32 %v2723, %v2931
  %v3076 = vadd.f32 %v2724, %v2932
  %v3077 = vadd.f32 %v2725, %v2933
  %v3078 = vadd.f32 %v2726, %v2934
  %v3079 = vadd.f32 %v2727, %v2935
  %v3080 = vadd.f32 %v2728, %v2936
  %v3081 = vadd.f32 %v2729, %v2937
  %v3082 = vadd.f32 %v2730, %v2938
  %v3083 = vadd.f32 %v2731, %v2939
  %v3084 = vadd.f32 %v2732, %v2940
  %v3085 = vadd.f32 %v2733, %v2941
  %v3086 = vadd.f32 %v2734, %v2942
  %v3087 = vadd.f32 %v2735, %v2943
  %v3088 = vadd.f32 %v2736, %v2944
  %v3089 = vadd.f32 %v2737, %v2945
  %v3090 = vadd.f32 %v2738, %v2946
  %v3091 = vadd.f32 %v2739, %v2947
  %v3092 = vadd.f32 %v2740, %v2948
  %v3093 = vadd.f32 %v2741, %v2949
  %v3094 = vadd.f32 %v2742, %v2950
  %v3095 = vadd.f32 %v2743, %v2951
  %3097 = vset.pattern.permute.xlu0 0
  %3098 = vperm.xlu0 %3097, %v224
  %v3099 = vpop.permute.xlu0 %3098
  %v3101 = vlaneseq
  %v3102 = vshrl.u32 %v3101, 7
  %v3103 = vsub.s32 7, %v3102
  %v3104 = vrot.slane %v26, %v3103
  %v3105 = vmul.f32 %v354, %v3104
  %v3106 = vmul.f32 %v359, %v3104
  %v3107 = vmul.f32 %v364, %v3104
  %v3108 = vmul.f32 %v369, %v3104
  %v3109 = vmul.f32 %v374, %v3104
  %v3110 = vmul.f32 %v379, %v3104
  %v3111 = vmul.f32 %v384, %v3104
  %v3112 = vmul.f32 %v389, %v3104
  %v3113 = vmul.f32 %v394, %v3104
  %v3114 = vmul.f32 %v399, %v3104
  %v3115 = vmul.f32 %v404, %v3104
  %v3116 = vmul.f32 %v1107, %v3104
  %v3117 = vmul.f32 %v414, %v3104
  %v3118 = vmul.f32 %v419, %v3104
  %v3119 = vmul.f32 %v424, %v3104
  %v3120 = vmul.f32 %v429, %v3104
  %v3121 = vmul.f32 %v434, %v3104
  %v3122 = vmul.f32 %v439, %v3104
  %v3123 = vmul.f32 %v444, %v3104
  %v3124 = vmul.f32 %v449, %v3104
  %v3125 = vmul.f32 %v454, %v3104
  %v3126 = vmul.f32 %v459, %v3104
  %v3127 = vmul.f32 %v464, %v3104
  %v3128 = vmul.f32 %v1112, %v3104
  %v3129 = vmul.f32 %v474, %v3104
  %v3130 = vmul.f32 %v479, %v3104
  %v3131 = vmul.f32 %v484, %v3104
  %v3132 = vmul.f32 %v489, %v3104
  %v3133 = vmul.f32 %v494, %v3104
  %v3134 = vmul.f32 %v499, %v3104
  %v3135 = vmul.f32 %v504, %v3104
  %v3136 = vmul.f32 %v509, %v3104
  %v3137 = vmul.f32 %v514, %v3104
  %v3138 = vmul.f32 %v519, %v3104
  %v3139 = vmul.f32 %v524, %v3104
  %v3140 = vmul.f32 %v1117, %v3104
  %v3141 = vmul.f32 %v534, %v3104
  %v3142 = vmul.f32 %v539, %v3104
  %v3143 = vmul.f32 %v544, %v3104
  %v3144 = vmul.f32 %v549, %v3104
  %v3145 = vmul.f32 %v554, %v3104
  %v3146 = vmul.f32 %v559, %v3104
  %v3147 = vmul.f32 %v564, %v3104
  %v3148 = vmul.f32 %v569, %v3104
  %v3149 = vmul.f32 %v574, %v3104
  %v3150 = vmul.f32 %v579, %v3104
  %v3151 = vmul.f32 %v584, %v3104
  %v3152 = vmul.f32 %v1122, %v3104
  %v3153 = vmul.f32 %v594, %v3104
  %v3154 = vmul.f32 %v599, %v3104
  %v3155 = vmul.f32 %v604, %v3104
  %v3156 = vmul.f32 %v609, %v3104
  %v3157 = vmul.f32 %v614, %v3104
  %v3158 = vmul.f32 %v619, %v3104
  %v3159 = vmul.f32 %v624, %v3104
  %v3160 = vmul.f32 %v629, %v3104
  %v3161 = vmul.f32 %v634, %v3104
  %v3162 = vmul.f32 %v639, %v3104
  %v3163 = vmul.f32 %v644, %v3104
  %v3164 = vmul.f32 %v1127, %v3104
  %v3165 = vmul.f32 %v654, %v3104
  %v3166 = vmul.f32 %v659, %v3104
  %v3167 = vmul.f32 %v664, %v3104
  %v3168 = vmul.f32 %v669, %v3104
  %v3169 = vmul.f32 %v674, %v3104
  %v3170 = vmul.f32 %v679, %v3104
  %v3171 = vmul.f32 %v684, %v3104
  %v3172 = vmul.f32 %v689, %v3104
  %v3173 = vmul.f32 %v694, %v3104
  %v3174 = vmul.f32 %v699, %v3104
  %v3175 = vmul.f32 %v704, %v3104
  %v3176 = vmul.f32 %v1132, %v3104
  %v3177 = vmul.f32 %v714, %v3104
  %v3178 = vmul.f32 %v719, %v3104
  %v3179 = vmul.f32 %v724, %v3104
  %v3180 = vmul.f32 %v729, %v3104
  %v3181 = vmul.f32 %v734, %v3104
  %v3182 = vmul.f32 %v739, %v3104
  %v3183 = vmul.f32 %v744, %v3104
  %v3184 = vmul.f32 %v749, %v3104
  %v3185 = vmul.f32 %v754, %v3104
  %v3186 = vmul.f32 %v759, %v3104
  %v3187 = vmul.f32 %v764, %v3104
  %v3188 = vmul.f32 %v1137, %v3104
  %v3189 = vmul.f32 %v774, %v3104
  %v3190 = vmul.f32 %v779, %v3104
  %v3191 = vmul.f32 %v784, %v3104
  %v3192 = vmul.f32 %v789, %v3104
  %v3193 = vmul.f32 %v794, %v3104
  %v3194 = vmul.f32 %v799, %v3104
  %v3195 = vmul.f32 %v804, %v3104
  %v3196 = vmul.f32 %v809, %v3104
  %v3197 = vmul.f32 %v814, %v3104
  %v3198 = vmul.f32 %v819, %v3104
  %v3199 = vmul.f32 %v824, %v3104
  %v3200 = vmul.f32 %v1142, %v3104
  %v3201 = vmul.f32 %v834, %v3104
  %v3202 = vmul.f32 %v839, %v3104
  %v3203 = vmul.f32 %v844, %v3104
  %v3204 = vmul.f32 %v849, %v3104
  %v3205 = vmul.f32 %v854, %v3104
  %v3206 = vmul.f32 %v859, %v3104
  %v3207 = vmul.f32 %v864, %v3104
  %v3208 = vmul.f32 %v869, %v3104
  %v3209 = vmul.f32 %v874, %v3104
  %v3210 = vmul.f32 %v879, %v3104
  %v3211 = vmul.f32 %v884, %v3104
  %v3212 = vmul.f32 %v1147, %v3104
  %v3213 = vmul.f32 %v894, %v3104
  %v3214 = vmul.f32 %v899, %v3104
  %v3215 = vmul.f32 %v904, %v3104
  %v3216 = vmul.f32 %v909, %v3104
  %v3217 = vmul.f32 %v914, %v3104
  %v3218 = vmul.f32 %v919, %v3104
  %v3219 = vmul.f32 %v924, %v3104
  %v3220 = vmul.f32 %v929, %v3104
  %v3221 = vmul.f32 %v934, %v3104
  %v3222 = vmul.f32 %v939, %v3104
  %v3223 = vmul.f32 %v944, %v3104
  %v3224 = vmul.f32 %v1152, %v3104
  %v3225 = vmul.f32 %v1806, %v3104
  %v3226 = vmul.f32 %v1811, %v3104
  %v3227 = vmul.f32 %v1816, %v3104
  %v3228 = vmul.f32 %v1821, %v3104
  %v3229 = vmul.f32 %v1826, %v3104
  %v3230 = vmul.f32 %v1831, %v3104
  %v3231 = vmul.f32 %v1836, %v3104
  %v3232 = vmul.f32 %v1841, %v3104
  %v3233 = vmul.f32 %v1846, %v3104
  %v3234 = vmul.f32 %v1851, %v3104
  %v3235 = vmul.f32 %v1856, %v3104
  %v3236 = vmul.f32 %v2153, %v3104
  %v3237 = vmul.f32 %v2752, %v3104
  %v3238 = vmul.f32 %v2757, %v3104
  %v3239 = vmul.f32 %v2762, %v3104
  %v3240 = vmul.f32 %v2767, %v3104
  %v3241 = vmul.f32 %v2772, %v3104
  %v3242 = vmul.f32 %v2777, %v3104
  %v3243 = vmul.f32 %v2782, %v3104
  %v3244 = vmul.f32 %v2787, %v3104
  %v3245 = vmul.f32 %v2792, %v3104
  %v3246 = vmul.f32 %v2797, %v3104
  %v3247 = vmul.f32 %v2802, %v3104
  %v3248 = vmul.f32 %v3099, %v3104
  %v3249 = vadd.f32 %v2952, %v3105
  %v3250 = vadd.f32 %v2953, %v3106
  %v3251 = vadd.f32 %v2954, %v3107
  %v3252 = vadd.f32 %v2955, %v3108
  %v3253 = vadd.f32 %v2956, %v3109
  %v3254 = vadd.f32 %v2957, %v3110
  %v3255 = vadd.f32 %v2958, %v3111
  %v3256 = vadd.f32 %v2959, %v3112
  %v3257 = vadd.f32 %v2960, %v3113
  %v3258 = vadd.f32 %v2961, %v3114
  %v3259 = vadd.f32 %v2962, %v3115
  %v3260 = vadd.f32 %v2963, %v3116
  %v3261 = vadd.f32 %v2964, %v3117
  %v3262 = vadd.f32 %v2965, %v3118
  %v3263 = vadd.f32 %v2966, %v3119
  %v3264 = vadd.f32 %v2967, %v3120
  %v3265 = vadd.f32 %v2968, %v3121
  %v3266 = vadd.f32 %v2969, %v3122
  %v3267 = vadd.f32 %v2970, %v3123
  %v3268 = vadd.f32 %v2971, %v3124
  %v3269 = vadd.f32 %v2972, %v3125
  %v3270 = vadd.f32 %v2973, %v3126
  %v3271 = vadd.f32 %v2974, %v3127
  %v3272 = vadd.f32 %v2975, %v3128
  %v3273 = vadd.f32 %v2976, %v3129
  %v3274 = vadd.f32 %v2977, %v3130
  %v3275 = vadd.f32 %v2978, %v3131
  %v3276 = vadd.f32 %v2979, %v3132
  %v3277 = vadd.f32 %v2980, %v3133
  %v3278 = vadd.f32 %v2981, %v3134
  %v3279 = vadd.f32 %v2982, %v3135
  %v3280 = vadd.f32 %v2983, %v3136
  %v3281 = vadd.f32 %v2984, %v3137
  %v3282 = vadd.f32 %v2985, %v3138
  %v3283 = vadd.f32 %v2986, %v3139
  %v3284 = vadd.f32 %v2987, %v3140
  %v3285 = vadd.f32 %v2988, %v3141
  %v3286 = vadd.f32 %v2989, %v3142
  %v3287 = vadd.f32 %v2990, %v3143
  %v3288 = vadd.f32 %v2991, %v3144
  %v3289 = vadd.f32 %v2992, %v3145
  %v3290 = vadd.f32 %v2993, %v3146
  %v3291 = vadd.f32 %v2994, %v3147
  %v3292 = vadd.f32 %v2995, %v3148
  %v3293 = vadd.f32 %v2996, %v3149
  %v3294 = vadd.f32 %v2997, %v3150
  %v3295 = vadd.f32 %v2998, %v3151
  %v3296 = vadd.f32 %v2999, %v3152
  %v3297 = vadd.f32 %v3000, %v3153
  %v3298 = vadd.f32 %v3001, %v3154
  %v3299 = vadd.f32 %v3002, %v3155
  %v3300 = vadd.f32 %v3003, %v3156
  %v3301 = vadd.f32 %v3004, %v3157
  %v3302 = vadd.f32 %v3005, %v3158
  %v3303 = vadd.f32 %v3006, %v3159
  %v3304 = vadd.f32 %v3007, %v3160
  %v3305 = vadd.f32 %v3008, %v3161
  %v3306 = vadd.f32 %v3009, %v3162
  %v3307 = vadd.f32 %v3010, %v3163
  %v3308 = vadd.f32 %v3011, %v3164
  %v3309 = vadd.f32 %v3012, %v3165
  %v3310 = vadd.f32 %v3013, %v3166
  %v3311 = vadd.f32 %v3014, %v3167
  %v3312 = vadd.f32 %v3015, %v3168
  %v3313 = vadd.f32 %v3016, %v3169
  %v3314 = vadd.f32 %v3017, %v3170
  %v3315 = vadd.f32 %v3018, %v3171
  %v3316 = vadd.f32 %v3019, %v3172
  %v3317 = vadd.f32 %v3020, %v3173
  %v3318 = vadd.f32 %v3021, %v3174
  %v3319 = vadd.f32 %v3022, %v3175
  %v3320 = vadd.f32 %v3023, %v3176
  %v3321 = vadd.f32 %v3024, %v3177
  %v3322 = vadd.f32 %v3025, %v3178
  %v3323 = vadd.f32 %v3026, %v3179
  %v3324 = vadd.f32 %v3027, %v3180
  %v3325 = vadd.f32 %v3028, %v3181
  %v3326 = vadd.f32 %v3029, %v3182
  %v3327 = vadd.f32 %v3030, %v3183
  %v3328 = vadd.f32 %v3031, %v3184
  %v3329 = vadd.f32 %v3032, %v3185
  %v3330 = vadd.f32 %v3033, %v3186
  %v3331 = vadd.f32 %v3034, %v3187
  %v3332 = vadd.f32 %v3035, %v3188
  %v3333 = vadd.f32 %v3036, %v3189
  %v3334 = vadd.f32 %v3037, %v3190
  %v3335 = vadd.f32 %v3038, %v3191
  %v3336 = vadd.f32 %v3039, %v3192
  %v3337 = vadd.f32 %v3040, %v3193
  %v3338 = vadd.f32 %v3041, %v3194
  %v3339 = vadd.f32 %v3042, %v3195
  %v3340 = vadd.f32 %v3043, %v3196
  %v3341 = vadd.f32 %v3044, %v3197
  %v3342 = vadd.f32 %v3045, %v3198
  %v3343 = vadd.f32 %v3046, %v3199
  %v3344 = vadd.f32 %v3047, %v3200
  %v3345 = vadd.f32 %v3048, %v3201
  %v3346 = vadd.f32 %v3049, %v3202
  %v3347 = vadd.f32 %v3050, %v3203
  %v3348 = vadd.f32 %v3051, %v3204
  %v3349 = vadd.f32 %v3052, %v3205
  %v3350 = vadd.f32 %v3053, %v3206
  %v3351 = vadd.f32 %v3054, %v3207
  %v3352 = vadd.f32 %v3055, %v3208
  %v3353 = vadd.f32 %v3056, %v3209
  %v3354 = vadd.f32 %v3057, %v3210
  %v3355 = vadd.f32 %v3058, %v3211
  %v3356 = vadd.f32 %v3059, %v3212
  %v3357 = vadd.f32 %v3060, %v3213
  %v3358 = vadd.f32 %v3061, %v3214
  %v3359 = vadd.f32 %v3062, %v3215
  %v3360 = vadd.f32 %v3063, %v3216
  %v3361 = vadd.f32 %v3064, %v3217
  %v3362 = vadd.f32 %v3065, %v3218
  %v3363 = vadd.f32 %v3066, %v3219
  %v3364 = vadd.f32 %v3067, %v3220
  %v3365 = vadd.f32 %v3068, %v3221
  %v3366 = vadd.f32 %v3069, %v3222
  %v3367 = vadd.f32 %v3070, %v3223
  %v3368 = vadd.f32 %v3071, %v3224
  %v3369 = vadd.f32 %v3072, %v3225
  %v3370 = vadd.f32 %v3073, %v3226
  %v3371 = vadd.f32 %v3074, %v3227
  %v3372 = vadd.f32 %v3075, %v3228
  %v3373 = vadd.f32 %v3076, %v3229
  %v3374 = vadd.f32 %v3077, %v3230
  %v3375 = vadd.f32 %v3078, %v3231
  %v3376 = vadd.f32 %v3079, %v3232
  %v3377 = vadd.f32 %v3080, %v3233
  %v3378 = vadd.f32 %v3081, %v3234
  %v3379 = vadd.f32 %v3082, %v3235
  %v3380 = vadd.f32 %v3083, %v3236
  %v3381 = vadd.f32 %v3084, %v3237
  %v3382 = vadd.f32 %v3085, %v3238
  %v3383 = vadd.f32 %v3086, %v3239
  %v3384 = vadd.f32 %v3087, %v3240
  %v3385 = vadd.f32 %v3088, %v3241
  %v3386 = vadd.f32 %v3089, %v3242
  %v3387 = vadd.f32 %v3090, %v3243
  %v3388 = vadd.f32 %v3091, %v3244
  %v3389 = vadd.f32 %v3092, %v3245
  %v3390 = vadd.f32 %v3093, %v3246
  %v3391 = vadd.f32 %v3094, %v3247
  %v3392 = vadd.f32 %v3095, %v3248
  %3394 = vset.pattern.permute.xlu0 0
  %3395 = vperm.xlu0 %3394, %v225
  %v3396 = vpop.permute.xlu0 %3395
  %v3398 = vlaneseq
  %v3399 = vshrl.u32 %v3398, 7
  %v3400 = vsub.s32 0, %v3399
  %v3401 = vrot.slane %v27, %v3400
  %v3402 = vmul.f32 %v359, %v3401
  %v3403 = vmul.f32 %v364, %v3401
  %v3404 = vmul.f32 %v369, %v3401
  %v3405 = vmul.f32 %v374, %v3401
  %v3406 = vmul.f32 %v379, %v3401
  %v3407 = vmul.f32 %v384, %v3401
  %v3408 = vmul.f32 %v389, %v3401
  %v3409 = vmul.f32 %v394, %v3401
  %v3410 = vmul.f32 %v399, %v3401
  %v3411 = vmul.f32 %v404, %v3401
  %v3412 = vmul.f32 %v1107, %v3401
  %v3413 = vmul.f32 %v1459, %v3401
  %v3414 = vmul.f32 %v419, %v3401
  %v3415 = vmul.f32 %v424, %v3401
  %v3416 = vmul.f32 %v429, %v3401
  %v3417 = vmul.f32 %v434, %v3401
  %v3418 = vmul.f32 %v439, %v3401
  %v3419 = vmul.f32 %v444, %v3401
  %v3420 = vmul.f32 %v449, %v3401
  %v3421 = vmul.f32 %v454, %v3401
  %v3422 = vmul.f32 %v459, %v3401
  %v3423 = vmul.f32 %v464, %v3401
  %v3424 = vmul.f32 %v1112, %v3401
  %v3425 = vmul.f32 %v1464, %v3401
  %v3426 = vmul.f32 %v479, %v3401
  %v3427 = vmul.f32 %v484, %v3401
  %v3428 = vmul.f32 %v489, %v3401
  %v3429 = vmul.f32 %v494, %v3401
  %v3430 = vmul.f32 %v499, %v3401
  %v3431 = vmul.f32 %v504, %v3401
  %v3432 = vmul.f32 %v509, %v3401
  %v3433 = vmul.f32 %v514, %v3401
  %v3434 = vmul.f32 %v519, %v3401
  %v3435 = vmul.f32 %v524, %v3401
  %v3436 = vmul.f32 %v1117, %v3401
  %v3437 = vmul.f32 %v1469, %v3401
  %v3438 = vmul.f32 %v539, %v3401
  %v3439 = vmul.f32 %v544, %v3401
  %v3440 = vmul.f32 %v549, %v3401
  %v3441 = vmul.f32 %v554, %v3401
  %v3442 = vmul.f32 %v559, %v3401
  %v3443 = vmul.f32 %v564, %v3401
  %v3444 = vmul.f32 %v569, %v3401
  %v3445 = vmul.f32 %v574, %v3401
  %v3446 = vmul.f32 %v579, %v3401
  %v3447 = vmul.f32 %v584, %v3401
  %v3448 = vmul.f32 %v1122, %v3401
  %v3449 = vmul.f32 %v1474, %v3401
  %v3450 = vmul.f32 %v599, %v3401
  %v3451 = vmul.f32 %v604, %v3401
  %v3452 = vmul.f32 %v609, %v3401
  %v3453 = vmul.f32 %v614, %v3401
  %v3454 = vmul.f32 %v619, %v3401
  %v3455 = vmul.f32 %v624, %v3401
  %v3456 = vmul.f32 %v629, %v3401
  %v3457 = vmul.f32 %v634, %v3401
  %v3458 = vmul.f32 %v639, %v3401
  %v3459 = vmul.f32 %v644, %v3401
  %v3460 = vmul.f32 %v1127, %v3401
  %v3461 = vmul.f32 %v1479, %v3401
  %v3462 = vmul.f32 %v659, %v3401
  %v3463 = vmul.f32 %v664, %v3401
  %v3464 = vmul.f32 %v669, %v3401
  %v3465 = vmul.f32 %v674, %v3401
  %v3466 = vmul.f32 %v679, %v3401
  %v3467 = vmul.f32 %v684, %v3401
  %v3468 = vmul.f32 %v689, %v3401
  %v3469 = vmul.f32 %v694, %v3401
  %v3470 = vmul.f32 %v699, %v3401
  %v3471 = vmul.f32 %v704, %v3401
  %v3472 = vmul.f32 %v1132, %v3401
  %v3473 = vmul.f32 %v1484, %v3401
  %v3474 = vmul.f32 %v719, %v3401
  %v3475 = vmul.f32 %v724, %v3401
  %v3476 = vmul.f32 %v729, %v3401
  %v3477 = vmul.f32 %v734, %v3401
  %v3478 = vmul.f32 %v739, %v3401
  %v3479 = vmul.f32 %v744, %v3401
  %v3480 = vmul.f32 %v749, %v3401
  %v3481 = vmul.f32 %v754, %v3401
  %v3482 = vmul.f32 %v759, %v3401
  %v3483 = vmul.f32 %v764, %v3401
  %v3484 = vmul.f32 %v1137, %v3401
  %v3485 = vmul.f32 %v1489, %v3401
  %v3486 = vmul.f32 %v779, %v3401
  %v3487 = vmul.f32 %v784, %v3401
  %v3488 = vmul.f32 %v789, %v3401
  %v3489 = vmul.f32 %v794, %v3401
  %v3490 = vmul.f32 %v799, %v3401
  %v3491 = vmul.f32 %v804, %v3401
  %v3492 = vmul.f32 %v809, %v3401
  %v3493 = vmul.f32 %v814, %v3401
  %v3494 = vmul.f32 %v819, %v3401
  %v3495 = vmul.f32 %v824, %v3401
  %v3496 = vmul.f32 %v1142, %v3401
  %v3497 = vmul.f32 %v1494, %v3401
  %v3498 = vmul.f32 %v839, %v3401
  %v3499 = vmul.f32 %v844, %v3401
  %v3500 = vmul.f32 %v849, %v3401
  %v3501 = vmul.f32 %v854, %v3401
  %v3502 = vmul.f32 %v859, %v3401
  %v3503 = vmul.f32 %v864, %v3401
  %v3504 = vmul.f32 %v869, %v3401
  %v3505 = vmul.f32 %v874, %v3401
  %v3506 = vmul.f32 %v879, %v3401
  %v3507 = vmul.f32 %v884, %v3401
  %v3508 = vmul.f32 %v1147, %v3401
  %v3509 = vmul.f32 %v1499, %v3401
  %v3510 = vmul.f32 %v899, %v3401
  %v3511 = vmul.f32 %v904, %v3401
  %v3512 = vmul.f32 %v909, %v3401
  %v3513 = vmul.f32 %v914, %v3401
  %v3514 = vmul.f32 %v919, %v3401
  %v3515 = vmul.f32 %v924, %v3401
  %v3516 = vmul.f32 %v929, %v3401
  %v3517 = vmul.f32 %v934, %v3401
  %v3518 = vmul.f32 %v939, %v3401
  %v3519 = vmul.f32 %v944, %v3401
  %v3520 = vmul.f32 %v1152, %v3401
  %v3521 = vmul.f32 %v1504, %v3401
  %v3522 = vmul.f32 %v1811, %v3401
  %v3523 = vmul.f32 %v1816, %v3401
  %v3524 = vmul.f32 %v1821, %v3401
  %v3525 = vmul.f32 %v1826, %v3401
  %v3526 = vmul.f32 %v1831, %v3401
  %v3527 = vmul.f32 %v1836, %v3401
  %v3528 = vmul.f32 %v1841, %v3401
  %v3529 = vmul.f32 %v1846, %v3401
  %v3530 = vmul.f32 %v1851, %v3401
  %v3531 = vmul.f32 %v1856, %v3401
  %v3532 = vmul.f32 %v2153, %v3401
  %v3533 = vmul.f32 %v2450, %v3401
  %v3534 = vmul.f32 %v2757, %v3401
  %v3535 = vmul.f32 %v2762, %v3401
  %v3536 = vmul.f32 %v2767, %v3401
  %v3537 = vmul.f32 %v2772, %v3401
  %v3538 = vmul.f32 %v2777, %v3401
  %v3539 = vmul.f32 %v2782, %v3401
  %v3540 = vmul.f32 %v2787, %v3401
  %v3541 = vmul.f32 %v2792, %v3401
  %v3542 = vmul.f32 %v2797, %v3401
  %v3543 = vmul.f32 %v2802, %v3401
  %v3544 = vmul.f32 %v3099, %v3401
  %v3545 = vmul.f32 %v3396, %v3401
  %v3546 = vadd.f32 %v3249, %v3402
  %v3547 = vadd.f32 %v3250, %v3403
  %v3548 = vadd.f32 %v3251, %v3404
  %v3549 = vadd.f32 %v3252, %v3405
  %v3550 = vadd.f32 %v3253, %v3406
  %v3551 = vadd.f32 %v3254, %v3407
  %v3552 = vadd.f32 %v3255, %v3408
  %v3553 = vadd.f32 %v3256, %v3409
  %v3554 = vadd.f32 %v3257, %v3410
  %v3555 = vadd.f32 %v3258, %v3411
  %v3556 = vadd.f32 %v3259, %v3412
  %v3557 = vadd.f32 %v3260, %v3413
  %v3558 = vadd.f32 %v3261, %v3414
  %v3559 = vadd.f32 %v3262, %v3415
  %v3560 = vadd.f32 %v3263, %v3416
  %v3561 = vadd.f32 %v3264, %v3417
  %v3562 = vadd.f32 %v3265, %v3418
  %v3563 = vadd.f32 %v3266, %v3419
  %v3564 = vadd.f32 %v3267, %v3420
  %v3565 = vadd.f32 %v3268, %v3421
  %v3566 = vadd.f32 %v3269, %v3422
  %v3567 = vadd.f32 %v3270, %v3423
  %v3568 = vadd.f32 %v3271, %v3424
  %v3569 = vadd.f32 %v3272, %v3425
  %v3570 = vadd.f32 %v3273, %v3426
  %v3571 = vadd.f32 %v3274, %v3427
  %v3572 = vadd.f32 %v3275, %v3428
  %v3573 = vadd.f32 %v3276, %v3429
  %v3574 = vadd.f32 %v3277, %v3430
  %v3575 = vadd.f32 %v3278, %v3431
  %v3576 = vadd.f32 %v3279, %v3432
  %v3577 = vadd.f32 %v3280, %v3433
  %v3578 = vadd.f32 %v3281, %v3434
  %v3579 = vadd.f32 %v3282, %v3435
  %v3580 = vadd.f32 %v3283, %v3436
  %v3581 = vadd.f32 %v3284, %v3437
  %v3582 = vadd.f32 %v3285, %v3438
  %v3583 = vadd.f32 %v3286, %v3439
  %v3584 = vadd.f32 %v3287, %v3440
  %v3585 = vadd.f32 %v3288, %v3441
  %v3586 = vadd.f32 %v3289, %v3442
  %v3587 = vadd.f32 %v3290, %v3443
  %v3588 = vadd.f32 %v3291, %v3444
  %v3589 = vadd.f32 %v3292, %v3445
  %v3590 = vadd.f32 %v3293, %v3446
  %v3591 = vadd.f32 %v3294, %v3447
  %v3592 = vadd.f32 %v3295, %v3448
  %v3593 = vadd.f32 %v3296, %v3449
  %v3594 = vadd.f32 %v3297, %v3450
  %v3595 = vadd.f32 %v3298, %v3451
  %v3596 = vadd.f32 %v3299, %v3452
  %v3597 = vadd.f32 %v3300, %v3453
  %v3598 = vadd.f32 %v3301, %v3454
  %v3599 = vadd.f32 %v3302, %v3455
  %v3600 = vadd.f32 %v3303, %v3456
  %v3601 = vadd.f32 %v3304, %v3457
  %v3602 = vadd.f32 %v3305, %v3458
  %v3603 = vadd.f32 %v3306, %v3459
  %v3604 = vadd.f32 %v3307, %v3460
  %v3605 = vadd.f32 %v3308, %v3461
  %v3606 = vadd.f32 %v3309, %v3462
  %v3607 = vadd.f32 %v3310, %v3463
  %v3608 = vadd.f32 %v3311, %v3464
  %v3609 = vadd.f32 %v3312, %v3465
  %v3610 = vadd.f32 %v3313, %v3466
  %v3611 = vadd.f32 %v3314, %v3467
  %v3612 = vadd.f32 %v3315, %v3468
  %v3613 = vadd.f32 %v3316, %v3469
  %v3614 = vadd.f32 %v3317, %v3470
  %v3615 = vadd.f32 %v3318, %v3471
  %v3616 = vadd.f32 %v3319, %v3472
  %v3617 = vadd.f32 %v3320, %v3473
  %v3618 = vadd.f32 %v3321, %v3474
  %v3619 = vadd.f32 %v3322, %v3475
  %v3620 = vadd.f32 %v3323, %v3476
  %v3621 = vadd.f32 %v3324, %v3477
  %v3622 = vadd.f32 %v3325, %v3478
  %v3623 = vadd.f32 %v3326, %v3479
  %v3624 = vadd.f32 %v3327, %v3480
  %v3625 = vadd.f32 %v3328, %v3481
  %v3626 = vadd.f32 %v3329, %v3482
  %v3627 = vadd.f32 %v3330, %v3483
  %v3628 = vadd.f32 %v3331, %v3484
  %v3629 = vadd.f32 %v3332, %v3485
  %v3630 = vadd.f32 %v3333, %v3486
  %v3631 = vadd.f32 %v3334, %v3487
  %v3632 = vadd.f32 %v3335, %v3488
  %v3633 = vadd.f32 %v3336, %v3489
  %v3634 = vadd.f32 %v3337, %v3490
  %v3635 = vadd.f32 %v3338, %v3491
  %v3636 = vadd.f32 %v3339, %v3492
  %v3637 = vadd.f32 %v3340, %v3493
  %v3638 = vadd.f32 %v3341, %v3494
  %v3639 = vadd.f32 %v3342, %v3495
  %v3640 = vadd.f32 %v3343, %v3496
  %v3641 = vadd.f32 %v3344, %v3497
  %v3642 = vadd.f32 %v3345, %v3498
  %v3643 = vadd.f32 %v3346, %v3499
  %v3644 = vadd.f32 %v3347, %v3500
  %v3645 = vadd.f32 %v3348, %v3501
  %v3646 = vadd.f32 %v3349, %v3502
  %v3647 = vadd.f32 %v3350, %v3503
  %v3648 = vadd.f32 %v3351, %v3504
  %v3649 = vadd.f32 %v3352, %v3505
  %v3650 = vadd.f32 %v3353, %v3506
  %v3651 = vadd.f32 %v3354, %v3507
  %v3652 = vadd.f32 %v3355, %v3508
  %v3653 = vadd.f32 %v3356, %v3509
  %v3654 = vadd.f32 %v3357, %v3510
  %v3655 = vadd.f32 %v3358, %v3511
  %v3656 = vadd.f32 %v3359, %v3512
  %v3657 = vadd.f32 %v3360, %v3513
  %v3658 = vadd.f32 %v3361, %v3514
  %v3659 = vadd.f32 %v3362, %v3515
  %v3660 = vadd.f32 %v3363, %v3516
  %v3661 = vadd.f32 %v3364, %v3517
  %v3662 = vadd.f32 %v3365, %v3518
  %v3663 = vadd.f32 %v3366, %v3519
  %v3664 = vadd.f32 %v3367, %v3520
  %v3665 = vadd.f32 %v3368, %v3521
  %v3666 = vadd.f32 %v3369, %v3522
  %v3667 = vadd.f32 %v3370, %v3523
  %v3668 = vadd.f32 %v3371, %v3524
  %v3669 = vadd.f32 %v3372, %v3525
  %v3670 = vadd.f32 %v3373, %v3526
  %v3671 = vadd.f32 %v3374, %v3527
  %v3672 = vadd.f32 %v3375, %v3528
  %v3673 = vadd.f32 %v3376, %v3529
  %v3674 = vadd.f32 %v3377, %v3530
  %v3675 = vadd.f32 %v3378, %v3531
  %v3676 = vadd.f32 %v3379, %v3532
  %v3677 = vadd.f32 %v3380, %v3533
  %v3678 = vadd.f32 %v3381, %v3534
  %v3679 = vadd.f32 %v3382, %v3535
  %v3680 = vadd.f32 %v3383, %v3536
  %v3681 = vadd.f32 %v3384, %v3537
  %v3682 = vadd.f32 %v3385, %v3538
  %v3683 = vadd.f32 %v3386, %v3539
  %v3684 = vadd.f32 %v3387, %v3540
  %v3685 = vadd.f32 %v3388, %v3541
  %v3686 = vadd.f32 %v3389, %v3542
  %v3687 = vadd.f32 %v3390, %v3543
  %v3688 = vadd.f32 %v3391, %v3544
  %v3689 = vadd.f32 %v3392, %v3545
  %v3691 = vlaneseq
  %v3692 = vshrl.u32 %v3691, 7
  %v3693 = vsub.s32 0, %v3692
  %v3694 = vrot.slane %v28, %v3693
  %v3696 = vadd.f32 %v3546, %v3694
  %v3697 = vadd.f32 %v3547, %v3694
  %v3698 = vadd.f32 %v3548, %v3694
  %v3699 = vadd.f32 %v3549, %v3694
  %v3700 = vadd.f32 %v3550, %v3694
  %v3701 = vadd.f32 %v3551, %v3694
  %v3702 = vadd.f32 %v3552, %v3694
  %v3703 = vadd.f32 %v3553, %v3694
  %v3704 = vadd.f32 %v3554, %v3694
  %v3705 = vadd.f32 %v3555, %v3694
  %v3706 = vadd.f32 %v3556, %v3694
  %v3707 = vadd.f32 %v3557, %v3694
  %v3708 = vadd.f32 %v3558, %v3694
  %v3709 = vadd.f32 %v3559, %v3694
  %v3710 = vadd.f32 %v3560, %v3694
  %v3711 = vadd.f32 %v3561, %v3694
  %v3712 = vadd.f32 %v3562, %v3694
  %v3713 = vadd.f32 %v3563, %v3694
  %v3714 = vadd.f32 %v3564, %v3694
  %v3715 = vadd.f32 %v3565, %v3694
  %v3716 = vadd.f32 %v3566, %v3694
  %v3717 = vadd.f32 %v3567, %v3694
  %v3718 = vadd.f32 %v3568, %v3694
  %v3719 = vadd.f32 %v3569, %v3694
  %v3720 = vadd.f32 %v3570, %v3694
  %v3721 = vadd.f32 %v3571, %v3694
  %v3722 = vadd.f32 %v3572, %v3694
  %v3723 = vadd.f32 %v3573, %v3694
  %v3724 = vadd.f32 %v3574, %v3694
  %v3725 = vadd.f32 %v3575, %v3694
  %v3726 = vadd.f32 %v3576, %v3694
  %v3727 = vadd.f32 %v3577, %v3694
  %v3728 = vadd.f32 %v3578, %v3694
  %v3729 = vadd.f32 %v3579, %v3694
  %v3730 = vadd.f32 %v3580, %v3694
  %v3731 = vadd.f32 %v3581, %v3694
  %v3732 = vadd.f32 %v3582, %v3694
  %v3733 = vadd.f32 %v3583, %v3694
  %v3734 = vadd.f32 %v3584, %v3694
  %v3735 = vadd.f32 %v3585, %v3694
  %v3736 = vadd.f32 %v3586, %v3694
  %v3737 = vadd.f32 %v3587, %v3694
  %v3738 = vadd.f32 %v3588, %v3694
  %v3739 = vadd.f32 %v3589, %v3694
  %v3740 = vadd.f32 %v3590, %v3694
  %v3741 = vadd.f32 %v3591, %v3694
  %v3742 = vadd.f32 %v3592, %v3694
  %v3743 = vadd.f32 %v3593, %v3694
  %v3744 = vadd.f32 %v3594, %v3694
  %v3745 = vadd.f32 %v3595, %v3694
  %v3746 = vadd.f32 %v3596, %v3694
  %v3747 = vadd.f32 %v3597, %v3694
  %v3748 = vadd.f32 %v3598, %v3694
  %v3749 = vadd.f32 %v3599, %v3694
  %v3750 = vadd.f32 %v3600, %v3694
  %v3751 = vadd.f32 %v3601, %v3694
  %v3752 = vadd.f32 %v3602, %v3694
  %v3753 = vadd.f32 %v3603, %v3694
  %v3754 = vadd.f32 %v3604, %v3694
  %v3755 = vadd.f32 %v3605, %v3694
  %v3756 = vadd.f32 %v3606, %v3694
  %v3757 = vadd.f32 %v3607, %v3694
  %v3758 = vadd.f32 %v3608, %v3694
  %v3759 = vadd.f32 %v3609, %v3694
  %v3760 = vadd.f32 %v3610, %v3694
  %v3761 = vadd.f32 %v3611, %v3694
  %v3762 = vadd.f32 %v3612, %v3694
  %v3763 = vadd.f32 %v3613, %v3694
  %v3764 = vadd.f32 %v3614, %v3694
  %v3765 = vadd.f32 %v3615, %v3694
  %v3766 = vadd.f32 %v3616, %v3694
  %v3767 = vadd.f32 %v3617, %v3694
  %v3768 = vadd.f32 %v3618, %v3694
  %v3769 = vadd.f32 %v3619, %v3694
  %v3770 = vadd.f32 %v3620, %v3694
  %v3771 = vadd.f32 %v3621, %v3694
  %v3772 = vadd.f32 %v3622, %v3694
  %v3773 = vadd.f32 %v3623, %v3694
  %v3774 = vadd.f32 %v3624, %v3694
  %v3775 = vadd.f32 %v3625, %v3694
  %v3776 = vadd.f32 %v3626, %v3694
  %v3777 = vadd.f32 %v3627, %v3694
  %v3778 = vadd.f32 %v3628, %v3694
  %v3779 = vadd.f32 %v3629, %v3694
  %v3780 = vadd.f32 %v3630, %v3694
  %v3781 = vadd.f32 %v3631, %v3694
  %v3782 = vadd.f32 %v3632, %v3694
  %v3783 = vadd.f32 %v3633, %v3694
  %v3784 = vadd.f32 %v3634, %v3694
  %v3785 = vadd.f32 %v3635, %v3694
  %v3786 = vadd.f32 %v3636, %v3694
  %v3787 = vadd.f32 %v3637, %v3694
  %v3788 = vadd.f32 %v3638, %v3694
  %v3789 = vadd.f32 %v3639, %v3694
  %v3790 = vadd.f32 %v3640, %v3694
  %v3791 = vadd.f32 %v3641, %v3694
  %v3792 = vadd.f32 %v3642, %v3694
  %v3793 = vadd.f32 %v3643, %v3694
  %v3794 = vadd.f32 %v3644, %v3694
  %v3795 = vadd.f32 %v3645, %v3694
  %v3796 = vadd.f32 %v3646, %v3694
  %v3797 = vadd.f32 %v3647, %v3694
  %v3798 = vadd.f32 %v3648, %v3694
  %v3799 = vadd.f32 %v3649, %v3694
  %v3800 = vadd.f32 %v3650, %v3694
  %v3801 = vadd.f32 %v3651, %v3694
  %v3802 = vadd.f32 %v3652, %v3694
  %v3803 = vadd.f32 %v3653, %v3694
  %v3804 = vadd.f32 %v3654, %v3694
  %v3805 = vadd.f32 %v3655, %v3694
  %v3806 = vadd.f32 %v3656, %v3694
  %v3807 = vadd.f32 %v3657, %v3694
  %v3808 = vadd.f32 %v3658, %v3694
  %v3809 = vadd.f32 %v3659, %v3694
  %v3810 = vadd.f32 %v3660, %v3694
  %v3811 = vadd.f32 %v3661, %v3694
  %v3812 = vadd.f32 %v3662, %v3694
  %v3813 = vadd.f32 %v3663, %v3694
  %v3814 = vadd.f32 %v3664, %v3694
  %v3815 = vadd.f32 %v3665, %v3694
  %v3816 = vadd.f32 %v3666, %v3694
  %v3817 = vadd.f32 %v3667, %v3694
  %v3818 = vadd.f32 %v3668, %v3694
  %v3819 = vadd.f32 %v3669, %v3694
  %v3820 = vadd.f32 %v3670, %v3694
  %v3821 = vadd.f32 %v3671, %v3694
  %v3822 = vadd.f32 %v3672, %v3694
  %v3823 = vadd.f32 %v3673, %v3694
  %v3824 = vadd.f32 %v3674, %v3694
  %v3825 = vadd.f32 %v3675, %v3694
  %v3826 = vadd.f32 %v3676, %v3694
  %v3827 = vadd.f32 %v3677, %v3694
  %v3828 = vadd.f32 %v3678, %v3694
  %v3829 = vadd.f32 %v3679, %v3694
  %v3830 = vadd.f32 %v3680, %v3694
  %v3831 = vadd.f32 %v3681, %v3694
  %v3832 = vadd.f32 %v3682, %v3694
  %v3833 = vadd.f32 %v3683, %v3694
  %v3834 = vadd.f32 %v3684, %v3694
  %v3835 = vadd.f32 %v3685, %v3694
  %v3836 = vadd.f32 %v3686, %v3694
  %v3837 = vadd.f32 %v3687, %v3694
  %v3838 = vadd.f32 %v3688, %v3694
  %v3839 = vadd.f32 %v3689, %v3694
  %v3840 = vmax.f32 %v3696, 0.0
  %v3841 = vmax.f32 %v3697, 0.0
  %v3842 = vmax.f32 %v3698, 0.0
  %v3843 = vmax.f32 %v3699, 0.0
  %v3844 = vmax.f32 %v3700, 0.0
  %v3845 = vmax.f32 %v3701, 0.0
  %v3846 = vmax.f32 %v3702, 0.0
  %v3847 = vmax.f32 %v3703, 0.0
  %v3848 = vmax.f32 %v3704, 0.0
  %v3849 = vmax.f32 %v3705, 0.0
  %v3850 = vmax.f32 %v3706, 0.0
  %v3851 = vmax.f32 %v3707, 0.0
  %v3852 = vmax.f32 %v3708, 0.0
  %v3853 = vmax.f32 %v3709, 0.0
  %v3854 = vmax.f32 %v3710, 0.0
  %v3855 = vmax.f32 %v3711, 0.0
  %v3856 = vmax.f32 %v3712, 0.0
  %v3857 = vmax.f32 %v3713, 0.0
  %v3858 = vmax.f32 %v3714, 0.0
  %v3859 = vmax.f32 %v3715, 0.0
  %v3860 = vmax.f32 %v3716, 0.0
  %v3861 = vmax.f32 %v3717, 0.0
  %v3862 = vmax.f32 %v3718, 0.0
  %v3863 = vmax.f32 %v3719, 0.0
  %v3864 = vmax.f32 %v3720, 0.0
  %v3865 = vmax.f32 %v3721, 0.0
  %v3866 = vmax.f32 %v3722, 0.0
  %v3867 = vmax.f32 %v3723, 0.0
  %v3868 = vmax.f32 %v3724, 0.0
  %v3869 = vmax.f32 %v3725, 0.0
  %v3870 = vmax.f32 %v3726, 0.0
  %v3871 = vmax.f32 %v3727, 0.0
  %v3872 = vmax.f32 %v3728, 0.0
  %v3873 = vmax.f32 %v3729, 0.0
  %v3874 = vmax.f32 %v3730, 0.0
  %v3875 = vmax.f32 %v3731, 0.0
  %v3876 = vmax.f32 %v3732, 0.0
  %v3877 = vmax.f32 %v3733, 0.0
  %v3878 = vmax.f32 %v3734, 0.0
  %v3879 = vmax.f32 %v3735, 0.0
  %v3880 = vmax.f32 %v3736, 0.0
  %v3881 = vmax.f32 %v3737, 0.0
  %v3882 = vmax.f32 %v3738, 0.0
  %v3883 = vmax.f32 %v3739, 0.0
  %v3884 = vmax.f32 %v3740, 0.0
  %v3885 = vmax.f32 %v3741, 0.0
  %v3886 = vmax.f32 %v3742, 0.0
  %v3887 = vmax.f32 %v3743, 0.0
  %v3888 = vmax.f32 %v3744, 0.0
  %v3889 = vmax.f32 %v3745, 0.0
  %v3890 = vmax.f32 %v3746, 0.0
  %v3891 = vmax.f32 %v3747, 0.0
  %v3892 = vmax.f32 %v3748, 0.0
  %v3893 = vmax.f32 %v3749, 0.0
  %v3894 = vmax.f32 %v3750, 0.0
  %v3895 = vmax.f32 %v3751, 0.0
  %v3896 = vmax.f32 %v3752, 0.0
  %v3897 = vmax.f32 %v3753, 0.0
  %v3898 = vmax.f32 %v3754, 0.0
  %v3899 = vmax.f32 %v3755, 0.0
  %v3900 = vmax.f32 %v3756, 0.0
  %v3901 = vmax.f32 %v3757, 0.0
  %v3902 = vmax.f32 %v3758, 0.0
  %v3903 = vmax.f32 %v3759, 0.0
  %v3904 = vmax.f32 %v3760, 0.0
  %v3905 = vmax.f32 %v3761, 0.0
  %v3906 = vmax.f32 %v3762, 0.0
  %v3907 = vmax.f32 %v3763, 0.0
  %v3908 = vmax.f32 %v3764, 0.0
  %v3909 = vmax.f32 %v3765, 0.0
  %v3910 = vmax.f32 %v3766, 0.0
  %v3911 = vmax.f32 %v3767, 0.0
  %v3912 = vmax.f32 %v3768, 0.0
  %v3913 = vmax.f32 %v3769, 0.0
  %v3914 = vmax.f32 %v3770, 0.0
  %v3915 = vmax.f32 %v3771, 0.0
  %v3916 = vmax.f32 %v3772, 0.0
  %v3917 = vmax.f32 %v3773, 0.0
  %v3918 = vmax.f32 %v3774, 0.0
  %v3919 = vmax.f32 %v3775, 0.0
  %v3920 = vmax.f32 %v3776, 0.0
  %v3921 = vmax.f32 %v3777, 0.0
  %v3922 = vmax.f32 %v3778, 0.0
  %v3923 = vmax.f32 %v3779, 0.0
  %v3924 = vmax.f32 %v3780, 0.0
  %v3925 = vmax.f32 %v3781, 0.0
  %v3926 = vmax.f32 %v3782, 0.0
  %v3927 = vmax.f32 %v3783, 0.0
  %v3928 = vmax.f32 %v3784, 0.0
  %v3929 = vmax.f32 %v3785, 0.0
  %v3930 = vmax.f32 %v3786, 0.0
  %v3931 = vmax.f32 %v3787, 0.0
  %v3932 = vmax.f32 %v3788, 0.0
  %v3933 = vmax.f32 %v3789, 0.0
  %v3934 = vmax.f32 %v3790, 0.0
  %v3935 = vmax.f32 %v3791, 0.0
  %v3936 = vmax.f32 %v3792, 0.0
  %v3937 = vmax.f32 %v3793, 0.0
  %v3938 = vmax.f32 %v3794, 0.0
  %v3939 = vmax.f32 %v3795, 0.0
  %v3940 = vmax.f32 %v3796, 0.0
  %v3941 = vmax.f32 %v3797, 0.0
  %v3942 = vmax.f32 %v3798, 0.0
  %v3943 = vmax.f32 %v3799, 0.0
  %v3944 = vmax.f32 %v3800, 0.0
  %v3945 = vmax.f32 %v3801, 0.0
  %v3946 = vmax.f32 %v3802, 0.0
  %v3947 = vmax.f32 %v3803, 0.0
  %v3948 = vmax.f32 %v3804, 0.0
  %v3949 = vmax.f32 %v3805, 0.0
  %v3950 = vmax.f32 %v3806, 0.0
  %v3951 = vmax.f32 %v3807, 0.0
  %v3952 = vmax.f32 %v3808, 0.0
  %v3953 = vmax.f32 %v3809, 0.0
  %v3954 = vmax.f32 %v3810, 0.0
  %v3955 = vmax.f32 %v3811, 0.0
  %v3956 = vmax.f32 %v3812, 0.0
  %v3957 = vmax.f32 %v3813, 0.0
  %v3958 = vmax.f32 %v3814, 0.0
  %v3959 = vmax.f32 %v3815, 0.0
  %v3960 = vmax.f32 %v3816, 0.0
  %v3961 = vmax.f32 %v3817, 0.0
  %v3962 = vmax.f32 %v3818, 0.0
  %v3963 = vmax.f32 %v3819, 0.0
  %v3964 = vmax.f32 %v3820, 0.0
  %v3965 = vmax.f32 %v3821, 0.0
  %v3966 = vmax.f32 %v3822, 0.0
  %v3967 = vmax.f32 %v3823, 0.0
  %v3968 = vmax.f32 %v3824, 0.0
  %v3969 = vmax.f32 %v3825, 0.0
  %v3970 = vmax.f32 %v3826, 0.0
  %v3971 = vmax.f32 %v3827, 0.0
  %v3972 = vmax.f32 %v3828, 0.0
  %v3973 = vmax.f32 %v3829, 0.0
  %v3974 = vmax.f32 %v3830, 0.0
  %v3975 = vmax.f32 %v3831, 0.0
  %v3976 = vmax.f32 %v3832, 0.0
  %v3977 = vmax.f32 %v3833, 0.0
  %v3978 = vmax.f32 %v3834, 0.0
  %v3979 = vmax.f32 %v3835, 0.0
  %v3980 = vmax.f32 %v3836, 0.0
  %v3981 = vmax.f32 %v3837, 0.0
  %v3982 = vmax.f32 %v3838, 0.0
  %v3983 = vmax.f32 %v3839, 0.0
  %v3984 = vmax.f32 %v3840, %v3852
  %v3985 = vmax.f32 %v3841, %v3853
  %v3986 = vmax.f32 %v3842, %v3854
  %v3987 = vmax.f32 %v3843, %v3855
  %v3988 = vmax.f32 %v3844, %v3856
  %v3989 = vmax.f32 %v3845, %v3857
  %v3990 = vmax.f32 %v3846, %v3858
  %v3991 = vmax.f32 %v3847, %v3859
  %v3992 = vmax.f32 %v3848, %v3860
  %v3993 = vmax.f32 %v3849, %v3861
  %v3994 = vmax.f32 %v3850, %v3862
  %v3995 = vmax.f32 %v3851, %v3863
  %v3996 = vmax.f32 %v3864, %v3876
  %v3997 = vmax.f32 %v3865, %v3877
  %v3998 = vmax.f32 %v3866, %v3878
  %v3999 = vmax.f32 %v3867, %v3879
  %v4000 = vmax.f32 %v3868, %v3880
  %v4001 = vmax.f32 %v3869, %v3881
  %v4002 = vmax.f32 %v3870, %v3882
  %v4003 = vmax.f32 %v3871, %v3883
  %v4004 = vmax.f32 %v3872, %v3884
  %v4005 = vmax.f32 %v3873, %v3885
  %v4006 = vmax.f32 %v3874, %v3886
  %v4007 = vmax.f32 %v3875, %v3887
  %v4008 = vmax.f32 %v3888, %v3900
  %v4009 = vmax.f32 %v3889, %v3901
  %v4010 = vmax.f32 %v3890, %v3902
  %v4011 = vmax.f32 %v3891, %v3903
  %v4012 = vmax.f32 %v3892, %v3904
  %v4013 = vmax.f32 %v3893, %v3905
  %v4014 = vmax.f32 %v3894, %v3906
  %v4015 = vmax.f32 %v3895, %v3907
  %v4016 = vmax.f32 %v3896, %v3908
  %v4017 = vmax.f32 %v3897, %v3909
  %v4018 = vmax.f32 %v3898, %v3910
  %v4019 = vmax.f32 %v3899, %v3911
  %v4020 = vmax.f32 %v3912, %v3924
  %v4021 = vmax.f32 %v3913, %v3925
  %v4022 = vmax.f32 %v3914, %v3926
  %v4023 = vmax.f32 %v3915, %v3927
  %v4024 = vmax.f32 %v3916, %v3928
  %v4025 = vmax.f32 %v3917, %v3929
  %v4026 = vmax.f32 %v3918, %v3930
  %v4027 = vmax.f32 %v3919, %v3931
  %v4028 = vmax.f32 %v3920, %v3932
  %v4029 = vmax.f32 %v3921, %v3933
  %v4030 = vmax.f32 %v3922, %v3934
  %v4031 = vmax.f32 %v3923, %v3935
  %v4032 = vmax.f32 %v3936, %v3948
  %v4033 = vmax.f32 %v3937, %v3949
  %v4034 = vmax.f32 %v3938, %v3950
  %v4035 = vmax.f32 %v3939, %v3951
  %v4036 = vmax.f32 %v3940, %v3952
  %v4037 = vmax.f32 %v3941, %v3953
  %v4038 = vmax.f32 %v3942, %v3954
  %v4039 = vmax.f32 %v3943, %v3955
  %v4040 = vmax.f32 %v3944, %v3956
  %v4041 = vmax.f32 %v3945, %v3957
  %v4042 = vmax.f32 %v3946, %v3958
  %v4043 = vmax.f32 %v3947, %v3959
  %v4044 = vmax.f32 %v3960, %v3972
  %v4045 = vmax.f32 %v3961, %v3973
  %v4046 = vmax.f32 %v3962, %v3974
  %v4047 = vmax.f32 %v3963, %v3975
  %v4048 = vmax.f32 %v3964, %v3976
  %v4049 = vmax.f32 %v3965, %v3977
  %v4050 = vmax.f32 %v3966, %v3978
  %v4051 = vmax.f32 %v3967, %v3979
  %v4052 = vmax.f32 %v3968, %v3980
  %v4053 = vmax.f32 %v3969, %v3981
  %v4054 = vmax.f32 %v3970, %v3982
  %v4055 = vmax.f32 %v3971, %v3983
  %v4056 = vmax.f32 %v3984, %v3985
  %v4057 = vmax.f32 %v3986, %v3987
  %v4058 = vmax.f32 %v3988, %v3989
  %v4059 = vmax.f32 %v3990, %v3991
  %v4060 = vmax.f32 %v3992, %v3993
  %v4061 = vmax.f32 %v3994, %v3995
  %v4062 = vmax.f32 %v3996, %v3997
  %v4063 = vmax.f32 %v3998, %v3999
  %v4064 = vmax.f32 %v4000, %v4001
  %v4065 = vmax.f32 %v4002, %v4003
  %v4066 = vmax.f32 %v4004, %v4005
  %v4067 = vmax.f32 %v4006, %v4007
  %v4068 = vmax.f32 %v4008, %v4009
  %v4069 = vmax.f32 %v4010, %v4011
  %v4070 = vmax.f32 %v4012, %v4013
  %v4071 = vmax.f32 %v4014, %v4015
  %v4072 = vmax.f32 %v4016, %v4017
  %v4073 = vmax.f32 %v4018, %v4019
  %v4074 = vmax.f32 %v4020, %v4021
  %v4075 = vmax.f32 %v4022, %v4023
  %v4076 = vmax.f32 %v4024, %v4025
  %v4077 = vmax.f32 %v4026, %v4027
  %v4078 = vmax.f32 %v4028, %v4029
  %v4079 = vmax.f32 %v4030, %v4031
  %v4080 = vmax.f32 %v4032, %v4033
  %v4081 = vmax.f32 %v4034, %v4035
  %v4082 = vmax.f32 %v4036, %v4037
  %v4083 = vmax.f32 %v4038, %v4039
  %v4084 = vmax.f32 %v4040, %v4041
  %v4085 = vmax.f32 %v4042, %v4043
  %v4086 = vmax.f32 %v4044, %v4045
  %v4087 = vmax.f32 %v4046, %v4047
  %v4088 = vmax.f32 %v4048, %v4049
  %v4089 = vmax.f32 %v4050, %v4051
  %v4090 = vmax.f32 %v4052, %v4053
  %v4091 = vmax.f32 %v4054, %v4055
  %4108 = vrot.lane.b32.xlu0 %v4057, 64
  %v4109 = vpop.permute.xlu0 %4108
  %4110 = vrot.lane.b32.xlu0 %v4058, 64
  %v4111 = vpop.permute.xlu0 %4110
  %4112 = vrot.lane.b32.xlu0 %v4063, 64
  %v4113 = vpop.permute.xlu0 %4112
  %4114 = vrot.lane.b32.xlu0 %v4064, 64
  %v4115 = vpop.permute.xlu0 %4114
  %4116 = vrot.lane.b32.xlu0 %v4059, 64
  %v4117 = vpop.permute.xlu0 %4116
  %4118 = vrot.lane.b32.xlu0 %v4060, 64
  %v4119 = vpop.permute.xlu0 %4118
  %4120 = vrot.lane.b32.xlu0 %v4065, 64
  %v4121 = vpop.permute.xlu0 %4120
  %4122 = vrot.lane.b32.xlu0 %v4066, 64
  %v4123 = vpop.permute.xlu0 %4122
  %4124 = vrot.lane.b32.xlu0 %v4069, 64
  %v4125 = vpop.permute.xlu0 %4124
  %4126 = vrot.lane.b32.xlu0 %v4070, 64
  %v4127 = vpop.permute.xlu0 %4126
  %4128 = vrot.lane.b32.xlu0 %v4075, 64
  %v4129 = vpop.permute.xlu0 %4128
  %4130 = vrot.lane.b32.xlu0 %v4076, 64
  %v4131 = vpop.permute.xlu0 %4130
  %4132 = vrot.lane.b32.xlu0 %v4071, 64
  %v4133 = vpop.permute.xlu0 %4132
  %4134 = vrot.lane.b32.xlu0 %v4072, 64
  %v4135 = vpop.permute.xlu0 %4134
  %4136 = vrot.lane.b32.xlu0 %v4077, 64
  %v4137 = vpop.permute.xlu0 %4136
  %4138 = vrot.lane.b32.xlu0 %v4078, 64
  %v4139 = vpop.permute.xlu0 %4138
  %4163 = vrot.lane.b32.xlu0 %v4062, 64
  %v4164 = vpop.permute.xlu0 %4163
  %4165 = vrot.lane.b32.xlu0 %v4068, 64
  %v4166 = vpop.permute.xlu0 %4165
  %4167 = vrot.lane.b32.xlu0 %v4074, 64
  %v4168 = vpop.permute.xlu0 %4167
  %4169 = vrot.lane.b32.xlu0 %v4080, 64
  %v4170 = vpop.permute.xlu0 %4169
  %4171 = vrot.lane.b32.xlu0 %v4081, 64
  %v4172 = vpop.permute.xlu0 %4171
  %4173 = vrot.lane.b32.xlu0 %v4082, 64
  %v4174 = vpop.permute.xlu0 %4173
  %4175 = vrot.lane.b32.xlu0 %v4083, 64
  %v4176 = vpop.permute.xlu0 %4175
  %4189 = vrot.lane.b32.xlu0 %v4067, 64
  %v4190 = vpop.permute.xlu0 %4189
  %4191 = vrot.lane.b32.xlu0 %v4073, 64
  %v4192 = vpop.permute.xlu0 %4191
  %4193 = vrot.lane.b32.xlu0 %v4079, 64
  %v4194 = vpop.permute.xlu0 %4193
  %4195 = vrot.lane.b32.xlu0 %v4084, 64
  %v4196 = vpop.permute.xlu0 %4195
  %4197 = vrot.lane.b32.xlu0 %v4085, 64
  %v4198 = vpop.permute.xlu0 %4197
  %4208 = vrot.lane.b32.xlu0 %v4087, 64
  %v4209 = vpop.permute.xlu0 %4208
  %4210 = vrot.lane.b32.xlu0 %v4088, 64
  %v4211 = vpop.permute.xlu0 %4210
  %4212 = vrot.lane.b32.xlu0 %v4089, 64
  %v4213 = vpop.permute.xlu0 %4212
  %4214 = vrot.lane.b32.xlu0 %v4090, 64
  %v4215 = vpop.permute.xlu0 %4214
  %vm4220 = vcmask 523264
  %v4221 = vsel %vm4220, %v4056, %v4109
  %v4222 = vsel %vm4220, %v4057, %v4111
  %v4223 = vsel %vm4220, %v4062, %v4113
  %v4224 = vsel %vm4220, %v4063, %v4115
  %v4225 = vsel %vm4220, %v4058, %v4117
  %v4226 = vsel %vm4220, %v4059, %v4119
  %v4227 = vsel %vm4220, %v4064, %v4121
  %v4228 = vsel %vm4220, %v4065, %v4123
  %v4229 = vsel %vm4220, %v4068, %v4125
  %v4230 = vsel %vm4220, %v4069, %v4127
  %v4231 = vsel %vm4220, %v4074, %v4129
  %v4232 = vsel %vm4220, %v4075, %v4131
  %v4233 = vsel %vm4220, %v4070, %v4133
  %v4234 = vsel %vm4220, %v4071, %v4135
  %v4235 = vsel %vm4220, %v4076, %v4137
  %v4236 = vsel %vm4220, %v4077, %v4139
  %v4237 = vsel %vm4220, %v4058, %v4164
  %v4238 = vsel %vm4220, %v4059, %v4113
  %v4239 = vsel %vm4220, %v4064, %v4166
  %v4240 = vsel %vm4220, %v4065, %v4125
  %v4241 = vsel %vm4220, %v4060, %v4115
  %v4242 = vsel %vm4220, %v4061, %v4121
  %v4243 = vsel %vm4220, %v4066, %v4127
  %v4244 = vsel %vm4220, %v4067, %v4133
  %v4245 = vsel %vm4220, %v4070, %v4168
  %v4246 = vsel %vm4220, %v4071, %v4129
  %v4247 = vsel %vm4220, %v4076, %v4170
  %v4248 = vsel %vm4220, %v4077, %v4172
  %v4249 = vsel %vm4220, %v4072, %v4131
  %v4250 = vsel %vm4220, %v4073, %v4137
  %v4251 = vsel %vm4220, %v4078, %v4174
  %v4252 = vsel %vm4220, %v4079, %v4176
  %v4253 = vsel %vm4220, %v4066, %v4190
  %v4254 = vsel %vm4220, %v4072, %v4192
  %v4255 = vsel %vm4220, %v4081, %v4174
  %v4256 = vsel %vm4220, %v4082, %v4176
  %v4257 = vsel %vm4220, %v4078, %v4194
  %v4258 = vsel %vm4220, %v4083, %v4196
  %v4259 = vsel %vm4220, %v4084, %v4198
  %v4260 = vsel %vm4220, %v4080, %v4172
  %v4261 = vsel %vm4220, %v4086, %v4209
  %v4262 = vsel %vm4220, %v4087, %v4211
  %v4263 = vsel %vm4220, %v4088, %v4213
  %v4264 = vsel %vm4220, %v4089, %v4215
  %v4265 = vld [vmem:[%s3] sm:$0xff]
  %v4266 = vld [vmem:[%s3 + $0x8] sm:$0xff]
  %v4267 = vld [vmem:[%s3 + $0x10] sm:$0xff]
  %v4268 = vld [vmem:[%s3 + $0x18] sm:$0xff]
  %v4269 = vld [vmem:[%s3 + $0x20] sm:$0xff]
  %v4270 = vld [vmem:[%s3 + $0x28] sm:$0xff]
  %v4271 = vld [vmem:[%s3 + $0x30] sm:$0xff]
  %v4272 = vld [vmem:[%s3 + $0x38] sm:$0xff]
  %v4273 = vld [vmem:[%s3 + $0x40] sm:$0xff]
  %v4274 = vld [vmem:[%s3 + $0x48] sm:$0xff]
  %v4275 = vld [vmem:[%s3 + $0x50] sm:$0xff]
  %v4276 = vld [vmem:[%s3 + $0x58] sm:$0xff]
  %v4277 = vld [vmem:[%s3 + $0x60] sm:$0xff]
  %v4278 = vld [vmem:[%s3 + $0x68] sm:$0xff]
  %v4279 = vld [vmem:[%s3 + $0x70] sm:$0xff]
  %v4280 = vld [vmem:[%s3 + $0x78] sm:$0xff]
  %v4281 = vld [vmem:[%s3 + $0x80] sm:$0xff]
  %v4282 = vld [vmem:[%s3 + $0x88] sm:$0xff]
  %v4283 = vld [vmem:[%s3 + $0x90] sm:$0xff]
  %v4284 = vld [vmem:[%s3 + $0x98] sm:$0xff]
  %v4285 = vld [vmem:[%s3 + $0xa0] sm:$0xff]
  %v4286 = vld [vmem:[%s3 + $0xa8] sm:$0xff]
  %v4287 = vld [vmem:[%s3 + $0xb0] sm:$0xff]
  %v4288 = vld [vmem:[%s3 + $0xb8] sm:$0xff]
  %v4289 = vld [vmem:[%s3 + $0xc0] sm:$0xff]
  %v4290 = vld [vmem:[%s3 + $0xc8] sm:$0xff]
  %v4291 = vld [vmem:[%s3 + $0xd0] sm:$0xff]
  %v4292 = vld [vmem:[%s3 + $0xd8] sm:$0xff]
  %v4293 = vld [vmem:[%s3 + $0xe0] sm:$0xff]
  %v4294 = vld [vmem:[%s3 + $0xe8] sm:$0xff]
  %v4295 = vld [vmem:[%s3 + $0xf0] sm:$0xff]
  %v4296 = vld [vmem:[%s3 + $0xf8] sm:$0xff]
  %v4297 = vld [vmem:[%s3 + $0x100] sm:$0xff]
  %v4298 = vld [vmem:[%s3 + $0x108] sm:$0xff]
  %v4299 = vld [vmem:[%s3 + $0x110] sm:$0xff]
  %v4300 = vld [vmem:[%s3 + $0x118] sm:$0xff]
  %v4301 = vld [vmem:[%s3 + $0x120] sm:$0xff]
  %v4302 = vld [vmem:[%s3 + $0x128] sm:$0xff]
  %v4303 = vld [vmem:[%s3 + $0x130] sm:$0xff]
  %v4304 = vld [vmem:[%s3 + $0x138] sm:$0xff]
  %v4305 = vld [vmem:[%s3 + $0x140] sm:$0xff]
  %v4306 = vld [vmem:[%s3 + $0x148] sm:$0xff]
  %v4307 = vld [vmem:[%s3 + $0x150] sm:$0xff]
  %v4308 = vld [vmem:[%s3 + $0x158] sm:$0xff]
  %v4309 = vld [vmem:[%s3 + $0x160] sm:$0xff]
  %v4310 = vld [vmem:[%s3 + $0x168] sm:$0xff]
  %v4311 = vld [vmem:[%s3 + $0x170] sm:$0xff]
  %v4312 = vld [vmem:[%s3 + $0x178] sm:$0xff]
  %v4313 = vld [vmem:[%s3 + $0x180] sm:$0xff]
  %v4314 = vld [vmem:[%s3 + $0x188] sm:$0xff]
  %v4315 = vld [vmem:[%s3 + $0x190] sm:$0xff]
  %v4316 = vld [vmem:[%s3 + $0x198] sm:$0xff]
  %v4317 = vld [vmem:[%s3 + $0x1a0] sm:$0xff]
  %v4318 = vld [vmem:[%s3 + $0x1a8] sm:$0xff]
  %v4319 = vld [vmem:[%s3 + $0x1b0] sm:$0xff]
  %v4320 = vld [vmem:[%s3 + $0x1b8] sm:$0xff]
  %v4321 = vld [vmem:[%s3 + $0x1c0] sm:$0xff]
  %v4322 = vld [vmem:[%s3 + $0x1c8] sm:$0xff]
  %v4323 = vld [vmem:[%s3 + $0x1d0] sm:$0xff]
  %v4324 = vld [vmem:[%s3 + $0x1d8] sm:$0xff]
  %v4325 = vld [vmem:[%s3 + $0x1e0] sm:$0xff]
  %v4326 = vld [vmem:[%s3 + $0x1e8] sm:$0xff]
  %v4327 = vld [vmem:[%s3 + $0x1f0] sm:$0xff]
  %v4328 = vld [vmem:[%s3 + $0x1f8] sm:$0xff]
  %v4329 = vld [vmem:[%s3 + $0x200] sm:$0xff]
  %v4330 = vld [vmem:[%s3 + $0x208] sm:$0xff]
  %v4331 = vld [vmem:[%s3 + $0x210] sm:$0xff]
  %v4332 = vld [vmem:[%s3 + $0x218] sm:$0xff]
  %v4333 = vld [vmem:[%s3 + $0x220] sm:$0xff]
  %v4334 = vld [vmem:[%s3 + $0x228] sm:$0xff]
  %v4335 = vld [vmem:[%s3 + $0x230] sm:$0xff]
  %v4336 = vld [vmem:[%s3 + $0x238] sm:$0xff]
  %v4337 = vsel %vm4220, %v4070, 0
  %v4339 = vsel %vm4220, %v4071, 0
  %v4341 = vsel %vm4220, %v4076, 0
  %v4343 = vsel %vm4220, %v4077, 0
  %v4345 = vsel %vm4220, %v4072, 0
  %v4347 = vsel %vm4220, %v4073, 0
  %v4349 = vsel %vm4220, %v4078, 0
  %v4351 = vsel %vm4220, %v4079, 0
  %v4353 = vsel %vm4220, %v4082, 0
  %v4355 = vsel %vm4220, %v4083, 0
  %v4357 = vsel %vm4220, %v4088, 0
  %v4359 = vsel %vm4220, %v4089, 0
  %v4361 = vsel %vm4220, %v4084, 0
  %v4363 = vsel %vm4220, %v4085, 0
  %v4365 = vsel %vm4220, %v4090, 0
  %v4368 = vsel %vm4220, %v4091, 0
  %4370 = vmatprep.subr.mxu0 0.0
  %4371 = vmatpush1.msra.mxu0 %v4265
  %4372 = vmatprep.subr.mxu0 0.0
  %4373 = vmatpush1.msra.mxu0 %v4266
  %4374 = vmatprep.subr.mxu0 0.0
  %4375 = vmatpush1.msra.mxu0 %v4267
  %4376 = vmatprep.subr.mxu0 0.0
  %4377 = vmatpush1.msra.mxu0 %v4268
  %4378 = vmatprep.subr.mxu0 0.0
  %4379 = vmatpush1.msra.mxu0 %v4269
  %4380 = vmatprep.subr.mxu0 0.0
  %4381 = vmatpush1.msra.mxu0 %v4270
  %4382 = vmatprep.subr.mxu0 0.0
  %4383 = vmatpush1.msra.mxu0 %v4271
  %4384 = vmatprep.subr.mxu0 0.0
  %4385 = vmatpush1.msra.mxu0 %v4272
  %4386 = vmatprep.subr.mxu0 0.0
  %4387 = vmatpush1.msra.mxu0 %v4273
  %4388 = vmatprep.subr.mxu0 0.0
  %4389 = vmatpush1.msra.mxu0 %v4274
  %4390 = vmatprep.subr.mxu0 0.0
  %4391 = vmatpush1.msra.mxu0 %v4275
  %4392 = vmatprep.subr.mxu0 0.0
  %4393 = vmatpush1.msra.mxu0 %v4276
  %4394 = vmatprep.subr.mxu0 0.0
  %4395 = vmatpush1.msra.mxu0 %v4277
  %4396 = vmatprep.subr.mxu0 0.0
  %4397 = vmatpush1.msra.mxu0 %v4278
  %4398 = vmatprep.subr.mxu0 0.0
  %4399 = vmatpush1.msra.mxu0 %v4279
  %4400 = vmatprep.subr.mxu0 0.0
  %4401 = vmatpush1.msra.mxu0 %v4280
  %4402 = vmatprep.subr.mxu0 0.0
  %4403 = vmatpush1.msra.mxu0 %v4281
  %4404 = vmatprep.subr.mxu0 0.0
  %4405 = vmatpush1.msra.mxu0 %v4282
  %4406 = vmatprep.subr.mxu0 0.0
  %4407 = vmatpush1.msra.mxu0 %v4283
  %4408 = vmatprep.subr.mxu0 0.0
  %4409 = vmatpush1.msra.mxu0 %v4284
  %4410 = vmatprep.subr.mxu0 0.0
  %4411 = vmatpush1.msra.mxu0 %v4285
  %4412 = vmatprep.subr.mxu0 0.0
  %4413 = vmatpush1.msra.mxu0 %v4286
  %4414 = vmatprep.subr.mxu0 0.0
  %4415 = vmatpush1.msra.mxu0 %v4287
  %4416 = vmatprep.subr.mxu0 0.0
  %4417 = vmatpush1.msra.mxu0 %v4288
  %4418 = vmatprep.subr.mxu0 0.0
  %4419 = vmatpush1.msra.mxu0 %v4289
  %4420 = vmatprep.subr.mxu0 0.0
  %4421 = vmatpush1.msra.mxu0 %v4290
  %4422 = vmatprep.subr.mxu0 0.0
  %4423 = vmatpush1.msra.mxu0 %v4291
  %4424 = vmatprep.subr.mxu0 0.0
  %4425 = vmatpush1.msra.mxu0 %v4292
  %4426 = vmatprep.subr.mxu0 0.0
  %4427 = vmatpush1.msra.mxu0 %v4293
  %4428 = vmatprep.subr.mxu0 0.0
  %4429 = vmatpush1.msra.mxu0 %v4294
  %4430 = vmatprep.subr.mxu0 0.0
  %4431 = vmatpush1.msra.mxu0 %v4295
  %4432 = vmatprep.subr.mxu0 0.0
  %4433 = vmatpush1.msra.mxu0 %v4296
  %4434 = vmatprep.mubr.f32.mxu0 %v4237
  %4435 = vmatmul.mubr.f32.gmra.mrb[0].mxu0 %v4221
  %v4436 = vpop.f32.mrb[0].mxu0
  %v4437 = vadd.f32 0.0, %v4436
  %v4438 = vpop.f32.mrb[0].mxu0
  %4439 = vmatprep.mubr.f32.mxu0 %v4238
  %4440 = vmatmul.mubr.f32.gmra.mrb[0].mxu0 %v4222
  %v4441 = vpop.f32.mrb[0].mxu0
  %v4442 = vadd.f32 0.0, %v4441
  %v4443 = vpop.f32.mrb[0].mxu0
  %4444 = vmatprep.mubr.f32.mxu0 %v4239
  %4445 = vmatmul.mubr.f32.gmra.mrb[0].mxu0 %v4223
  %v4446 = vpop.f32.mrb[0].mxu0
  %v4447 = vadd.f32 0.0, %v4446
  %v4448 = vpop.f32.mrb[0].mxu0
  %4449 = vmatprep.mubr.f32.mxu0 %v4240
  %4450 = vmatmul.mubr.f32.gmra.mrb[0].mxu0 %v4224
  %v4451 = vpop.f32.mrb[0].mxu0
  %v4452 = vadd.f32 0.0, %v4451
  %v4453 = vpop.f32.mrb[0].mxu0
  %4454 = vmatprep.mubr.f32.mxu0 %v4241
  %4455 = vmatmul.mubr.f32.gmra.mrb[0].mxu0 %v4225
  %v4456 = vpop.f32.mrb[0].mxu0
  %v4457 = vadd.f32 0.0, %v4456
  %v4458 = vpop.f32.mrb[0].mxu0
  %4459 = vmatprep.mubr.f32.mxu0 %v4242
  %4460 = vmatmul.mubr.f32.gmra.mrb[0].mxu0 %v4226
  %v4461 = vpop.f32.mrb[0].mxu0
  %v4462 = vadd.f32 0.0, %v4461
  %v4463 = vpop.f32.mrb[0].mxu0
  %4464 = vmatprep.mubr.f32.mxu0 %v4243
  %4465 = vmatmul.mubr.f32.gmra.mrb[0].mxu0 %v4227
  %v4466 = vpop.f32.mrb[0].mxu0
  %v4467 = vadd.f32 0.0, %v4466
  %v4468 = vpop.f32.mrb[0].mxu0
  %4469 = vmatprep.mubr.f32.mxu0 %v4244
  %4470 = vmatmul.mubr.f32.gmra.mrb[0].mxu0 %v4228
  %v4471 = vpop.f32.mrb[0].mxu0
  %v4472 = vadd.f32 0.0, %v4471
  %v4473 = vpop.f32.mrb[0].mxu0
  %4474 = vmatprep.mubr.f32.mxu0 %v4245
  %4475 = vmatmul.mubr.f32.gmra.mrb[0].mxu0 %v4229
  %v4476 = vpop.f32.mrb[0].mxu0
  %v4477 = vadd.f32 0.0, %v4476
  %v4478 = vpop.f32.mrb[0].mxu0
  %4479 = vmatprep.mubr.f32.mxu0 %v4246
  %4480 = vmatmul.mubr.f32.gmra.mrb[0].mxu0 %v4230
  %v4481 = vpop.f32.mrb[0].mxu0
  %v4482 = vadd.f32 0.0, %v4481
  %v4483 = vpop.f32.mrb[0].mxu0
  %4484 = vmatprep.mubr.f32.mxu0 %v4247
  %4485 = vmatmul.mubr.f32.gmra.mrb[0].mxu0 %v4231
  %v4486 = vpop.f32.mrb[0].mxu0
  %v4487 = vadd.f32 0.0, %v4486
  %v4488 = vpop.f32.mrb[0].mxu0
  %4489 = vmatprep.mubr.f32.mxu0 %v4248
  %4490 = vmatmul.mubr.f32.gmra.mrb[0].mxu0 %v4232
  %v4491 = vpop.f32.mrb[0].mxu0
  %v4492 = vadd.f32 0.0, %v4491
  %v4493 = vpop.f32.mrb[0].mxu0
  %4494 = vmatprep.mubr.f32.mxu0 %v4249
  %4495 = vmatmul.mubr.f32.gmra.mrb[0].mxu0 %v4233
  %v4496 = vpop.f32.mrb[0].mxu0
  %v4497 = vadd.f32 0.0, %v4496
  %v4498 = vpop.f32.mrb[0].mxu0
  %4499 = vmatprep.mubr.f32.mxu0 %v4250
  %4500 = vmatmul.mubr.f32.gmra.mrb[0].mxu0 %v4234
  %v4501 = vpop.f32.mrb[0].mxu0
  %v4502 = vadd.f32 0.0, %v4501
  %v4503 = vpop.f32.mrb[0].mxu0
  %4504 = vmatprep.mubr.f32.mxu0 %v4251
  %4505 = vmatmul.mubr.f32.gmra.mrb[0].mxu0 %v4235
  %v4506 = vpop.f32.mrb[0].mxu0
  %v4507 = vadd.f32 0.0, %v4506
  %v4508 = vpop.f32.mrb[0].mxu0
  %4509 = vmatprep.mubr.f32.mxu0 %v4252
  %4510 = vmatmul.mubr.f32.gmra.mrb[0].mxu0 %v4236
  %v4511 = vpop.f32.mrb[0].mxu0
  %v4512 = vadd.f32 0.0, %v4511
  %v4513 = vpop.f32.mrb[0].mxu0
  %4514 = vdwg.mxu0
  %4515 = vmatprep.subr.mxu0 0.0
  %4516 = vmatpush1.msra.mxu0 %v4297
  %4517 = vmatprep.subr.mxu0 0.0
  %4518 = vmatpush1.msra.mxu0 %v4298
  %4519 = vmatprep.subr.mxu0 0.0
  %4520 = vmatpush1.msra.mxu0 %v4299
  %4521 = vmatprep.subr.mxu0 0.0
  %4522 = vmatpush1.msra.mxu0 %v4300
  %4523 = vmatprep.subr.mxu0 0.0
  %4524 = vmatpush1.msra.mxu0 %v4301
  %4525 = vmatprep.subr.mxu0 0.0
  %4526 = vmatpush1.msra.mxu0 %v4302
  %4527 = vmatprep.subr.mxu0 0.0
  %4528 = vmatpush1.msra.mxu0 %v4303
  %4529 = vmatprep.subr.mxu0 0.0
  %4530 = vmatpush1.msra.mxu0 %v4304
  %4531 = vmatprep.subr.mxu0 0.0
  %4532 = vmatpush1.msra.mxu0 %v4305
  %4533 = vmatprep.subr.mxu0 0.0
  %4534 = vmatpush1.msra.mxu0 %v4306
  %4535 = vmatprep.subr.mxu0 0.0
  %4536 = vmatpush1.msra.mxu0 %v4307
  %4537 = vmatprep.subr.mxu0 0.0
  %4538 = vmatpush1.msra.mxu0 %v4308
  %4539 = vmatprep.subr.mxu0 0.0
  %4540 = vmatpush1.msra.mxu0 %v4309
  %4541 = vmatprep.subr.mxu0 0.0
  %4542 = vmatpush1.msra.mxu0 %v4310
  %4543 = vmatprep.subr.mxu0 0.0
  %4544 = vmatpush1.msra.mxu0 %v4311
  %4545 = vmatprep.subr.mxu0 0.0
  %4546 = vmatpush1.msra.mxu0 %v4312
  %4547 = vmatprep.subr.mxu0 0.0
  %4548 = vmatpush1.msra.mxu0 %v4313
  %4549 = vmatprep.subr.mxu0 0.0
  %4550 = vmatpush1.msra.mxu0 %v4314
  %4551 = vmatprep.subr.mxu0 0.0
  %4552 = vmatpush1.msra.mxu0 %v4315
  %4553 = vmatprep.subr.mxu0 0.0
  %4554 = vmatpush1.msra.mxu0 %v4316
  %4555 = vmatprep.subr.mxu0 0.0
  %4556 = vmatpush1.msra.mxu0 %v4317
  %4557 = vmatprep.subr.mxu0 0.0
  %4558 = vmatpush1.msra.mxu0 %v4318
  %4559 = vmatprep.subr.mxu0 0.0
  %4560 = vmatpush1.msra.mxu0 %v4319
  %4561 = vmatprep.subr.mxu0 0.0
  %4562 = vmatpush1.msra.mxu0 %v4320
  %4563 = vmatprep.subr.mxu0 0.0
  %4564 = vmatpush1.msra.mxu0 %v4321
  %4565 = vmatprep.subr.mxu0 0.0
  %4566 = vmatpush1.msra.mxu0 %v4322
  %4567 = vmatprep.subr.mxu0 0.0
  %4568 = vmatpush1.msra.mxu0 %v4323
  %4569 = vmatprep.subr.mxu0 0.0
  %4570 = vmatpush1.msra.mxu0 %v4324
  %4571 = vmatprep.subr.mxu0 0.0
  %4572 = vmatpush1.msra.mxu0 %v4325
  %4573 = vmatprep.subr.mxu0 0.0
  %4574 = vmatpush1.msra.mxu0 %v4326
  %4575 = vmatprep.subr.mxu0 0.0
  %4576 = vmatpush1.msra.mxu0 %v4327
  %4577 = vmatprep.subr.mxu0 0.0
  %4578 = vmatpush1.msra.mxu0 %v4328
  %4579 = vmatprep.mubr.f32.mxu0 %v4229
  %4580 = vmatmul.mubr.f32.gmra.mrb[0].mxu0 %v4224
  %v4581 = vpop.f32.mrb[0].mxu0
  %v4582 = vadd.f32 %v4437, %v4581
  %v4583 = vpop.f32.mrb[0].mxu0
  %4584 = vmatprep.mubr.f32.mxu0 %v4230
  %4585 = vmatmul.mubr.f32.gmra.mrb[0].mxu0 %v4227
  %v4586 = vpop.f32.mrb[0].mxu0
  %v4587 = vadd.f32 %v4442, %v4586
  %v4588 = vpop.f32.mrb[0].mxu0
  %4589 = vmatprep.mubr.f32.mxu0 %v4231
  %4590 = vmatmul.mubr.f32.gmra.mrb[0].mxu0 %v4230
  %v4591 = vpop.f32.mrb[0].mxu0
  %v4592 = vadd.f32 %v4447, %v4591
  %v4593 = vpop.f32.mrb[0].mxu0
  %4594 = vmatprep.mubr.f32.mxu0 %v4232
  %4595 = vmatmul.mubr.f32.gmra.mrb[0].mxu0 %v4233
  %v4596 = vpop.f32.mrb[0].mxu0
  %v4597 = vadd.f32 %v4452, %v4596
  %v4598 = vpop.f32.mrb[0].mxu0
  %4599 = vmatprep.mubr.f32.mxu0 %v4233
  %4600 = vmatmul.mubr.f32.gmra.mrb[0].mxu0 %v4228
  %v4601 = vpop.f32.mrb[0].mxu0
  %v4602 = vadd.f32 %v4457, %v4601
  %v4603 = vpop.f32.mrb[0].mxu0
  %4604 = vmatprep.mubr.f32.mxu0 %v4234
  %4605 = vmatmul.mubr.f32.gmra.mrb[0].mxu0 %v4253
  %v4606 = vpop.f32.mrb[0].mxu0
  %v4607 = vadd.f32 %v4462, %v4606
  %v4608 = vpop.f32.mrb[0].mxu0
  %4609 = vmatprep.mubr.f32.mxu0 %v4235
  %4610 = vmatmul.mubr.f32.gmra.mrb[0].mxu0 %v4234
  %v4611 = vpop.f32.mrb[0].mxu0
  %v4612 = vadd.f32 %v4467, %v4611
  %v4613 = vpop.f32.mrb[0].mxu0
  %4614 = vmatprep.mubr.f32.mxu0 %v4236
  %4615 = vmatmul.mubr.f32.gmra.mrb[0].mxu0 %v4254
  %v4616 = vpop.f32.mrb[0].mxu0
  %v4617 = vadd.f32 %v4472, %v4616
  %v4618 = vpop.f32.mrb[0].mxu0
  %4619 = vmatprep.mubr.f32.mxu0 %v4260
  %4620 = vmatmul.mubr.f32.gmra.mrb[0].mxu0 %v4232
  %v4621 = vpop.f32.mrb[0].mxu0
  %v4622 = vadd.f32 %v4477, %v4621
  %v4623 = vpop.f32.mrb[0].mxu0
  %4624 = vmatprep.mubr.f32.mxu0 %v4255
  %4625 = vmatmul.mubr.f32.gmra.mrb[0].mxu0 %v4235
  %v4626 = vpop.f32.mrb[0].mxu0
  %v4627 = vadd.f32 %v4482, %v4626
  %v4628 = vpop.f32.mrb[0].mxu0
  %4629 = vmatprep.mubr.f32.mxu0 %v4261
  %4630 = vmatmul.mubr.f32.gmra.mrb[0].mxu0 %v4255
  %v4631 = vpop.f32.mrb[0].mxu0
  %v4632 = vadd.f32 %v4487, %v4631
  %v4633 = vpop.f32.mrb[0].mxu0
  %4634 = vmatprep.mubr.f32.mxu0 %v4262
  %4635 = vmatmul.mubr.f32.gmra.mrb[0].mxu0 %v4256
  %v4636 = vpop.f32.mrb[0].mxu0
  %v4637 = vadd.f32 %v4492, %v4636
  %v4638 = vpop.f32.mrb[0].mxu0
  %4639 = vmatprep.mubr.f32.mxu0 %v4256
  %4640 = vmatmul.mubr.f32.gmra.mrb[0].mxu0 %v4236
  %v4641 = vpop.f32.mrb[0].mxu0
  %v4642 = vadd.f32 %v4497, %v4641
  %v4643 = vpop.f32.mrb[0].mxu0
  %4644 = vmatprep.mubr.f32.mxu0 %v4258
  %4645 = vmatmul.mubr.f32.gmra.mrb[0].mxu0 %v4257
  %v4646 = vpop.f32.mrb[0].mxu0
  %v4647 = vadd.f32 %v4502, %v4646
  %v4648 = vpop.f32.mrb[0].mxu0
  %4649 = vmatprep.mubr.f32.mxu0 %v4263
  %4650 = vmatmul.mubr.f32.gmra.mrb[0].mxu0 %v4258
  %v4651 = vpop.f32.mrb[0].mxu0
  %v4652 = vadd.f32 %v4507, %v4651
  %v4653 = vpop.f32.mrb[0].mxu0
  %4654 = vmatprep.mubr.f32.mxu0 %v4264
  %4655 = vmatmul.mubr.f32.gmra.mrb[0].mxu0 %v4259
  %v4656 = vpop.f32.mrb[0].mxu0
  %v4657 = vadd.f32 %v4512, %v4656
  %v4658 = vpop.f32.mrb[0].mxu0
  %4659 = vdwg.mxu0
  %4660 = vmatprep.subr.mxu0 0.0
  %4661 = vmatpush1.msra.mxu0 %v4329
  %4662 = vmatprep.subr.mxu0 0.0
  %4663 = vmatpush1.msra.mxu0 %v4330
  %4664 = vmatprep.subr.mxu0 0.0
  %4665 = vmatpush1.msra.mxu0 %v4331
  %4666 = vmatprep.subr.mxu0 0.0
  %4667 = vmatpush1.msra.mxu0 %v4332
  %4668 = vmatprep.subr.mxu0 0.0
  %4669 = vmatpush1.msra.mxu0 %v4333
  %4670 = vmatprep.subr.mxu0 0.0
  %4671 = vmatpush1.msra.mxu0 %v4334
  %4672 = vmatprep.subr.mxu0 0.0
  %4673 = vmatpush1.msra.mxu0 %v4335
  %4674 = vmatprep.subr.mxu0 0.0
  %4675 = vmatpush1.msra.mxu0 %v4336
  %4676 = vmatprep.subr.mxu0 0.0
  %4677 = vmatpush1.msra.mxu0 0.0
  %4678 = vmatprep.subr.mxu0 0.0
  %4679 = vmatpush1.msra.mxu0 0.0
  %4680 = vmatprep.subr.mxu0 0.0
  %4681 = vmatpush1.msra.mxu0 0.0
  %4682 = vmatprep.subr.mxu0 0.0
  %4683 = vmatpush1.msra.mxu0 0.0
  %4684 = vmatprep.subr.mxu0 0.0
  %4685 = vmatpush1.msra.mxu0 0.0
  %4686 = vmatprep.subr.mxu0 0.0
  %4687 = vmatpush1.msra.mxu0 0.0
  %4688 = vmatprep.subr.mxu0 0.0
  %4689 = vmatpush1.msra.mxu0 0.0
  %4690 = vmatprep.subr.mxu0 0.0
  %4691 = vmatpush1.msra.mxu0 0.0
  %4692 = vmatprep.subr.mxu0 0.0
  %4693 = vmatpush1.msra.mxu0 0.0
  %4694 = vmatprep.subr.mxu0 0.0
  %4695 = vmatpush1.msra.mxu0 0.0
  %4696 = vmatprep.subr.mxu0 0.0
  %4697 = vmatpush1.msra.mxu0 0.0
  %4698 = vmatprep.subr.mxu0 0.0
  %4699 = vmatpush1.msra.mxu0 0.0
  %4700 = vmatprep.subr.mxu0 0.0
  %4701 = vmatpush1.msra.mxu0 0.0
  %4702 = vmatprep.subr.mxu0 0.0
  %4703 = vmatpush1.msra.mxu0 0.0
  %4704 = vmatprep.subr.mxu0 0.0
  %4705 = vmatpush1.msra.mxu0 0.0
  %4706 = vmatprep.subr.mxu0 0.0
  %4707 = vmatpush1.msra.mxu0 0.0
  %4708 = vmatprep.subr.mxu0 0.0
  %4709 = vmatpush1.msra.mxu0 0.0
  %4710 = vmatprep.subr.mxu0 0.0
  %4711 = vmatpush1.msra.mxu0 0.0
  %4712 = vmatprep.subr.mxu0 0.0
  %4713 = vmatpush1.msra.mxu0 0.0
  %4714 = vmatprep.subr.mxu0 0.0
  %4715 = vmatpush1.msra.mxu0 0.0
  %4716 = vmatprep.subr.mxu0 0.0
  %4717 = vmatpush1.msra.mxu0 0.0
  %4718 = vmatprep.subr.mxu0 0.0
  %4719 = vmatpush1.msra.mxu0 0.0
  %4720 = vmatprep.subr.mxu0 0.0
  %4721 = vmatpush1.msra.mxu0 0.0
  %4722 = vmatprep.subr.mxu0 0.0
  %4723 = vmatpush1.msra.mxu0 0.0
  %4724 = vmatprep.mubr.f32.mxu0 0.0
  %4725 = vmatmul.mubr.f32.gmra.mrb[0].mxu0 %v4337
  %v4726 = vpop.f32.mrb[0].mxu0
  %v4727 = vadd.f32 %v4582, %v4726
  %v4728 = vpop.f32.mrb[0].mxu0
  %4729 = vmatprep.mubr.f32.mxu0 0.0
  %4730 = vmatmul.mubr.f32.gmra.mrb[0].mxu0 %v4339
  %v4731 = vpop.f32.mrb[0].mxu0
  %v4732 = vadd.f32 %v4587, %v4731
  %v4733 = vpop.f32.mrb[0].mxu0
  %4734 = vmatprep.mubr.f32.mxu0 0.0
  %4735 = vmatmul.mubr.f32.gmra.mrb[0].mxu0 %v4341
  %v4736 = vpop.f32.mrb[0].mxu0
  %v4737 = vadd.f32 %v4592, %v4736
  %v4738 = vpop.f32.mrb[0].mxu0
  %4739 = vmatprep.mubr.f32.mxu0 0.0
  %4740 = vmatmul.mubr.f32.gmra.mrb[0].mxu0 %v4343
  %v4741 = vpop.f32.mrb[0].mxu0
  %v4742 = vadd.f32 %v4597, %v4741
  %v4743 = vpop.f32.mrb[0].mxu0
  %4744 = vmatprep.mubr.f32.mxu0 0.0
  %4745 = vmatmul.mubr.f32.gmra.mrb[0].mxu0 %v4345
  %v4746 = vpop.f32.mrb[0].mxu0
  %v4747 = vadd.f32 %v4602, %v4746
  %v4748 = vpop.f32.mrb[0].mxu0
  %4749 = vmatprep.mubr.f32.mxu0 0.0
  %4750 = vmatmul.mubr.f32.gmra.mrb[0].mxu0 %v4347
  %v4751 = vpop.f32.mrb[0].mxu0
  %v4752 = vadd.f32 %v4607, %v4751
  %v4753 = vpop.f32.mrb[0].mxu0
  %4754 = vmatprep.mubr.f32.mxu0 0.0
  %4755 = vmatmul.mubr.f32.gmra.mrb[0].mxu0 %v4349
  %v4756 = vpop.f32.mrb[0].mxu0
  %v4757 = vadd.f32 %v4612, %v4756
  %v4758 = vpop.f32.mrb[0].mxu0
  %4759 = vmatprep.mubr.f32.mxu0 0.0
  %4760 = vmatmul.mubr.f32.gmra.mrb[0].mxu0 %v4351
  %v4761 = vpop.f32.mrb[0].mxu0
  %v4762 = vadd.f32 %v4617, %v4761
  %v4763 = vpop.f32.mrb[0].mxu0
  %4764 = vmatprep.mubr.f32.mxu0 0.0
  %4765 = vmatmul.mubr.f32.gmra.mrb[0].mxu0 %v4353
  %v4766 = vpop.f32.mrb[0].mxu0
  %v4767 = vadd.f32 %v4622, %v4766
  %v4768 = vpop.f32.mrb[0].mxu0
  %4769 = vmatprep.mubr.f32.mxu0 0.0
  %4770 = vmatmul.mubr.f32.gmra.mrb[0].mxu0 %v4355
  %v4771 = vpop.f32.mrb[0].mxu0
  %v4772 = vadd.f32 %v4627, %v4771
  %v4773 = vpop.f32.mrb[0].mxu0
  %4774 = vmatprep.mubr.f32.mxu0 0.0
  %4775 = vmatmul.mubr.f32.gmra.mrb[0].mxu0 %v4357
  %v4776 = vpop.f32.mrb[0].mxu0
  %v4777 = vadd.f32 %v4632, %v4776
  %v4778 = vpop.f32.mrb[0].mxu0
  %4779 = vmatprep.mubr.f32.mxu0 0.0
  %4780 = vmatmul.mubr.f32.gmra.mrb[0].mxu0 %v4359
  %v4781 = vpop.f32.mrb[0].mxu0
  %v4782 = vadd.f32 %v4637, %v4781
  %v4783 = vpop.f32.mrb[0].mxu0
  %4784 = vmatprep.mubr.f32.mxu0 0.0
  %4785 = vmatmul.mubr.f32.gmra.mrb[0].mxu0 %v4361
  %v4786 = vpop.f32.mrb[0].mxu0
  %v4787 = vadd.f32 %v4642, %v4786
  %v4788 = vpop.f32.mrb[0].mxu0
  %4789 = vmatprep.mubr.f32.mxu0 0.0
  %4790 = vmatmul.mubr.f32.gmra.mrb[0].mxu0 %v4363
  %v4791 = vpop.f32.mrb[0].mxu0
  %v4792 = vadd.f32 %v4647, %v4791
  %v4793 = vpop.f32.mrb[0].mxu0
  %4794 = vmatprep.mubr.f32.mxu0 0.0
  %4795 = vmatmul.mubr.f32.gmra.mrb[0].mxu0 %v4365
  %v4796 = vpop.f32.mrb[0].mxu0
  %v4797 = vadd.f32 %v4652, %v4796
  %v4798 = vpop.f32.mrb[0].mxu0
  %4799 = vmatprep.mubr.f32.mxu0 0.0
  %4800 = vmatmul.mubr.f32.gmra.mrb[0].mxu0 %v4368
  %v4801 = vpop.f32.mrb[0].mxu0
  %v4802 = vadd.f32 %v4657, %v4801
  %v4803 = vpop.f32.mrb[0].mxu0
  %4804 = vdwg.mxu0
  %v4805 = vmax.f32 %v4727, %v4732
  %v4806 = vmax.f32 %v4805, %v4737
  %v4807 = vmax.f32 %v4806, %v4742
  %v4809 = vlaneseq
  %v4810 = vshrl.u32 %v4809, 7
  %v4811 = vsub.s32 0, %v4810
  %v4812 = vrot.slane %v29, %v4811
  %v4814 = vadd.f32 %v4807, %v4812
  %v4815 = vmax.f32 %v4814, 0.0
  %v4816 = vmax.f32 %v4747, %v4752
  %v4817 = vmax.f32 %v4816, %v4757
  %v4818 = vmax.f32 %v4817, %v4762
  %v4819 = vadd.f32 %v4818, %v4812
  %v4820 = vmax.f32 %v4819, 0.0
  %v4821 = vmax.f32 %v4767, %v4772
  %v4822 = vmax.f32 %v4821, %v4777
  %v4823 = vmax.f32 %v4822, %v4782
  %v4824 = vadd.f32 %v4823, %v4812
  %v4825 = vmax.f32 %v4824, 0.0
  %v4826 = vmax.f32 %v4787, %v4792
  %v4827 = vmax.f32 %v4826, %v4797
  %v4828 = vmax.f32 %v4827, %v4802
  %v4829 = vadd.f32 %v4828, %v4812
  %v4830 = vmax.f32 %v4829, 0.0
  %4832 = vrot.lane.b32.xlu0 %v4820, 32
  %v4833 = vpop.permute.xlu0 %4832
  %4836 = vrot.lane.b32.xlu0 %v4825, 64
  %v4837 = vpop.permute.xlu0 %4836
  %4840 = vrot.lane.b32.xlu0 %v4830, 96
  %v4841 = vpop.permute.xlu0 %4840
  %vm4843 = vcmask 261120
  %v4844 = vsel %vm4843, %v4815, %v4833
  %v4845 = vsel %vm4220, %v4844, %v4837
  %vm4846 = vcmask 785408
  %v4847 = vsel %vm4846, %v4845, %v4841
  %v4848 = vld [vmem:[%s5] sm:$0xff]
  %v4849 = vld [vmem:[%s5 + $0x8] sm:$0xff]
  %v4850 = vld [vmem:[%s5 + $0x10] sm:$0xff]
  %v4851 = vld [vmem:[%s5 + $0x18] sm:$0xff]
  %v4852 = vld [vmem:[%s5 + $0x20] sm:$0xff]
  %v4853 = vld [vmem:[%s5 + $0x28] sm:$0xff]
  %v4854 = vld [vmem:[%s5 + $0x30] sm:$0xff]
  %v4855 = vld [vmem:[%s5 + $0x38] sm:$0xff]
  %v4856 = vld [vmem:[%s5 + $0x40] sm:$0xff]
  %v4857 = vld [vmem:[%s5 + $0x48] sm:$0xff]
  %v4858 = vld [vmem:[%s5 + $0x50] sm:$0xff]
  %v4859 = vld [vmem:[%s5 + $0x58] sm:$0xff]
  %v4860 = vld [vmem:[%s5 + $0x60] sm:$0xff]
  %v4861 = vld [vmem:[%s5 + $0x68] sm:$0xff]
  %v4862 = vld [vmem:[%s5 + $0x70] sm:$0xff]
  %v4863 = vld [vmem:[%s5 + $0x78] sm:$0xff]
  %v4864 = vld [vmem:[%s6] sm:$0x1]
  %v4866 = vlaneseq
  %v4867 = vshrl.u32 %v4866, 7
  %v4868 = vsub.s32 0, %v4867
  %v4869 = vrot.slane %v4864, %v4868
  %4871 = vmatprep.subr.mxu0 0.0
  %4872 = vmatpush1.msra.mxu0 %v4848
  %4873 = vmatprep.subr.mxu0 0.0
  %4874 = vmatpush1.msra.mxu0 %v4849
  %4875 = vmatprep.subr.mxu0 0.0
  %4876 = vmatpush1.msra.mxu0 %v4850
  %4877 = vmatprep.subr.mxu0 0.0
  %4878 = vmatpush1.msra.mxu0 %v4851
  %4879 = vmatprep.subr.mxu0 0.0
  %4880 = vmatpush1.msra.mxu0 %v4852
  %4881 = vmatprep.subr.mxu0 0.0
  %4882 = vmatpush1.msra.mxu0 %v4853
  %4883 = vmatprep.subr.mxu0 0.0
  %4884 = vmatpush1.msra.mxu0 %v4854
  %4885 = vmatprep.subr.mxu0 0.0
  %4886 = vmatpush1.msra.mxu0 %v4855
  %4887 = vmatprep.subr.mxu0 0.0
  %4888 = vmatpush1.msra.mxu0 %v4856
  %4889 = vmatprep.subr.mxu0 0.0
  %4890 = vmatpush1.msra.mxu0 %v4857
  %4891 = vmatprep.subr.mxu0 0.0
  %4892 = vmatpush1.msra.mxu0 %v4858
  %4893 = vmatprep.subr.mxu0 0.0
  %4894 = vmatpush1.msra.mxu0 %v4859
  %4895 = vmatprep.subr.mxu0 0.0
  %4896 = vmatpush1.msra.mxu0 %v4860
  %4897 = vmatprep.subr.mxu0 0.0
  %4898 = vmatpush1.msra.mxu0 %v4861
  %4899 = vmatprep.subr.mxu0 0.0
  %4900 = vmatpush1.msra.mxu0 %v4862
  %4901 = vmatprep.subr.mxu0 0.0
  %4902 = vmatpush1.msra.mxu0 %v4863
  %4903 = vmatprep.subr.mxu0 0.0
  %4904 = vmatpush1.msra.mxu0 0.0
  %4905 = vmatprep.subr.mxu0 0.0
  %4906 = vmatpush1.msra.mxu0 0.0
  %4907 = vmatprep.subr.mxu0 0.0
  %4908 = vmatpush1.msra.mxu0 0.0
  %4909 = vmatprep.subr.mxu0 0.0
  %4910 = vmatpush1.msra.mxu0 0.0
  %4911 = vmatprep.subr.mxu0 0.0
  %4912 = vmatpush1.msra.mxu0 0.0
  %4913 = vmatprep.subr.mxu0 0.0
  %4914 = vmatpush1.msra.mxu0 0.0
  %4915 = vmatprep.subr.mxu0 0.0
  %4916 = vmatpush1.msra.mxu0 0.0
  %4917 = vmatprep.subr.mxu0 0.0
  %4918 = vmatpush1.msra.mxu0 0.0
  %4919 = vmatprep.subr.mxu0 0.0
  %4920 = vmatpush1.msra.mxu0 0.0
  %4921 = vmatprep.subr.mxu0 0.0
  %4922 = vmatpush1.msra.mxu0 0.0
  %4923 = vmatprep.subr.mxu0 0.0
  %4924 = vmatpush1.msra.mxu0 0.0
  %4925 = vmatprep.subr.mxu0 0.0
  %4926 = vmatpush1.msra.mxu0 0.0
  %4927 = vmatprep.subr.mxu0 0.0
  %4928 = vmatpush1.msra.mxu0 0.0
  %4929 = vmatprep.subr.mxu0 0.0
  %4930 = vmatpush1.msra.mxu0 0.0
  %4931 = vmatprep.subr.mxu0 0.0
  %4932 = vmatpush1.msra.mxu0 0.0
  %4933 = vmatprep.subr.mxu0 0.0
  %4934 = vmatpush1.msra.mxu0 0.0
  %4935 = vmatprep.mubr.f32.mxu0 0.0
  %4936 = vmatmul.mubr.f32.gmra.mrb[0].mxu0 %v4847
  %v4937 = vpop.f32.mrb[0].mxu0
  %v4938 = vadd.f32 %v4869, %v4937
  %v4939 = vpop.f32.mrb[0].mxu0
  %4940 = vdwg.mxu0
  %vm4941 = vcmask 15360
  %v4942 = vsel %vm4941, %v4938, -inf
  %4943 = vmax.xlane.f32.xlu0 %v4942
  %v4944 = vpop.xlane.xlu0 %4943
  %v4945 = vsub.f32 %v4938, %v4944
  %v4946 = vmul.f32 %v4945, 1.442695
  %v4947 = vpow.pop %v4946
  %v4948 = vsel %vm4941, %v4947, 0.0
  %4949 = vadd.xlane.f32.xlu0 %v4948
  %v4950 = vpop.xlane.xlu0 %4949
  %v4951 = vlog2.pop %v4950
  %v4952 = vmul.f32 %v4951, 0.6931472
  %v4953 = vsub.f32 %v4945, %v4952
  %4954 = vst.msk [vmem:[%s7] sm:$0xff] %vm4941, %v4953
  // Predicated region
  $region30: #{net_forward.1} parent=0 // pred_check
    _
  $region31: #{net_forward.1} parent=0 // pred_check_branch
    %4956 = sbr.rel (0) target = $region33
  $region32: #{net_forward.1} parent=0 // pred_region
    _
  $region33: #{net_forward.1} parent=0 // pred_fallthru
    _
  // Predicated region
  $region34: #{net_forward.1} parent=0 // pred_check
    _
  $region35: #{net_forward.1} parent=0 // pred_check_branch
    %4958 = sbr.rel (0) target = $region37
  $region36: #{net_forward.1} parent=0 // pred_region
    _
  $region37: #{net_forward.1} parent=0 // pred_fallthru
    _

</llo_original>
